<compile_context>
chip_gen: v5e
topology: v5e:2x2
jax: 0.10.0
libtpu: 0.0.40
codegen_flags: <defaults>
</compile_context>

<pallas_src>
import jax
import jax.numpy as jnp
import numpy as np
from jax import lax
from jax.experimental import pallas as pl
from jax.experimental.pallas import tpu as pltpu

SEQ = 8
BATCH = 2
EMBED = 64
HIDDEN = 128            # lane-aligned so every gate slice / feature chunk is a whole vreg
ENC_DIM = 2 * HIDDEN
FC = 128
NUM_CLASSES = 2
OUT_PAD = 128           # lane-dense logits; sliced back to NUM_CLASSES in the wrapper
NEG_INF = -1e30

R = 4 * BATCH           # fused recurrence rows: [src-fwd | tgt-fwd | src-bwd | tgt-bwd]
G = 4 * HIDDEN          # gate width (i|f|g|o)
K_IN = 2 * EMBED + 2    # block-diag input [x_f | x_b | 1_f | 1_b] (bias indicator columns)
MXU_DTYPE = jnp.bfloat16  # MXU operands only; accumulation and all elementwise math stay f32


def siamese_kernel(x_ref, bounds_ref, wih_ref, whh_ref, cbias_ref, w1_ref, w2_ref,
                   out_ref, gin_ref):
    H = HIDDEN

    # --- Hoisted input projection (off the serial chain): one block-diagonal matmul produces
    # every row's own-direction gate pre-activation with the gate bias already folded in
    # (indicator columns select b_f / b_b), written once to the (SEQ*R, G) VMEM scratch.
    gin_ref[...] = jnp.dot(x_ref[...], wih_ref[...], preferred_element_type=jnp.float32)

    bounds = bounds_ref[...]                      # (R, 2) int32: [start, stop) per row
    start = bounds[:, 0:1]
    stop = bounds[:, 1:2]
    row = lax.broadcasted_iota(jnp.int32, (R, 1), 0)
    is_fwd = row < (2 * BATCH)                    # rows 0:2B forward, 2B:4B backward
    ones_h = jnp.ones((R, H), jnp.float32)
    # (R, 2H) 0/1 mask that zeroes the "wrong" half of the packed hidden state so each row only
    # multiplies its own direction's block of the stacked Whh = [Whh_f ; Whh_b].
    dirmask = jnp.concatenate([jnp.where(is_fwd, ones_h, 0.0),
                               jnp.where(is_fwd, 0.0, ones_h)], axis=1)

    def step(t, carry):
        h, c, mp = carry
        base = pl.multiple_of(t * R, R)
        g_in = gin_ref[pl.ds(base, R), :]                                   # (R, G) slab
        # Recurrence: direction-packed h (R, 2H) @ stacked Whh (2H, G) -> (R, G); no discarded
        # output columns and no post-matmul direction select.
        h2 = (jnp.concatenate([h, h], axis=1) * dirmask).astype(MXU_DTYPE)
        rec = jnp.dot(h2, whh_ref[...], preferred_element_type=jnp.float32)
        gates = g_in + rec                                                  # (R, G) f32
        # Transcendentals only on the gate blocks that need them (vreg-aligned, H = 128):
        sif = jax.nn.sigmoid(gates[:, :2 * H])        # i|f  (2 vregs)
        g_g = jnp.tanh(gates[:, 2 * H:3 * H])         # g    (1 vreg)
        o_g = jax.nn.sigmoid(gates[:, 3 * H:])        # o    (1 vreg)
        i_g = sif[:, :H]
        f_g = sif[:, H:]
        c_new = f_g * c + i_g * g_g
        h_new = o_g * jnp.tanh(c_new)                 # (1 vreg)
        keep = (t >= start) & (t < stop)              # (R, 1) packed-sequence semantics
        h = jnp.where(keep, h_new, h)
        c = jnp.where(keep, c_new, c)
        mp = jnp.maximum(mp, jnp.where(keep, h_new, NEG_INF))
        return h, c, mp

    init = (jnp.zeros((R, H), jnp.float32),
            jnp.zeros((R, H), jnp.float32),
            jnp.full((R, H), NEG_INF, jnp.float32))
    _, _, mp = lax.fori_loop(0, SEQ, step, init, unroll=True)

    # --- Classifier: single K = 8H matmul on the lane-concatenated feature vector.
    B = BATCH
    u_f, v_f = mp[0:B], mp[B:2 * B]               # forward max-pools (src, tgt)
    u_b, v_b = mp[2 * B:3 * B], mp[3 * B:4 * B]   # backward max-pools (src, tgt)
    feats = jnp.concatenate(                      # (B, 8H) == [u, v, |u-v|, u*v]
        [u_f, u_b, v_f, v_b,
         jnp.abs(u_f - v_f), jnp.abs(u_b - v_b),
         u_f * v_f, u_b * v_b], axis=1).astype(MXU_DTYPE)
    b1 = cbias_ref[:, :FC]
    b2 = cbias_ref[:, FC:]
    h1 = jnp.tanh(jnp.dot(feats, w1_ref[...], preferred_element_type=jnp.float32) + b1)
    out_ref[...] = jnp.dot(h1.astype(MXU_DTYPE), w2_ref[...],
                           preferred_element_type=jnp.float32) + b2


def init_params(key):
    ks = jax.random.split(key, 10)

    def w(k, shape, scale=0.1):
        return (scale * jax.random.normal(k, shape)).astype(jnp.float32)

    return dict(
        wih_f=w(ks[0], (EMBED, 4 * HIDDEN)),
        whh_f=w(ks[1], (HIDDEN, 4 * HIDDEN)),
        b_f=w(ks[2], (1, 4 * HIDDEN)),
        wih_b=w(ks[3], (EMBED, 4 * HIDDEN)),
        whh_b=w(ks[4], (HIDDEN, 4 * HIDDEN)),
        b_b=w(ks[5], (1, 4 * HIDDEN)),
        w1=w(ks[6], (4 * ENC_DIM, FC)),
        b1=w(ks[7], (1, FC)),
        w2=w(ks[8], (FC, NUM_CLASSES)),
        b2=w(ks[9], (1, NUM_CLASSES)),
    )


@jax.jit
def siamese_forward(src, src_len, tgt, tgt_len, params):
    seq, bsz, _ = src.shape
    # Four streams per step: [src-fwd | tgt-fwd | src-bwd | tgt-bwd]; backward streams are
    # pre-reversed in time so the fused loop only ever indexes step t.  Each row carries only
    # its own direction's embedding (block-diag) plus a one-hot bias-indicator column pair.
    x_f = jnp.concatenate([src, tgt], axis=1)                       # (seq, 2B, E)
    zE = jnp.zeros_like(x_f)
    one = jnp.ones((seq, 2 * bsz, 1), jnp.float32)
    zr1 = jnp.zeros_like(one)
    x_fp = jnp.concatenate([x_f, zE, one, zr1], axis=2)             # fwd: [x | 0 | 1 | 0]
    x_bp = jnp.concatenate([zE, x_f, zr1, one], axis=2)[::-1]       # bwd: [0 | x | 0 | 1] (rev)
    x_all = jnp.concatenate([x_fp, x_bp], axis=1)                   # (seq, 4B, K_IN)
    x2d = x_all.reshape(seq * 4 * bsz, K_IN).astype(MXU_DTYPE)

    # Per-row valid window [start, stop) replaces (seq, B, 1) float mask tensors.
    lens = jnp.concatenate([src_len, tgt_len]).astype(jnp.int32)    # (2B,)
    starts = jnp.concatenate([jnp.zeros_like(lens), seq - lens])    # (4B,)
    stops = jnp.concatenate([lens, jnp.full_like(lens, seq)])       # (4B,)
    bounds = jnp.stack([starts, stops], axis=1)                     # (4B, 2) int32

    # Packed weights (bf16 MXU operands, f32 biases).  wih_blk folds both directions' input
    # weights AND gate biases; whh_blk stacks the two directions' recurrent weights.
    wih_blk = jnp.concatenate(
        [params["wih_f"], params["wih_b"], params["b_f"], params["b_b"]],
        axis=0).astype(MXU_DTYPE)                                   # (K_IN, G)
    whh_blk = jnp.concatenate(
        [params["whh_f"], params["whh_b"]], axis=0).astype(MXU_DTYPE)  # (2H, G)
    w1 = params["w1"].astype(MXU_DTYPE)                             # (8H, FC)
    w2p = jnp.zeros((FC, OUT_PAD), jnp.float32).at[:, :NUM_CLASSES].set(params["w2"])
    b2p = jnp.zeros((1, OUT_PAD), jnp.float32).at[:, :NUM_CLASSES].set(params["b2"])
    cls_bias = jnp.concatenate([params["b1"], b2p], axis=1)         # (1, FC + OUT_PAD) f32
    w2p = w2p.astype(MXU_DTYPE)

    vmem = pl.BlockSpec(memory_space=pltpu.MemorySpace.VMEM)
    out = pl.pallas_call(
        siamese_kernel,
        out_shape=jax.ShapeDtypeStruct((bsz, OUT_PAD), jnp.float32),
        in_specs=[vmem] * 7,
        out_specs=vmem,
        scratch_shapes=[pltpu.VMEM((seq * 4 * bsz, G), jnp.float32)],
    )(x2d, bounds, wih_blk, whh_blk, cls_bias, w1, w2p)
    return out[:, :NUM_CLASSES]


def _ref_forward(src, src_len, tgt, tgt_len, p, mxu_dtype=jnp.float32):
    """Pure-JAX reference. mxu_dtype=f32 -> module semantics; bf16 -> mirrors the kernel's
    MXU-operand precision (f32 accumulation, f32 elementwise)."""
    H = HIDDEN

    def mm(a, b):
        return jnp.dot(a.astype(mxu_dtype), b.astype(mxu_dtype),
                       preferred_element_type=jnp.float32)

    def lstm_dir(x, length, wih, whh, b, reverse):
        seq, bsz, _ = x.shape
        order = range(seq - 1, -1, -1) if reverse else range(seq)
        h = jnp.zeros((bsz, H), jnp.float32)
        c = jnp.zeros_like(h)
        mp = jnp.full_like(h, NEG_INF)
        for t in order:
            gates = mm(x[t], wih) + mm(h, whh) + b
            i_g = jax.nn.sigmoid(gates[:, :H])
            f_g = jax.nn.sigmoid(gates[:, H:2 * H])
            g_g = jnp.tanh(gates[:, 2 * H:3 * H])
            o_g = jax.nn.sigmoid(gates[:, 3 * H:])
            c_new = f_g * c + i_g * g_g
            h_new = o_g * jnp.tanh(c_new)
            keep = (t < length)[:, None]
            h = jnp.where(keep, h_new, h)
            c = jnp.where(keep, c_new, c)
            mp = jnp.maximum(mp, jnp.where(keep, h_new, NEG_INF))
        return mp

    def encode(x, length):
        return jnp.concatenate(
            [lstm_dir(x, length, p["wih_f"], p["whh_f"], p["b_f"], False),
             lstm_dir(x, length, p["wih_b"], p["whh_b"], p["b_b"], True)], axis=1)

    u = encode(src, src_len)
    v = encode(tgt, tgt_len)
    feats = jnp.concatenate([u, v, jnp.abs(u - v), u * v], axis=1)
    h1 = jnp.tanh(mm(feats, p["w1"]) + p["b1"])
    return mm(h1, p["w2"]) + p["b2"]


if __name__ == "__main__":
    key = jax.random.PRNGKey(0)
    k_src, k_tgt, k_par = jax.random.split(key, 3)

    src = jax.random.normal(k_src, (SEQ, BATCH, EMBED), jnp.float32)
    tgt = jax.random.normal(k_tgt, (SEQ, BATCH, EMBED), jnp.float32)
    # Note: zero-length sentences would leave the max-pool at NEG_INF (matches reference).
    src_len = jnp.array([SEQ, 5], dtype=jnp.int32)
    tgt_len = jnp.array([6, SEQ], dtype=jnp.int32)
    params = init_params(k_par)

    out = jax.block_until_ready(siamese_forward(src, src_len, tgt, tgt_len, params))
    assert out.shape == (BATCH, NUM_CLASSES)

    # Tight check vs a reference that mirrors the kernel's bf16 MXU-operand math
    # (catches indexing/masking/fusion bugs independently of the bf16-vs-f32 numeric gap).
    ref_bf16 = jax.block_until_ready(
        _ref_forward(src, src_len, tgt, tgt_len, params, mxu_dtype=MXU_DTYPE))
    np.testing.assert_allclose(np.asarray(out), np.asarray(ref_bf16), rtol=5e-3, atol=5e-3)

    # Loose check vs the f32 module semantics; tolerance widened for bf16 MXU operands,
    # as anticipated by the performance review.
    ref_f32 = jax.block_until_ready(_ref_forward(src, src_len, tgt, tgt_len, params))
    np.testing.assert_allclose(np.asarray(out), np.asarray(ref_f32), rtol=3e-2, atol=3e-2)

    print("KERNEL_OK")
</pallas_src>

<mosaic_0001>
module attributes {stable_mosaic.version = 11 : i64} {
  func.func @siamese_kernel(%arg0: memref<64x130xbf16, #tpu.memory_space<vmem>>, %arg1: memref<8x2xi32, #tpu.memory_space<vmem>>, %arg2: memref<130x512xbf16, #tpu.memory_space<vmem>>, %arg3: memref<256x512xbf16, #tpu.memory_space<vmem>>, %arg4: memref<1x256xf32, #tpu.memory_space<vmem>>, %arg5: memref<1024x128xbf16, #tpu.memory_space<vmem>>, %arg6: memref<128x128xbf16, #tpu.memory_space<vmem>>, %arg7: memref<2x128xf32, #tpu.memory_space<vmem>>, %arg8: memref<64x512xf32, #tpu.memory_space<vmem>>) attributes {dimension_semantics = [], scalar_prefetch = 0 : i64, scratch_operands = 1 : i64, tpu.core_type = #tpu.core_type<tc>} {
    %c0 = arith.constant 0 : index
    %c0_0 = arith.constant 0 : index
    %0 = vector.load %arg0[%c0, %c0_0] : memref<64x130xbf16, #tpu.memory_space<vmem>>, vector<64x130xbf16>
    %c0_1 = arith.constant 0 : index
    %c0_2 = arith.constant 0 : index
    %1 = vector.load %arg2[%c0_1, %c0_2] : memref<130x512xbf16, #tpu.memory_space<vmem>>, vector<130x512xbf16>
    %cst = arith.constant dense<0.000000e+00> : vector<64x512xf32>
    %2 = tpu.matmul %0, %1, %cst {dimension_numbers = #tpu.dot_dimension_numbers<[1], [0], [0], [1], [0, 0, 1, 1], [], []>} : vector<64x130xbf16>, vector<130x512xbf16>, vector<64x512xf32> -> vector<64x512xf32>
    %c0_3 = arith.constant 0 : index
    %c0_4 = arith.constant 0 : index
    %3 = vector.load %arg8[%c0_3, %c0_4] : memref<64x512xf32, #tpu.memory_space<vmem>>, vector<64x512xf32>
    tpu.vector_store %arg8[%c0_3, %c0_4], %2 {strides = array<i32>} : memref<64x512xf32, #tpu.memory_space<vmem>>, vector<64x512xf32>,
    %c0_5 = arith.constant 0 : index
    %c0_6 = arith.constant 0 : index
    %4 = vector.load %arg1[%c0_5, %c0_6] : memref<8x2xi32, #tpu.memory_space<vmem>>, vector<8x2xi32>
    %5 = vector.extract_strided_slice %4 {offsets = [0, 0], sizes = [8, 1], strides = [1, 1]} : vector<8x2xi32> to vector<8x1xi32>
    %6 = vector.extract_strided_slice %4 {offsets = [0, 1], sizes = [8, 1], strides = [1, 1]} : vector<8x2xi32> to vector<8x1xi32>
    %7 = tpu.iota {dimensions = array<i32: 0>} : vector<8x1xi32>
    %c4_i32 = arith.constant 4 : i32
    %8 = vector.broadcast %c4_i32 : i32 to vector<8x1xi32>
    %9 = arith.cmpi slt, %7, %8 : vector<8x1xi32>
    %cst_7 = arith.constant 1.000000e+00 : f32
    %10 = vector.broadcast %cst_7 : f32 to vector<8x128xf32>
    %cst_8 = arith.constant 0.000000e+00 : f32
    %11 = vector.shape_cast %9 : vector<8x1xi1> to vector<8x1xi1>
    %12 = vector.broadcast %11 : vector<8x1xi1> to vector<8x128xi1>
    %13 = vector.broadcast %cst_8 : f32 to vector<8x128xf32>
    %14 = arith.select %12, %10, %13 : vector<8x128xi1>, vector<8x128xf32>
    %cst_9 = arith.constant 0.000000e+00 : f32
    %15 = vector.shape_cast %9 : vector<8x1xi1> to vector<8x1xi1>
    %16 = vector.broadcast %15 : vector<8x1xi1> to vector<8x128xi1>
    %17 = vector.broadcast %cst_9 : f32 to vector<8x128xf32>
    %18 = arith.select %16, %17, %10 : vector<8x128xi1>, vector<8x128xf32>
    %19 = tpu.concatenate %14, %18 in 1 : vector<8x128xf32>, vector<8x128xf32> -> vector<8x256xf32>
    %cst_10 = arith.constant 0.000000e+00 : f32
    %20 = vector.broadcast %cst_10 : f32 to vector<8x128xf32>
    %cst_11 = arith.constant 0.000000e+00 : f32
    %21 = vector.broadcast %cst_11 : f32 to vector<8x128xf32>
    %cst_12 = arith.constant -1.000000e+30 : f32
    %22 = vector.broadcast %cst_12 : f32 to vector<8x128xf32>
    %c0_i32 = arith.constant 0 : i32
    %c8_i32 = arith.constant 8 : i32
    %23 = arith.muli %c0_i32, %c8_i32 : i32
    %24 = tpu.assume_multiple %23, 8 : i32
    %25 = arith.index_cast %24 : i32 to index
    %c0_13 = arith.constant 0 : index
    %26 = vector.load %arg8[%25, %c0_13] : memref<64x512xf32, #tpu.memory_space<vmem>>, vector<8x512xf32>
    %27 = tpu.concatenate %20, %20 in 1 : vector<8x128xf32>, vector<8x128xf32> -> vector<8x256xf32>
    %28 = arith.mulf %27, %19 : vector<8x256xf32>
    %29 = arith.truncf %28 : vector<8x256xf32> to vector<8x256xbf16>
    %c0_14 = arith.constant 0 : index
    %c0_15 = arith.constant 0 : index
    %30 = vector.load %arg3[%c0_14, %c0_15] : memref<256x512xbf16, #tpu.memory_space<vmem>>, vector<256x512xbf16>
    %cst_16 = arith.constant dense<0.000000e+00> : vector<8x512xf32>
    %31 = tpu.matmul %29, %30, %cst_16 {dimension_numbers = #tpu.dot_dimension_numbers<[1], [0], [0], [1], [0, 0, 1, 1], [], []>} : vector<8x256xbf16>, vector<256x512xbf16>, vector<8x512xf32> -> vector<8x512xf32>
    %32 = arith.addf %26, %31 : vector<8x512xf32>
    %33 = vector.extract_strided_slice %32 {offsets = [0, 0], sizes = [8, 256], strides = [1, 1]} : vector<8x512xf32> to vector<8x256xf32>
    %34 = arith.negf %33 : vector<8x256xf32>
    %35 = math.exp %34 : vector<8x256xf32>
    %cst_17 = arith.constant 1.000000e+00 : f32
    %36 = vector.broadcast %cst_17 : f32 to vector<8x256xf32>
    %37 = arith.addf %36, %35 : vector<8x256xf32>
    %38 = arith.divf %36, %37 : vector<8x256xf32>
    %39 = vector.extract_strided_slice %32 {offsets = [0, 256], sizes = [8, 128], strides = [1, 1]} : vector<8x512xf32> to vector<8x128xf32>
    %40 = math.tanh %39 : vector<8x128xf32>
    %41 = vector.extract_strided_slice %32 {offsets = [0, 384], sizes = [8, 128], strides = [1, 1]} : vector<8x512xf32> to vector<8x128xf32>
    %42 = arith.negf %41 : vector<8x128xf32>
    %43 = math.exp %42 : vector<8x128xf32>
    %cst_18 = arith.constant 1.000000e+00 : f32
    %44 = vector.broadcast %cst_18 : f32 to vector<8x128xf32>
    %45 = arith.addf %44, %43 : vector<8x128xf32>
    %46 = arith.divf %44, %45 : vector<8x128xf32>
    %47 = vector.extract_strided_slice %38 {offsets = [0, 0], sizes = [8, 128], strides = [1, 1]} : vector<8x256xf32> to vector<8x128xf32>
    %48 = vector.extract_strided_slice %38 {offsets = [0, 128], sizes = [8, 128], strides = [1, 1]} : vector<8x256xf32> to vector<8x128xf32>
    %49 = arith.mulf %48, %21 : vector<8x128xf32>
    %50 = arith.mulf %47, %40 : vector<8x128xf32>
    %51 = arith.addf %49, %50 : vector<8x128xf32>
    %52 = math.tanh %51 : vector<8x128xf32>
    %53 = arith.mulf %46, %52 : vector<8x128xf32>
    %54 = vector.broadcast %c0_i32 : i32 to vector<8x1xi32>
    %55 = arith.cmpi sge, %54, %5 : vector<8x1xi32>
    %56 = vector.broadcast %c0_i32 : i32 to vector<8x1xi32>
    %57 = arith.cmpi slt, %56, %6 : vector<8x1xi32>
    %58 = arith.andi %55, %57 : vector<8x1xi1>
    %59 = vector.shape_cast %58 : vector<8x1xi1> to vector<8x1xi1>
    %60 = vector.broadcast %59 : vector<8x1xi1> to vector<8x128xi1>
    %61 = arith.select %60, %53, %20 : vector<8x128xi1>, vector<8x128xf32>
    %62 = vector.shape_cast %58 : vector<8x1xi1> to vector<8x1xi1>
    %63 = vector.broadcast %62 : vector<8x1xi1> to vector<8x128xi1>
    %64 = arith.select %63, %51, %21 : vector<8x128xi1>, vector<8x128xf32>
    %cst_19 = arith.constant -1.000000e+30 : f32
    %65 = vector.shape_cast %58 : vector<8x1xi1> to vector<8x1xi1>
    %66 = vector.broadcast %65 : vector<8x1xi1> to vector<8x128xi1>
    %67 = vector.broadcast %cst_19 : f32 to vector<8x128xf32>
    %68 = arith.select %66, %53, %67 : vector<8x128xi1>, vector<8x128xf32>
    %69 = arith.maximumf %22, %68 : vector<8x128xf32>
    %c1_i32 = arith.constant 1 : i32
    %c8_i32_20 = arith.constant 8 : i32
    %70 = arith.muli %c1_i32, %c8_i32_20 : i32
    %71 = tpu.assume_multiple %70, 8 : i32
    %72 = arith.index_cast %71 : i32 to index
    %c0_21 = arith.constant 0 : index
    %73 = vector.load %arg8[%72, %c0_21] : memref<64x512xf32, #tpu.memory_space<vmem>>, vector<8x512xf32>
    %74 = tpu.concatenate %61, %61 in 1 : vector<8x128xf32>, vector<8x128xf32> -> vector<8x256xf32>
    %75 = arith.mulf %74, %19 : vector<8x256xf32>
    %76 = arith.truncf %75 : vector<8x256xf32> to vector<8x256xbf16>
    %c0_22 = arith.constant 0 : index
    %c0_23 = arith.constant 0 : index
    %77 = vector.load %arg3[%c0_22, %c0_23] : memref<256x512xbf16, #tpu.memory_space<vmem>>, vector<256x512xbf16>
    %cst_24 = arith.constant dense<0.000000e+00> : vector<8x512xf32>
    %78 = tpu.matmul %76, %77, %cst_24 {dimension_numbers = #tpu.dot_dimension_numbers<[1], [0], [0], [1], [0, 0, 1, 1], [], []>} : vector<8x256xbf16>, vector<256x512xbf16>, vector<8x512xf32> -> vector<8x512xf32>
    %79 = arith.addf %73, %78 : vector<8x512xf32>
    %80 = vector.extract_strided_slice %79 {offsets = [0, 0], sizes = [8, 256], strides = [1, 1]} : vector<8x512xf32> to vector<8x256xf32>
    %81 = arith.negf %80 : vector<8x256xf32>
    %82 = math.exp %81 : vector<8x256xf32>
    %cst_25 = arith.constant 1.000000e+00 : f32
    %83 = vector.broadcast %cst_25 : f32 to vector<8x256xf32>
    %84 = arith.addf %83, %82 : vector<8x256xf32>
    %85 = arith.divf %83, %84 : vector<8x256xf32>
    %86 = vector.extract_strided_slice %79 {offsets = [0, 256], sizes = [8, 128], strides = [1, 1]} : vector<8x512xf32> to vector<8x128xf32>
    %87 = math.tanh %86 : vector<8x128xf32>
    %88 = vector.extract_strided_slice %79 {offsets = [0, 384], sizes = [8, 128], strides = [1, 1]} : vector<8x512xf32> to vector<8x128xf32>
    %89 = arith.negf %88 : vector<8x128xf32>
    %90 = math.exp %89 : vector<8x128xf32>
    %cst_26 = arith.constant 1.000000e+00 : f32
    %91 = vector.broadcast %cst_26 : f32 to vector<8x128xf32>
    %92 = arith.addf %91, %90 : vector<8x128xf32>
    %93 = arith.divf %91, %92 : vector<8x128xf32>
    %94 = vector.extract_strided_slice %85 {offsets = [0, 0], sizes = [8, 128], strides = [1, 1]} : vector<8x256xf32> to vector<8x128xf32>
    %95 = vector.extract_strided_slice %85 {offsets = [0, 128], sizes = [8, 128], strides = [1, 1]} : vector<8x256xf32> to vector<8x128xf32>
    %96 = arith.mulf %95, %64 : vector<8x128xf32>
    %97 = arith.mulf %94, %87 : vector<8x128xf32>
    %98 = arith.addf %96, %97 : vector<8x128xf32>
    %99 = math.tanh %98 : vector<8x128xf32>
    %100 = arith.mulf %93, %99 : vector<8x128xf32>
    %101 = vector.broadcast %c1_i32 : i32 to vector<8x1xi32>
    %102 = arith.cmpi sge, %101, %5 : vector<8x1xi32>
    %103 = vector.broadcast %c1_i32 : i32 to vector<8x1xi32>
    %104 = arith.cmpi slt, %103, %6 : vector<8x1xi32>
    %105 = arith.andi %102, %104 : vector<8x1xi1>
    %106 = vector.shape_cast %105 : vector<8x1xi1> to vector<8x1xi1>
    %107 = vector.broadcast %106 : vector<8x1xi1> to vector<8x128xi1>
    %108 = arith.select %107, %100, %61 : vector<8x128xi1>, vector<8x128xf32>
    %109 = vector.shape_cast %105 : vector<8x1xi1> to vector<8x1xi1>
    %110 = vector.broadcast %109 : vector<8x1xi1> to vector<8x128xi1>
    %111 = arith.select %110, %98, %64 : vector<8x128xi1>, vector<8x128xf32>
    %cst_27 = arith.constant -1.000000e+30 : f32
    %112 = vector.shape_cast %105 : vector<8x1xi1> to vector<8x1xi1>
    %113 = vector.broadcast %112 : vector<8x1xi1> to vector<8x128xi1>
    %114 = vector.broadcast %cst_27 : f32 to vector<8x128xf32>
    %115 = arith.select %113, %100, %114 : vector<8x128xi1>, vector<8x128xf32>
    %116 = arith.maximumf %69, %115 : vector<8x128xf32>
    %c2_i32 = arith.constant 2 : i32
    %c8_i32_28 = arith.constant 8 : i32
    %117 = arith.muli %c2_i32, %c8_i32_28 : i32
    %118 = tpu.assume_multiple %117, 8 : i32
    %119 = arith.index_cast %118 : i32 to index
    %c0_29 = arith.constant 0 : index
    %120 = vector.load %arg8[%119, %c0_29] : memref<64x512xf32, #tpu.memory_space<vmem>>, vector<8x512xf32>
    %121 = tpu.concatenate %108, %108 in 1 : vector<8x128xf32>, vector<8x128xf32> -> vector<8x256xf32>
    %122 = arith.mulf %121, %19 : vector<8x256xf32>
    %123 = arith.truncf %122 : vector<8x256xf32> to vector<8x256xbf16>
    %c0_30 = arith.constant 0 : index
    %c0_31 = arith.constant 0 : index
    %124 = vector.load %arg3[%c0_30, %c0_31] : memref<256x512xbf16, #tpu.memory_space<vmem>>, vector<256x512xbf16>
    %cst_32 = arith.constant dense<0.000000e+00> : vector<8x512xf32>
    %125 = tpu.matmul %123, %124, %cst_32 {dimension_numbers = #tpu.dot_dimension_numbers<[1], [0], [0], [1], [0, 0, 1, 1], [], []>} : vector<8x256xbf16>, vector<256x512xbf16>, vector<8x512xf32> -> vector<8x512xf32>
    %126 = arith.addf %120, %125 : vector<8x512xf32>
    %127 = vector.extract_strided_slice %126 {offsets = [0, 0], sizes = [8, 256], strides = [1, 1]} : vector<8x512xf32> to vector<8x256xf32>
    %128 = arith.negf %127 : vector<8x256xf32>
    %129 = math.exp %128 : vector<8x256xf32>
    %cst_33 = arith.constant 1.000000e+00 : f32
    %130 = vector.broadcast %cst_33 : f32 to vector<8x256xf32>
    %131 = arith.addf %130, %129 : vector<8x256xf32>
    %132 = arith.divf %130, %131 : vector<8x256xf32>
    %133 = vector.extract_strided_slice %126 {offsets = [0, 256], sizes = [8, 128], strides = [1, 1]} : vector<8x512xf32> to vector<8x128xf32>
    %134 = math.tanh %133 : vector<8x128xf32>
    %135 = vector.extract_strided_slice %126 {offsets = [0, 384], sizes = [8, 128], strides = [1, 1]} : vector<8x512xf32> to vector<8x128xf32>
    %136 = arith.negf %135 : vector<8x128xf32>
    %137 = math.exp %136 : vector<8x128xf32>
    %cst_34 = arith.constant 1.000000e+00 : f32
    %138 = vector.broadcast %cst_34 : f32 to vector<8x128xf32>
    %139 = arith.addf %138, %137 : vector<8x128xf32>
    %140 = arith.divf %138, %139 : vector<8x128xf32>
    %141 = vector.extract_strided_slice %132 {offsets = [0, 0], sizes = [8, 128], strides = [1, 1]} : vector<8x256xf32> to vector<8x128xf32>
    %142 = vector.extract_strided_slice %132 {offsets = [0, 128], sizes = [8, 128], strides = [1, 1]} : vector<8x256xf32> to vector<8x128xf32>
    %143 = arith.mulf %142, %111 : vector<8x128xf32>
    %144 = arith.mulf %141, %134 : vector<8x128xf32>
    %145 = arith.addf %143, %144 : vector<8x128xf32>
    %146 = math.tanh %145 : vector<8x128xf32>
    %147 = arith.mulf %140, %146 : vector<8x128xf32>
    %148 = vector.broadcast %c2_i32 : i32 to vector<8x1xi32>
    %149 = arith.cmpi sge, %148, %5 : vector<8x1xi32>
    %150 = vector.broadcast %c2_i32 : i32 to vector<8x1xi32>
    %151 = arith.cmpi slt, %150, %6 : vector<8x1xi32>
    %152 = arith.andi %149, %151 : vector<8x1xi1>
    %153 = vector.shape_cast %152 : vector<8x1xi1> to vector<8x1xi1>
    %154 = vector.broadcast %153 : vector<8x1xi1> to vector<8x128xi1>
    %155 = arith.select %154, %147, %108 : vector<8x128xi1>, vector<8x128xf32>
    %156 = vector.shape_cast %152 : vector<8x1xi1> to vector<8x1xi1>
    %157 = vector.broadcast %156 : vector<8x1xi1> to vector<8x128xi1>
    %158 = arith.select %157, %145, %111 : vector<8x128xi1>, vector<8x128xf32>
    %cst_35 = arith.constant -1.000000e+30 : f32
    %159 = vector.shape_cast %152 : vector<8x1xi1> to vector<8x1xi1>
    %160 = vector.broadcast %159 : vector<8x1xi1> to vector<8x128xi1>
    %161 = vector.broadcast %cst_35 : f32 to vector<8x128xf32>
    %162 = arith.select %160, %147, %161 : vector<8x128xi1>, vector<8x128xf32>
    %163 = arith.maximumf %116, %162 : vector<8x128xf32>
    %c3_i32 = arith.constant 3 : i32
    %c8_i32_36 = arith.constant 8 : i32
    %164 = arith.muli %c3_i32, %c8_i32_36 : i32
    %165 = tpu.assume_multiple %164, 8 : i32
    %166 = arith.index_cast %165 : i32 to index
    %c0_37 = arith.constant 0 : index
    %167 = vector.load %arg8[%166, %c0_37] : memref<64x512xf32, #tpu.memory_space<vmem>>, vector<8x512xf32>
    %168 = tpu.concatenate %155, %155 in 1 : vector<8x128xf32>, vector<8x128xf32> -> vector<8x256xf32>
    %169 = arith.mulf %168, %19 : vector<8x256xf32>
    %170 = arith.truncf %169 : vector<8x256xf32> to vector<8x256xbf16>
    %c0_38 = arith.constant 0 : index
    %c0_39 = arith.constant 0 : index
    %171 = vector.load %arg3[%c0_38, %c0_39] : memref<256x512xbf16, #tpu.memory_space<vmem>>, vector<256x512xbf16>
    %cst_40 = arith.constant dense<0.000000e+00> : vector<8x512xf32>
    %172 = tpu.matmul %170, %171, %cst_40 {dimension_numbers = #tpu.dot_dimension_numbers<[1], [0], [0], [1], [0, 0, 1, 1], [], []>} : vector<8x256xbf16>, vector<256x512xbf16>, vector<8x512xf32> -> vector<8x512xf32>
    %173 = arith.addf %167, %172 : vector<8x512xf32>
    %174 = vector.extract_strided_slice %173 {offsets = [0, 0], sizes = [8, 256], strides = [1, 1]} : vector<8x512xf32> to vector<8x256xf32>
    %175 = arith.negf %174 : vector<8x256xf32>
    %176 = math.exp %175 : vector<8x256xf32>
    %cst_41 = arith.constant 1.000000e+00 : f32
    %177 = vector.broadcast %cst_41 : f32 to vector<8x256xf32>
    %178 = arith.addf %177, %176 : vector<8x256xf32>
    %179 = arith.divf %177, %178 : vector<8x256xf32>
    %180 = vector.extract_strided_slice %173 {offsets = [0, 256], sizes = [8, 128], strides = [1, 1]} : vector<8x512xf32> to vector<8x128xf32>
    %181 = math.tanh %180 : vector<8x128xf32>
    %182 = vector.extract_strided_slice %173 {offsets = [0, 384], sizes = [8, 128], strides = [1, 1]} : vector<8x512xf32> to vector<8x128xf32>
    %183 = arith.negf %182 : vector<8x128xf32>
    %184 = math.exp %183 : vector<8x128xf32>
    %cst_42 = arith.constant 1.000000e+00 : f32
    %185 = vector.broadcast %cst_42 : f32 to vector<8x128xf32>
    %186 = arith.addf %185, %184 : vector<8x128xf32>
    %187 = arith.divf %185, %186 : vector<8x128xf32>
    %188 = vector.extract_strided_slice %179 {offsets = [0, 0], sizes = [8, 128], strides = [1, 1]} : vector<8x256xf32> to vector<8x128xf32>
    %189 = vector.extract_strided_slice %179 {offsets = [0, 128], sizes = [8, 128], strides = [1, 1]} : vector<8x256xf32> to vector<8x128xf32>
    %190 = arith.mulf %189, %158 : vector<8x128xf32>
    %191 = arith.mulf %188, %181 : vector<8x128xf32>
    %192 = arith.addf %190, %191 : vector<8x128xf32>
    %193 = math.tanh %192 : vector<8x128xf32>
    %194 = arith.mulf %187, %193 : vector<8x128xf32>
    %195 = vector.broadcast %c3_i32 : i32 to vector<8x1xi32>
    %196 = arith.cmpi sge, %195, %5 : vector<8x1xi32>
    %197 = vector.broadcast %c3_i32 : i32 to vector<8x1xi32>
    %198 = arith.cmpi slt, %197, %6 : vector<8x1xi32>
    %199 = arith.andi %196, %198 : vector<8x1xi1>
    %200 = vector.shape_cast %199 : vector<8x1xi1> to vector<8x1xi1>
    %201 = vector.broadcast %200 : vector<8x1xi1> to vector<8x128xi1>
    %202 = arith.select %201, %194, %155 : vector<8x128xi1>, vector<8x128xf32>
    %203 = vector.shape_cast %199 : vector<8x1xi1> to vector<8x1xi1>
    %204 = vector.broadcast %203 : vector<8x1xi1> to vector<8x128xi1>
    %205 = arith.select %204, %192, %158 : vector<8x128xi1>, vector<8x128xf32>
    %cst_43 = arith.constant -1.000000e+30 : f32
    %206 = vector.shape_cast %199 : vector<8x1xi1> to vector<8x1xi1>
    %207 = vector.broadcast %206 : vector<8x1xi1> to vector<8x128xi1>
    %208 = vector.broadcast %cst_43 : f32 to vector<8x128xf32>
    %209 = arith.select %207, %194, %208 : vector<8x128xi1>, vector<8x128xf32>
    %210 = arith.maximumf %163, %209 : vector<8x128xf32>
    %c4_i32_44 = arith.constant 4 : i32
    %c8_i32_45 = arith.constant 8 : i32
    %211 = arith.muli %c4_i32_44, %c8_i32_45 : i32
    %212 = tpu.assume_multiple %211, 8 : i32
    %213 = arith.index_cast %212 : i32 to index
    %c0_46 = arith.constant 0 : index
    %214 = vector.load %arg8[%213, %c0_46] : memref<64x512xf32, #tpu.memory_space<vmem>>, vector<8x512xf32>
    %215 = tpu.concatenate %202, %202 in 1 : vector<8x128xf32>, vector<8x128xf32> -> vector<8x256xf32>
    %216 = arith.mulf %215, %19 : vector<8x256xf32>
    %217 = arith.truncf %216 : vector<8x256xf32> to vector<8x256xbf16>
    %c0_47 = arith.constant 0 : index
    %c0_48 = arith.constant 0 : index
    %218 = vector.load %arg3[%c0_47, %c0_48] : memref<256x512xbf16, #tpu.memory_space<vmem>>, vector<256x512xbf16>
    %cst_49 = arith.constant dense<0.000000e+00> : vector<8x512xf32>
    %219 = tpu.matmul %217, %218, %cst_49 {dimension_numbers = #tpu.dot_dimension_numbers<[1], [0], [0], [1], [0, 0, 1, 1], [], []>} : vector<8x256xbf16>, vector<256x512xbf16>, vector<8x512xf32> -> vector<8x512xf32>
    %220 = arith.addf %214, %219 : vector<8x512xf32>
    %221 = vector.extract_strided_slice %220 {offsets = [0, 0], sizes = [8, 256], strides = [1, 1]} : vector<8x512xf32> to vector<8x256xf32>
    %222 = arith.negf %221 : vector<8x256xf32>
    %223 = math.exp %222 : vector<8x256xf32>
    %cst_50 = arith.constant 1.000000e+00 : f32
    %224 = vector.broadcast %cst_50 : f32 to vector<8x256xf32>
    %225 = arith.addf %224, %223 : vector<8x256xf32>
    %226 = arith.divf %224, %225 : vector<8x256xf32>
    %227 = vector.extract_strided_slice %220 {offsets = [0, 256], sizes = [8, 128], strides = [1, 1]} : vector<8x512xf32> to vector<8x128xf32>
    %228 = math.tanh %227 : vector<8x128xf32>
    %229 = vector.extract_strided_slice %220 {offsets = [0, 384], sizes = [8, 128], strides = [1, 1]} : vector<8x512xf32> to vector<8x128xf32>
    %230 = arith.negf %229 : vector<8x128xf32>
    %231 = math.exp %230 : vector<8x128xf32>
    %cst_51 = arith.constant 1.000000e+00 : f32
    %232 = vector.broadcast %cst_51 : f32 to vector<8x128xf32>
    %233 = arith.addf %232, %231 : vector<8x128xf32>
    %234 = arith.divf %232, %233 : vector<8x128xf32>
    %235 = vector.extract_strided_slice %226 {offsets = [0, 0], sizes = [8, 128], strides = [1, 1]} : vector<8x256xf32> to vector<8x128xf32>
    %236 = vector.extract_strided_slice %226 {offsets = [0, 128], sizes = [8, 128], strides = [1, 1]} : vector<8x256xf32> to vector<8x128xf32>
    %237 = arith.mulf %236, %205 : vector<8x128xf32>
    %238 = arith.mulf %235, %228 : vector<8x128xf32>
    %239 = arith.addf %237, %238 : vector<8x128xf32>
    %240 = math.tanh %239 : vector<8x128xf32>
    %241 = arith.mulf %234, %240 : vector<8x128xf32>
    %242 = vector.broadcast %c4_i32_44 : i32 to vector<8x1xi32>
    %243 = arith.cmpi sge, %242, %5 : vector<8x1xi32>
    %244 = vector.broadcast %c4_i32_44 : i32 to vector<8x1xi32>
    %245 = arith.cmpi slt, %244, %6 : vector<8x1xi32>
    %246 = arith.andi %243, %245 : vector<8x1xi1>
    %247 = vector.shape_cast %246 : vector<8x1xi1> to vector<8x1xi1>
    %248 = vector.broadcast %247 : vector<8x1xi1> to vector<8x128xi1>
    %249 = arith.select %248, %241, %202 : vector<8x128xi1>, vector<8x128xf32>
    %250 = vector.shape_cast %246 : vector<8x1xi1> to vector<8x1xi1>
    %251 = vector.broadcast %250 : vector<8x1xi1> to vector<8x128xi1>
    %252 = arith.select %251, %239, %205 : vector<8x128xi1>, vector<8x128xf32>
    %cst_52 = arith.constant -1.000000e+30 : f32
    %253 = vector.shape_cast %246 : vector<8x1xi1> to vector<8x1xi1>
    %254 = vector.broadcast %253 : vector<8x1xi1> to vector<8x128xi1>
    %255 = vector.broadcast %cst_52 : f32 to vector<8x128xf32>
    %256 = arith.select %254, %241, %255 : vector<8x128xi1>, vector<8x128xf32>
    %257 = arith.maximumf %210, %256 : vector<8x128xf32>
    %c5_i32 = arith.constant 5 : i32
    %c8_i32_53 = arith.constant 8 : i32
    %258 = arith.muli %c5_i32, %c8_i32_53 : i32
    %259 = tpu.assume_multiple %258, 8 : i32
    %260 = arith.index_cast %259 : i32 to index
    %c0_54 = arith.constant 0 : index
    %261 = vector.load %arg8[%260, %c0_54] : memref<64x512xf32, #tpu.memory_space<vmem>>, vector<8x512xf32>
    %262 = tpu.concatenate %249, %249 in 1 : vector<8x128xf32>, vector<8x128xf32> -> vector<8x256xf32>
    %263 = arith.mulf %262, %19 : vector<8x256xf32>
    %264 = arith.truncf %263 : vector<8x256xf32> to vector<8x256xbf16>
    %c0_55 = arith.constant 0 : index
    %c0_56 = arith.constant 0 : index
    %265 = vector.load %arg3[%c0_55, %c0_56] : memref<256x512xbf16, #tpu.memory_space<vmem>>, vector<256x512xbf16>
    %cst_57 = arith.constant dense<0.000000e+00> : vector<8x512xf32>
    %266 = tpu.matmul %264, %265, %cst_57 {dimension_numbers = #tpu.dot_dimension_numbers<[1], [0], [0], [1], [0, 0, 1, 1], [], []>} : vector<8x256xbf16>, vector<256x512xbf16>, vector<8x512xf32> -> vector<8x512xf32>
    %267 = arith.addf %261, %266 : vector<8x512xf32>
    %268 = vector.extract_strided_slice %267 {offsets = [0, 0], sizes = [8, 256], strides = [1, 1]} : vector<8x512xf32> to vector<8x256xf32>
    %269 = arith.negf %268 : vector<8x256xf32>
    %270 = math.exp %269 : vector<8x256xf32>
    %cst_58 = arith.constant 1.000000e+00 : f32
    %271 = vector.broadcast %cst_58 : f32 to vector<8x256xf32>
    %272 = arith.addf %271, %270 : vector<8x256xf32>
    %273 = arith.divf %271, %272 : vector<8x256xf32>
    %274 = vector.extract_strided_slice %267 {offsets = [0, 256], sizes = [8, 128], strides = [1, 1]} : vector<8x512xf32> to vector<8x128xf32>
    %275 = math.tanh %274 : vector<8x128xf32>
    %276 = vector.extract_strided_slice %267 {offsets = [0, 384], sizes = [8, 128], strides = [1, 1]} : vector<8x512xf32> to vector<8x128xf32>
    %277 = arith.negf %276 : vector<8x128xf32>
    %278 = math.exp %277 : vector<8x128xf32>
    %cst_59 = arith.constant 1.000000e+00 : f32
    %279 = vector.broadcast %cst_59 : f32 to vector<8x128xf32>
    %280 = arith.addf %279, %278 : vector<8x128xf32>
    %281 = arith.divf %279, %280 : vector<8x128xf32>
    %282 = vector.extract_strided_slice %273 {offsets = [0, 0], sizes = [8, 128], strides = [1, 1]} : vector<8x256xf32> to vector<8x128xf32>
    %283 = vector.extract_strided_slice %273 {offsets = [0, 128], sizes = [8, 128], strides = [1, 1]} : vector<8x256xf32> to vector<8x128xf32>
    %284 = arith.mulf %283, %252 : vector<8x128xf32>
    %285 = arith.mulf %282, %275 : vector<8x128xf32>
    %286 = arith.addf %284, %285 : vector<8x128xf32>
    %287 = math.tanh %286 : vector<8x128xf32>
    %288 = arith.mulf %281, %287 : vector<8x128xf32>
    %289 = vector.broadcast %c5_i32 : i32 to vector<8x1xi32>
    %290 = arith.cmpi sge, %289, %5 : vector<8x1xi32>
    %291 = vector.broadcast %c5_i32 : i32 to vector<8x1xi32>
    %292 = arith.cmpi slt, %291, %6 : vector<8x1xi32>
    %293 = arith.andi %290, %292 : vector<8x1xi1>
    %294 = vector.shape_cast %293 : vector<8x1xi1> to vector<8x1xi1>
    %295 = vector.broadcast %294 : vector<8x1xi1> to vector<8x128xi1>
    %296 = arith.select %295, %288, %249 : vector<8x128xi1>, vector<8x128xf32>
    %297 = vector.shape_cast %293 : vector<8x1xi1> to vector<8x1xi1>
    %298 = vector.broadcast %297 : vector<8x1xi1> to vector<8x128xi1>
    %299 = arith.select %298, %286, %252 : vector<8x128xi1>, vector<8x128xf32>
    %cst_60 = arith.constant -1.000000e+30 : f32
    %300 = vector.shape_cast %293 : vector<8x1xi1> to vector<8x1xi1>
    %301 = vector.broadcast %300 : vector<8x1xi1> to vector<8x128xi1>
    %302 = vector.broadcast %cst_60 : f32 to vector<8x128xf32>
    %303 = arith.select %301, %288, %302 : vector<8x128xi1>, vector<8x128xf32>
    %304 = arith.maximumf %257, %303 : vector<8x128xf32>
    %c6_i32 = arith.constant 6 : i32
    %c8_i32_61 = arith.constant 8 : i32
    %305 = arith.muli %c6_i32, %c8_i32_61 : i32
    %306 = tpu.assume_multiple %305, 8 : i32
    %307 = arith.index_cast %306 : i32 to index
    %c0_62 = arith.constant 0 : index
    %308 = vector.load %arg8[%307, %c0_62] : memref<64x512xf32, #tpu.memory_space<vmem>>, vector<8x512xf32>
    %309 = tpu.concatenate %296, %296 in 1 : vector<8x128xf32>, vector<8x128xf32> -> vector<8x256xf32>
    %310 = arith.mulf %309, %19 : vector<8x256xf32>
    %311 = arith.truncf %310 : vector<8x256xf32> to vector<8x256xbf16>
    %c0_63 = arith.constant 0 : index
    %c0_64 = arith.constant 0 : index
    %312 = vector.load %arg3[%c0_63, %c0_64] : memref<256x512xbf16, #tpu.memory_space<vmem>>, vector<256x512xbf16>
    %cst_65 = arith.constant dense<0.000000e+00> : vector<8x512xf32>
    %313 = tpu.matmul %311, %312, %cst_65 {dimension_numbers = #tpu.dot_dimension_numbers<[1], [0], [0], [1], [0, 0, 1, 1], [], []>} : vector<8x256xbf16>, vector<256x512xbf16>, vector<8x512xf32> -> vector<8x512xf32>
    %314 = arith.addf %308, %313 : vector<8x512xf32>
    %315 = vector.extract_strided_slice %314 {offsets = [0, 0], sizes = [8, 256], strides = [1, 1]} : vector<8x512xf32> to vector<8x256xf32>
    %316 = arith.negf %315 : vector<8x256xf32>
    %317 = math.exp %316 : vector<8x256xf32>
    %cst_66 = arith.constant 1.000000e+00 : f32
    %318 = vector.broadcast %cst_66 : f32 to vector<8x256xf32>
    %319 = arith.addf %318, %317 : vector<8x256xf32>
    %320 = arith.divf %318, %319 : vector<8x256xf32>
    %321 = vector.extract_strided_slice %314 {offsets = [0, 256], sizes = [8, 128], strides = [1, 1]} : vector<8x512xf32> to vector<8x128xf32>
    %322 = math.tanh %321 : vector<8x128xf32>
    %323 = vector.extract_strided_slice %314 {offsets = [0, 384], sizes = [8, 128], strides = [1, 1]} : vector<8x512xf32> to vector<8x128xf32>
    %324 = arith.negf %323 : vector<8x128xf32>
    %325 = math.exp %324 : vector<8x128xf32>
    %cst_67 = arith.constant 1.000000e+00 : f32
    %326 = vector.broadcast %cst_67 : f32 to vector<8x128xf32>
    %327 = arith.addf %326, %325 : vector<8x128xf32>
    %328 = arith.divf %326, %327 : vector<8x128xf32>
    %329 = vector.extract_strided_slice %320 {offsets = [0, 0], sizes = [8, 128], strides = [1, 1]} : vector<8x256xf32> to vector<8x128xf32>
    %330 = vector.extract_strided_slice %320 {offsets = [0, 128], sizes = [8, 128], strides = [1, 1]} : vector<8x256xf32> to vector<8x128xf32>
    %331 = arith.mulf %330, %299 : vector<8x128xf32>
    %332 = arith.mulf %329, %322 : vector<8x128xf32>
    %333 = arith.addf %331, %332 : vector<8x128xf32>
    %334 = math.tanh %333 : vector<8x128xf32>
    %335 = arith.mulf %328, %334 : vector<8x128xf32>
    %336 = vector.broadcast %c6_i32 : i32 to vector<8x1xi32>
    %337 = arith.cmpi sge, %336, %5 : vector<8x1xi32>
    %338 = vector.broadcast %c6_i32 : i32 to vector<8x1xi32>
    %339 = arith.cmpi slt, %338, %6 : vector<8x1xi32>
    %340 = arith.andi %337, %339 : vector<8x1xi1>
    %341 = vector.shape_cast %340 : vector<8x1xi1> to vector<8x1xi1>
    %342 = vector.broadcast %341 : vector<8x1xi1> to vector<8x128xi1>
    %343 = arith.select %342, %335, %296 : vector<8x128xi1>, vector<8x128xf32>
    %344 = vector.shape_cast %340 : vector<8x1xi1> to vector<8x1xi1>
    %345 = vector.broadcast %344 : vector<8x1xi1> to vector<8x128xi1>
    %346 = arith.select %345, %333, %299 : vector<8x128xi1>, vector<8x128xf32>
    %cst_68 = arith.constant -1.000000e+30 : f32
    %347 = vector.shape_cast %340 : vector<8x1xi1> to vector<8x1xi1>
    %348 = vector.broadcast %347 : vector<8x1xi1> to vector<8x128xi1>
    %349 = vector.broadcast %cst_68 : f32 to vector<8x128xf32>
    %350 = arith.select %348, %335, %349 : vector<8x128xi1>, vector<8x128xf32>
    %351 = arith.maximumf %304, %350 : vector<8x128xf32>
    %c7_i32 = arith.constant 7 : i32
    %c8_i32_69 = arith.constant 8 : i32
    %352 = arith.muli %c7_i32, %c8_i32_69 : i32
    %353 = tpu.assume_multiple %352, 8 : i32
    %354 = arith.index_cast %353 : i32 to index
    %c0_70 = arith.constant 0 : index
    %355 = vector.load %arg8[%354, %c0_70] : memref<64x512xf32, #tpu.memory_space<vmem>>, vector<8x512xf32>
    %356 = tpu.concatenate %343, %343 in 1 : vector<8x128xf32>, vector<8x128xf32> -> vector<8x256xf32>
    %357 = arith.mulf %356, %19 : vector<8x256xf32>
    %358 = arith.truncf %357 : vector<8x256xf32> to vector<8x256xbf16>
    %c0_71 = arith.constant 0 : index
    %c0_72 = arith.constant 0 : index
    %359 = vector.load %arg3[%c0_71, %c0_72] : memref<256x512xbf16, #tpu.memory_space<vmem>>, vector<256x512xbf16>
    %cst_73 = arith.constant dense<0.000000e+00> : vector<8x512xf32>
    %360 = tpu.matmul %358, %359, %cst_73 {dimension_numbers = #tpu.dot_dimension_numbers<[1], [0], [0], [1], [0, 0, 1, 1], [], []>} : vector<8x256xbf16>, vector<256x512xbf16>, vector<8x512xf32> -> vector<8x512xf32>
    %361 = arith.addf %355, %360 : vector<8x512xf32>
    %362 = vector.extract_strided_slice %361 {offsets = [0, 0], sizes = [8, 256], strides = [1, 1]} : vector<8x512xf32> to vector<8x256xf32>
    %363 = arith.negf %362 : vector<8x256xf32>
    %364 = math.exp %363 : vector<8x256xf32>
    %cst_74 = arith.constant 1.000000e+00 : f32
    %365 = vector.broadcast %cst_74 : f32 to vector<8x256xf32>
    %366 = arith.addf %365, %364 : vector<8x256xf32>
    %367 = arith.divf %365, %366 : vector<8x256xf32>
    %368 = vector.extract_strided_slice %361 {offsets = [0, 256], sizes = [8, 128], strides = [1, 1]} : vector<8x512xf32> to vector<8x128xf32>
    %369 = math.tanh %368 : vector<8x128xf32>
    %370 = vector.extract_strided_slice %361 {offsets = [0, 384], sizes = [8, 128], strides = [1, 1]} : vector<8x512xf32> to vector<8x128xf32>
    %371 = arith.negf %370 : vector<8x128xf32>
    %372 = math.exp %371 : vector<8x128xf32>
    %cst_75 = arith.constant 1.000000e+00 : f32
    %373 = vector.broadcast %cst_75 : f32 to vector<8x128xf32>
    %374 = arith.addf %373, %372 : vector<8x128xf32>
    %375 = arith.divf %373, %374 : vector<8x128xf32>
    %376 = vector.extract_strided_slice %367 {offsets = [0, 0], sizes = [8, 128], strides = [1, 1]} : vector<8x256xf32> to vector<8x128xf32>
    %377 = vector.extract_strided_slice %367 {offsets = [0, 128], sizes = [8, 128], strides = [1, 1]} : vector<8x256xf32> to vector<8x128xf32>
    %378 = arith.mulf %377, %346 : vector<8x128xf32>
    %379 = arith.mulf %376, %369 : vector<8x128xf32>
    %380 = arith.addf %378, %379 : vector<8x128xf32>
    %381 = math.tanh %380 : vector<8x128xf32>
    %382 = arith.mulf %375, %381 : vector<8x128xf32>
    %383 = vector.broadcast %c7_i32 : i32 to vector<8x1xi32>
    %384 = arith.cmpi sge, %383, %5 : vector<8x1xi32>
    %385 = vector.broadcast %c7_i32 : i32 to vector<8x1xi32>
    %386 = arith.cmpi slt, %385, %6 : vector<8x1xi32>
    %387 = arith.andi %384, %386 : vector<8x1xi1>
    %388 = vector.shape_cast %387 : vector<8x1xi1> to vector<8x1xi1>
    %389 = vector.broadcast %388 : vector<8x1xi1> to vector<8x128xi1>
    %390 = arith.select %389, %382, %343 : vector<8x128xi1>, vector<8x128xf32>
    %391 = vector.shape_cast %387 : vector<8x1xi1> to vector<8x1xi1>
    %392 = vector.broadcast %391 : vector<8x1xi1> to vector<8x128xi1>
    %393 = arith.select %392, %380, %346 : vector<8x128xi1>, vector<8x128xf32>
    %cst_76 = arith.constant -1.000000e+30 : f32
    %394 = vector.shape_cast %387 : vector<8x1xi1> to vector<8x1xi1>
    %395 = vector.broadcast %394 : vector<8x1xi1> to vector<8x128xi1>
    %396 = vector.broadcast %cst_76 : f32 to vector<8x128xf32>
    %397 = arith.select %395, %382, %396 : vector<8x128xi1>, vector<8x128xf32>
    %398 = arith.maximumf %351, %397 : vector<8x128xf32>
    %c8_i32_77 = arith.constant 8 : i32
    %399 = vector.extract_strided_slice %398 {offsets = [0, 0], sizes = [2, 128], strides = [1, 1]} : vector<8x128xf32> to vector<2x128xf32>
    %400 = vector.extract_strided_slice %398 {offsets = [2, 0], sizes = [2, 128], strides = [1, 1]} : vector<8x128xf32> to vector<2x128xf32>
    %401 = vector.extract_strided_slice %398 {offsets = [4, 0], sizes = [2, 128], strides = [1, 1]} : vector<8x128xf32> to vector<2x128xf32>
    %402 = vector.extract_strided_slice %398 {offsets = [6, 0], sizes = [2, 128], strides = [1, 1]} : vector<8x128xf32> to vector<2x128xf32>
    %403 = arith.subf %399, %400 : vector<2x128xf32>
    %404 = math.absf %403 : vector<2x128xf32>
    %405 = arith.subf %401, %402 : vector<2x128xf32>
    %406 = math.absf %405 : vector<2x128xf32>
    %407 = arith.mulf %399, %400 : vector<2x128xf32>
    %408 = arith.mulf %401, %402 : vector<2x128xf32>
    %409 = tpu.concatenate %399, %401, %400, %402, %404, %406, %407, %408 in 1 : vector<2x128xf32>, vector<2x128xf32>, vector<2x128xf32>, vector<2x128xf32>, vector<2x128xf32>, vector<2x128xf32>, vector<2x128xf32>, vector<2x128xf32> -> vector<2x1024xf32>
    %410 = arith.truncf %409 : vector<2x1024xf32> to vector<2x1024xbf16>
    %c0_78 = arith.constant 0 : index
    %c0_79 = arith.constant 0 : index
    %411 = vector.load %arg4[%c0_78, %c0_79] : memref<1x256xf32, #tpu.memory_space<vmem>>, vector<1x128xf32>
    %c0_80 = arith.constant 0 : index
    %c128 = arith.constant 128 : index
    %412 = vector.load %arg4[%c0_80, %c128] : memref<1x256xf32, #tpu.memory_space<vmem>>, vector<1x128xf32>
    %c0_81 = arith.constant 0 : index
    %c0_82 = arith.constant 0 : index
    %413 = vector.load %arg5[%c0_81, %c0_82] : memref<1024x128xbf16, #tpu.memory_space<vmem>>, vector<1024x128xbf16>
    %cst_83 = arith.constant dense<0.000000e+00> : vector<2x128xf32>
    %414 = tpu.matmul %410, %413, %cst_83 {dimension_numbers = #tpu.dot_dimension_numbers<[1], [0], [0], [1], [0, 0, 1, 1], [], []>} : vector<2x1024xbf16>, vector<1024x128xbf16>, vector<2x128xf32> -> vector<2x128xf32>
    %415 = vector.broadcast %411 : vector<1x128xf32> to vector<2x128xf32>
    %416 = arith.addf %414, %415 : vector<2x128xf32>
    %417 = math.tanh %416 : vector<2x128xf32>
    %418 = arith.truncf %417 : vector<2x128xf32> to vector<2x128xbf16>
    %c0_84 = arith.constant 0 : index
    %c0_85 = arith.constant 0 : index
    %419 = vector.load %arg6[%c0_84, %c0_85] : memref<128x128xbf16, #tpu.memory_space<vmem>>, vector<128x128xbf16>
    %cst_86 = arith.constant dense<0.000000e+00> : vector<2x128xf32>
    %420 = tpu.matmul %418, %419, %cst_86 {dimension_numbers = #tpu.dot_dimension_numbers<[1], [0], [0], [1], [0, 0, 1, 1], [], []>} : vector<2x128xbf16>, vector<128x128xbf16>, vector<2x128xf32> -> vector<2x128xf32>
    %421 = vector.broadcast %412 : vector<1x128xf32> to vector<2x128xf32>
    %422 = arith.addf %420, %421 : vector<2x128xf32>
    %c0_87 = arith.constant 0 : index
    %c0_88 = arith.constant 0 : index
    %423 = vector.load %arg7[%c0_87, %c0_88] : memref<2x128xf32, #tpu.memory_space<vmem>>, vector<2x128xf32>
    tpu.vector_store %arg7[%c0_87, %c0_88], %422 {strides = array<i32>} : memref<2x128xf32, #tpu.memory_space<vmem>>, vector<2x128xf32>,
    return
  }
}

</mosaic_0001>

<llo_original>
// kernel: siamese_forward.1
$region0: #{siamese_forward.1}
  #allocation0 [shape = 'u32[]', space=smem, size = 0x4, offset = 0x4, fixed_abs, tag = 'smem constant byte address 0x4 - core index']
  #allocation1 [shape = 'u32[72,128]{1,0:T(1,128)}', space=vmem, size = 0x9000, scoped, tag = 'internal scratch']
  #allocation2 [shape = 'f32[64,512]{1,0:T(8,128)}', space=vmem, size = 0x20000, scoped, tag = 'scratch operand']
  %s0 = inlined_call_operand.vmem [shape: bf16[64,130], index: 0, kind: input, shape index: {}]
  %s1 = inlined_call_operand.vmem [shape: s32[8,2], index: 1, kind: input, shape index: {}]
  %s2 = inlined_call_operand.vmem [shape: bf16[130,512], index: 2, kind: input, shape index: {}]
  %s3 = inlined_call_operand.vmem [shape: bf16[256,512], index: 3, kind: input, shape index: {}]
  %s4 = inlined_call_operand.vmem [shape: f32[1,256], index: 4, kind: input, shape index: {}]
  %s5 = inlined_call_operand.vmem [shape: bf16[1024,128], index: 5, kind: input, shape index: {}]
  %s6 = inlined_call_operand.vmem [shape: bf16[128,128], index: 6, kind: input, shape index: {}]
  %s7 = inlined_call_operand.hbm [shape: f32[2,128], index: 7, kind: output, shape index: {}]
  %s8 = sld [smem:[#allocation0]]
  $region38: #{siamese_forward.1} parent=0
    _
  %s10 = ssub.s32 1, %s8
  %s11 = scalar_select 0, %s10, %s8
  $region1: #{siamese_forward.1} parent=0
    #allocation3 [shape = 'u8[1024]{0}', space=vmem, size = 0x400, scoped, tag = 'output window, operand 0, single buffered']
    #allocation4 [shape = 's32[1]{0}', space=sflag, size = 0x4, scoped, tag = 'scoped memory for siamese_forward.1']
    %12 = vsyncpa [#allocation4], 0
    // Predicated region
    $region2: #{siamese_forward.1} parent=1 // pred_check
      _
    $region3: #{siamese_forward.1} parent=1 // pred_check_branch
      %14 = sbr.rel (0) target = $region5
    $region4: #{siamese_forward.1} parent=1 // pred_region
      _
    $region5: #{siamese_forward.1} parent=1 // pred_fallthru
      _
    // Predicated region
    $region6: #{siamese_forward.1} parent=1 // pred_check
      _
    $region7: #{siamese_forward.1} parent=1 // pred_check_branch
      %16 = sbr.rel (0) target = $region9
    $region8: #{siamese_forward.1} parent=1 // pred_region
      _
    $region9: #{siamese_forward.1} parent=1 // pred_fallthru
      _
    // Predicated region
    $region10: #{siamese_forward.1} parent=1 // pred_check
      _
    $region11: #{siamese_forward.1} parent=1 // pred_check_branch
      %18 = sbr.rel (0) target = $region13
    $region12: #{siamese_forward.1} parent=1 // pred_region
      _
    $region13: #{siamese_forward.1} parent=1 // pred_fallthru
      _
    // Predicated region
    $region14: #{siamese_forward.1} parent=1 // pred_check
      _
    $region15: #{siamese_forward.1} parent=1 // pred_check_branch
      %20 = sbr.rel (0) target = $region17
    $region16: #{siamese_forward.1} parent=1 // pred_region
      _
    $region17: #{siamese_forward.1} parent=1 // pred_fallthru
      _
    // Predicated region
    $region18: #{siamese_forward.1} parent=1 // pred_check
      _
    $region19: #{siamese_forward.1} parent=1 // pred_check_branch
      %22 = sbr.rel (0) target = $region21
    $region20: #{siamese_forward.1} parent=1 // pred_region
      _
    $region21: #{siamese_forward.1} parent=1 // pred_fallthru
      _
    // Predicated region
    $region22: #{siamese_forward.1} parent=1 // pred_check
      _
    $region23: #{siamese_forward.1} parent=1 // pred_check_branch
      %24 = sbr.rel (0) target = $region25
    $region24: #{siamese_forward.1} parent=1 // pred_region
      _
    $region25: #{siamese_forward.1} parent=1 // pred_fallthru
      _
    // Predicated region
    $region26: #{siamese_forward.1} parent=1 // pred_check
      _
    $region27: #{siamese_forward.1} parent=1 // pred_check_branch
      %26 = sbr.rel (0) target = $region29
    $region28: #{siamese_forward.1} parent=1 // pred_region
      _
    $region29: #{siamese_forward.1} parent=1 // pred_fallthru
      _
    %v28 = vld [vmem:[%s0] sm:$0xff]
    %v29 = vld [vmem:[%s0 + $0x8] sm:$0xff]
    %v30 = vld [vmem:[%s0 + $0x10] sm:$0xff]
    %v31 = vld [vmem:[%s0 + $0x18] sm:$0xff]
    %v32 = vld [vmem:[%s0 + $0x20] sm:$0xff]
    %v33 = vld [vmem:[%s0 + $0x28] sm:$0xff]
    %v34 = vld [vmem:[%s0 + $0x30] sm:$0xff]
    %v35 = vld [vmem:[%s0 + $0x38] sm:$0xff]
    %v36 = vld [vmem:[%s2] sm:$0xff]
    %v37 = vld [vmem:[%s2 + $0x8] sm:$0xff]
    %v38 = vld [vmem:[%s2 + $0x10] sm:$0xff]
    %v39 = vld [vmem:[%s2 + $0x18] sm:$0xff]
    %v40 = vld [vmem:[%s2 + $0x20] sm:$0xff]
    %v41 = vld [vmem:[%s2 + $0x28] sm:$0xff]
    %v42 = vld [vmem:[%s2 + $0x30] sm:$0xff]
    %v43 = vld [vmem:[%s2 + $0x38] sm:$0xff]
    %v44 = vld [vmem:[%s2 + $0x40] sm:$0xff]
    %v45 = vld [vmem:[%s2 + $0x48] sm:$0xff]
    %v46 = vld [vmem:[%s2 + $0x50] sm:$0xff]
    %v47 = vld [vmem:[%s2 + $0x58] sm:$0xff]
    %v48 = vld [vmem:[%s2 + $0x60] sm:$0xff]
    %v49 = vld [vmem:[%s2 + $0x68] sm:$0xff]
    %v50 = vld [vmem:[%s2 + $0x70] sm:$0xff]
    %v51 = vld [vmem:[%s2 + $0x78] sm:$0xff]
    %v52 = vld [vmem:[%s2 + $0x80] sm:$0xff]
    %v53 = vld [vmem:[%s2 + $0x88] sm:$0xff]
    %v54 = vld [vmem:[%s2 + $0x90] sm:$0xff]
    %v55 = vld [vmem:[%s2 + $0x98] sm:$0xff]
    %v56 = vld [vmem:[%s2 + $0xa0] sm:$0xff]
    %v57 = vld [vmem:[%s2 + $0xa8] sm:$0xff]
    %v58 = vld [vmem:[%s2 + $0xb0] sm:$0xff]
    %v59 = vld [vmem:[%s2 + $0xb8] sm:$0xff]
    %v60 = vld [vmem:[%s2 + $0xc0] sm:$0xff]
    %v61 = vld [vmem:[%s2 + $0xc8] sm:$0xff]
    %v62 = vld [vmem:[%s2 + $0xd0] sm:$0xff]
    %v63 = vld [vmem:[%s2 + $0xd8] sm:$0xff]
    %v64 = vld [vmem:[%s2 + $0xe0] sm:$0xff]
    %v65 = vld [vmem:[%s2 + $0xe8] sm:$0xff]
    %v66 = vld [vmem:[%s2 + $0xf0] sm:$0xff]
    %v67 = vld [vmem:[%s2 + $0xf8] sm:$0xff]
    %v68 = vld [vmem:[%s2 + $0x100] sm:$0x11]
    %v69 = vld [vmem:[%s2 + $0x108] sm:$0x11]
    %v78 = vunpack.c.l.b16 %v28
    %v79 = vunpack.c.h.b16 %v28
    %v80 = vunpack.c.l.b16 %v29
    %v81 = vunpack.c.h.b16 %v29
    %v82 = vunpack.c.l.b16 %v30
    %v83 = vunpack.c.h.b16 %v30
    %v84 = vunpack.c.l.b16 %v31
    %v85 = vunpack.c.h.b16 %v31
    %v86 = vunpack.c.l.b16 %v32
    %v87 = vunpack.c.h.b16 %v32
    %v88 = vunpack.c.l.b16 %v33
    %v89 = vunpack.c.h.b16 %v33
    %v90 = vunpack.c.l.b16 %v34
    %v91 = vunpack.c.h.b16 %v34
    %v92 = vunpack.c.l.b16 %v35
    %v93 = vunpack.c.h.b16 %v35
    %v94 = vpack.c.b16 %v80, %v78
    %v95 = vpack.c.b16 %v81, %v79
    %v96 = vpack.c.b16 %v84, %v82
    %v97 = vpack.c.b16 %v85, %v83
    %v98 = vpack.c.b16 %v88, %v86
    %v99 = vpack.c.b16 %v89, %v87
    %v100 = vpack.c.b16 %v92, %v90
    %v101 = vpack.c.b16 %v93, %v91
    %v140 = vunpack.c.l.b16 %v36
    %v141 = vunpack.c.h.b16 %v36
    %v142 = vunpack.c.l.b16 %v37
    %v143 = vunpack.c.h.b16 %v37
    %v144 = vunpack.c.l.b16 %v38
    %v145 = vunpack.c.h.b16 %v38
    %v146 = vunpack.c.l.b16 %v39
    %v147 = vunpack.c.h.b16 %v39
    %v148 = vunpack.c.l.b16 %v40
    %v149 = vunpack.c.h.b16 %v40
    %v150 = vunpack.c.l.b16 %v41
    %v151 = vunpack.c.h.b16 %v41
    %v152 = vunpack.c.l.b16 %v42
    %v153 = vunpack.c.h.b16 %v42
    %v154 = vunpack.c.l.b16 %v43
    %v155 = vunpack.c.h.b16 %v43
    %v156 = vunpack.c.l.b16 %v44
    %v157 = vunpack.c.h.b16 %v44
    %v158 = vunpack.c.l.b16 %v45
    %v159 = vunpack.c.h.b16 %v45
    %v160 = vunpack.c.l.b16 %v46
    %v161 = vunpack.c.h.b16 %v46
    %v162 = vunpack.c.l.b16 %v47
    %v163 = vunpack.c.h.b16 %v47
    %v164 = vunpack.c.l.b16 %v48
    %v165 = vunpack.c.h.b16 %v48
    %v166 = vunpack.c.l.b16 %v49
    %v167 = vunpack.c.h.b16 %v49
    %v168 = vunpack.c.l.b16 %v50
    %v169 = vunpack.c.h.b16 %v50
    %v170 = vunpack.c.l.b16 %v51
    %v171 = vunpack.c.h.b16 %v51
    %v172 = vunpack.c.l.b16 %v52
    %v173 = vunpack.c.h.b16 %v52
    %v174 = vunpack.c.l.b16 %v53
    %v175 = vunpack.c.h.b16 %v53
    %v176 = vunpack.c.l.b16 %v54
    %v177 = vunpack.c.h.b16 %v54
    %v178 = vunpack.c.l.b16 %v55
    %v179 = vunpack.c.h.b16 %v55
    %v180 = vunpack.c.l.b16 %v56
    %v181 = vunpack.c.h.b16 %v56
    %v182 = vunpack.c.l.b16 %v57
    %v183 = vunpack.c.h.b16 %v57
    %v184 = vunpack.c.l.b16 %v58
    %v185 = vunpack.c.h.b16 %v58
    %v186 = vunpack.c.l.b16 %v59
    %v187 = vunpack.c.h.b16 %v59
    %v188 = vunpack.c.l.b16 %v60
    %v189 = vunpack.c.h.b16 %v60
    %v190 = vunpack.c.l.b16 %v61
    %v191 = vunpack.c.h.b16 %v61
    %v192 = vunpack.c.l.b16 %v62
    %v193 = vunpack.c.h.b16 %v62
    %v194 = vunpack.c.l.b16 %v63
    %v195 = vunpack.c.h.b16 %v63
    %v196 = vunpack.c.l.b16 %v64
    %v197 = vunpack.c.h.b16 %v64
    %v198 = vunpack.c.l.b16 %v65
    %v199 = vunpack.c.h.b16 %v65
    %v200 = vunpack.c.l.b16 %v66
    %v201 = vunpack.c.h.b16 %v66
    %v202 = vunpack.c.l.b16 %v67
    %v203 = vunpack.c.h.b16 %v67
    %v204 = vunpack.c.l.b16 %v68
    %v205 = vunpack.c.h.b16 %v68
    %v206 = vunpack.c.l.b16 %v69
    %v207 = vunpack.c.h.b16 %v69
    %v208 = vpack.c.b16 %v144, %v140
    %v209 = vpack.c.b16 %v145, %v141
    %v210 = vpack.c.b16 %v146, %v142
    %v211 = vpack.c.b16 %v147, %v143
    %v212 = vpack.c.b16 %v152, %v148
    %v213 = vpack.c.b16 %v153, %v149
    %v214 = vpack.c.b16 %v154, %v150
    %v215 = vpack.c.b16 %v155, %v151
    %v216 = vpack.c.b16 %v160, %v156
    %v217 = vpack.c.b16 %v161, %v157
    %v218 = vpack.c.b16 %v162, %v158
    %v219 = vpack.c.b16 %v163, %v159
    %v220 = vpack.c.b16 %v168, %v164
    %v221 = vpack.c.b16 %v169, %v165
    %v222 = vpack.c.b16 %v170, %v166
    %v223 = vpack.c.b16 %v171, %v167
    %v224 = vpack.c.b16 %v176, %v172
    %v225 = vpack.c.b16 %v177, %v173
    %v226 = vpack.c.b16 %v178, %v174
    %v227 = vpack.c.b16 %v179, %v175
    %v228 = vpack.c.b16 %v184, %v180
    %v229 = vpack.c.b16 %v185, %v181
    %v230 = vpack.c.b16 %v186, %v182
    %v231 = vpack.c.b16 %v187, %v183
    %v232 = vpack.c.b16 %v192, %v188
    %v233 = vpack.c.b16 %v193, %v189
    %v234 = vpack.c.b16 %v194, %v190
    %v235 = vpack.c.b16 %v195, %v191
    %v236 = vpack.c.b16 %v200, %v196
    %v237 = vpack.c.b16 %v201, %v197
    %v238 = vpack.c.b16 %v202, %v198
    %v239 = vpack.c.b16 %v203, %v199
    %v240 = vpack.c.b16 %v204, %v204
    %v241 = vpack.c.b16 %v205, %v205
    %v242 = vpack.c.b16 %v206, %v206
    %v243 = vpack.c.b16 %v207, %v207
    %vm276 = vcmask 15360
    %v278 = vsel %vm276, %v95, 0
    %v281 = vsel %vm276, %v97, 0
    %v284 = vsel %vm276, %v99, 0
    %v287 = vsel %vm276, %v101, 0
    %vm289 = vcmask 1040384
    %v291 = vsel %vm289, %v240, 0
    %v294 = vsel %vm289, %v241, 0
    %v297 = vsel %vm289, %v242, 0
    %v300 = vsel %vm289, %v243, 0
    %302 = vmatpush.bf16.msra.mxu0 %v236
    %303 = vmatpush.bf16.msra.mxu0 %v232
    %304 = vmatpush.bf16.msra.mxu0 %v228
    %305 = vmatpush.bf16.msra.mxu0 %v224
    %306 = vmatpush.bf16.msra.mxu0 %v220
    %307 = vmatpush.bf16.msra.mxu0 %v216
    %308 = vmatpush.bf16.msra.mxu0 %v212
    %309 = vmatpush.bf16.msra.mxu0 %v208
    %310 = vmatmul.bf16.gmra.mxu0 %v94
    %v311 = vpop.f32.mrf.mxu0
    %v312 = vadd.f32 0.0, %v311
    %v313 = vpop.f32.mrf.mxu0
    %v314 = vadd.f32 0.0, %v313
    %315 = vmatmul.bf16.gmra.mxu0 %v96
    %v316 = vpop.f32.mrf.mxu0
    %v317 = vadd.f32 0.0, %v316
    %v318 = vpop.f32.mrf.mxu0
    %v319 = vadd.f32 0.0, %v318
    %320 = vmatmul.bf16.gmra.mxu0 %v98
    %v321 = vpop.f32.mrf.mxu0
    %v322 = vadd.f32 0.0, %v321
    %v323 = vpop.f32.mrf.mxu0
    %v324 = vadd.f32 0.0, %v323
    %325 = vmatmul.bf16.gmra.mxu0 %v100
    %v326 = vpop.f32.mrf.mxu0
    %v327 = vadd.f32 0.0, %v326
    %v328 = vpop.f32.mrf.mxu0
    %v329 = vadd.f32 0.0, %v328
    %330 = vdwg.mxu0
    %331 = vmatpush.bf16.msra.mxu0 0
    %332 = vmatpush.bf16.msra.mxu0 0
    %333 = vmatpush.bf16.msra.mxu0 0
    %334 = vmatpush.bf16.msra.mxu0 0
    %335 = vmatpush.bf16.msra.mxu0 0
    %336 = vmatpush.bf16.msra.mxu0 0
    %337 = vmatpush.bf16.msra.mxu0 0
    %338 = vmatpush.bf16.msra.mxu0 %v291
    %339 = vmatmul.bf16.gmra.mxu0 %v278
    %v340 = vpop.f32.mrf.mxu0
    %v341 = vadd.f32 %v312, %v340
    %v342 = vpop.f32.mrf.mxu0
    %v343 = vadd.f32 %v314, %v342
    %344 = vmatmul.bf16.gmra.mxu0 %v281
    %v345 = vpop.f32.mrf.mxu0
    %v346 = vadd.f32 %v317, %v345
    %v347 = vpop.f32.mrf.mxu0
    %v348 = vadd.f32 %v319, %v347
    %349 = vmatmul.bf16.gmra.mxu0 %v284
    %v350 = vpop.f32.mrf.mxu0
    %v351 = vadd.f32 %v322, %v350
    %v352 = vpop.f32.mrf.mxu0
    %v353 = vadd.f32 %v324, %v352
    %354 = vmatmul.bf16.gmra.mxu0 %v287
    %v355 = vpop.f32.mrf.mxu0
    %v356 = vadd.f32 %v327, %v355
    %v357 = vpop.f32.mrf.mxu0
    %v358 = vadd.f32 %v329, %v357
    %359 = vdwg.mxu0
    %360 = vmatpush.bf16.msra.mxu0 %v237
    %361 = vmatpush.bf16.msra.mxu0 %v233
    %362 = vmatpush.bf16.msra.mxu0 %v229
    %363 = vmatpush.bf16.msra.mxu0 %v225
    %364 = vmatpush.bf16.msra.mxu0 %v221
    %365 = vmatpush.bf16.msra.mxu0 %v217
    %366 = vmatpush.bf16.msra.mxu0 %v213
    %367 = vmatpush.bf16.msra.mxu0 %v209
    %368 = vmatmul.bf16.gmra.mxu0 %v94
    %v369 = vpop.f32.mrf.mxu0
    %v370 = vadd.f32 0.0, %v369
    %v371 = vpop.f32.mrf.mxu0
    %v372 = vadd.f32 0.0, %v371
    %373 = vmatmul.bf16.gmra.mxu0 %v96
    %v374 = vpop.f32.mrf.mxu0
    %v375 = vadd.f32 0.0, %v374
    %v376 = vpop.f32.mrf.mxu0
    %v377 = vadd.f32 0.0, %v376
    %378 = vmatmul.bf16.gmra.mxu0 %v98
    %v379 = vpop.f32.mrf.mxu0
    %v380 = vadd.f32 0.0, %v379
    %v381 = vpop.f32.mrf.mxu0
    %v382 = vadd.f32 0.0, %v381
    %383 = vmatmul.bf16.gmra.mxu0 %v100
    %v384 = vpop.f32.mrf.mxu0
    %v385 = vadd.f32 0.0, %v384
    %v386 = vpop.f32.mrf.mxu0
    %v387 = vadd.f32 0.0, %v386
    %388 = vdwg.mxu0
    %389 = vmatpush.bf16.msra.mxu0 0
    %390 = vmatpush.bf16.msra.mxu0 0
    %391 = vmatpush.bf16.msra.mxu0 0
    %392 = vmatpush.bf16.msra.mxu0 0
    %393 = vmatpush.bf16.msra.mxu0 0
    %394 = vmatpush.bf16.msra.mxu0 0
    %395 = vmatpush.bf16.msra.mxu0 0
    %396 = vmatpush.bf16.msra.mxu0 %v294
    %397 = vmatmul.bf16.gmra.mxu0 %v278
    %v398 = vpop.f32.mrf.mxu0
    %v399 = vadd.f32 %v370, %v398
    %v400 = vpop.f32.mrf.mxu0
    %v401 = vadd.f32 %v372, %v400
    %402 = vmatmul.bf16.gmra.mxu0 %v281
    %v403 = vpop.f32.mrf.mxu0
    %v404 = vadd.f32 %v375, %v403
    %v405 = vpop.f32.mrf.mxu0
    %v406 = vadd.f32 %v377, %v405
    %407 = vmatmul.bf16.gmra.mxu0 %v284
    %v408 = vpop.f32.mrf.mxu0
    %v409 = vadd.f32 %v380, %v408
    %v410 = vpop.f32.mrf.mxu0
    %v411 = vadd.f32 %v382, %v410
    %412 = vmatmul.bf16.gmra.mxu0 %v287
    %v413 = vpop.f32.mrf.mxu0
    %v414 = vadd.f32 %v385, %v413
    %v415 = vpop.f32.mrf.mxu0
    %v416 = vadd.f32 %v387, %v415
    %417 = vdwg.mxu0
    %418 = vmatpush.bf16.msra.mxu0 %v238
    %419 = vmatpush.bf16.msra.mxu0 %v234
    %420 = vmatpush.bf16.msra.mxu0 %v230
    %421 = vmatpush.bf16.msra.mxu0 %v226
    %422 = vmatpush.bf16.msra.mxu0 %v222
    %423 = vmatpush.bf16.msra.mxu0 %v218
    %424 = vmatpush.bf16.msra.mxu0 %v214
    %425 = vmatpush.bf16.msra.mxu0 %v210
    %426 = vmatmul.bf16.gmra.mxu0 %v94
    %v427 = vpop.f32.mrf.mxu0
    %v428 = vadd.f32 0.0, %v427
    %v429 = vpop.f32.mrf.mxu0
    %v430 = vadd.f32 0.0, %v429
    %431 = vmatmul.bf16.gmra.mxu0 %v96
    %v432 = vpop.f32.mrf.mxu0
    %v433 = vadd.f32 0.0, %v432
    %v434 = vpop.f32.mrf.mxu0
    %v435 = vadd.f32 0.0, %v434
    %436 = vmatmul.bf16.gmra.mxu0 %v98
    %v437 = vpop.f32.mrf.mxu0
    %v438 = vadd.f32 0.0, %v437
    %v439 = vpop.f32.mrf.mxu0
    %v440 = vadd.f32 0.0, %v439
    %441 = vmatmul.bf16.gmra.mxu0 %v100
    %v442 = vpop.f32.mrf.mxu0
    %v443 = vadd.f32 0.0, %v442
    %v444 = vpop.f32.mrf.mxu0
    %v445 = vadd.f32 0.0, %v444
    %446 = vdwg.mxu0
    %447 = vmatpush.bf16.msra.mxu0 0
    %448 = vmatpush.bf16.msra.mxu0 0
    %449 = vmatpush.bf16.msra.mxu0 0
    %450 = vmatpush.bf16.msra.mxu0 0
    %451 = vmatpush.bf16.msra.mxu0 0
    %452 = vmatpush.bf16.msra.mxu0 0
    %453 = vmatpush.bf16.msra.mxu0 0
    %454 = vmatpush.bf16.msra.mxu0 %v297
    %455 = vmatmul.bf16.gmra.mxu0 %v278
    %v456 = vpop.f32.mrf.mxu0
    %v457 = vadd.f32 %v428, %v456
    %v458 = vpop.f32.mrf.mxu0
    %v459 = vadd.f32 %v430, %v458
    %460 = vmatmul.bf16.gmra.mxu0 %v281
    %v461 = vpop.f32.mrf.mxu0
    %v462 = vadd.f32 %v433, %v461
    %v463 = vpop.f32.mrf.mxu0
    %v464 = vadd.f32 %v435, %v463
    %465 = vmatmul.bf16.gmra.mxu0 %v284
    %v466 = vpop.f32.mrf.mxu0
    %v467 = vadd.f32 %v438, %v466
    %v468 = vpop.f32.mrf.mxu0
    %v469 = vadd.f32 %v440, %v468
    %470 = vmatmul.bf16.gmra.mxu0 %v287
    %v471 = vpop.f32.mrf.mxu0
    %v472 = vadd.f32 %v443, %v471
    %v473 = vpop.f32.mrf.mxu0
    %v474 = vadd.f32 %v445, %v473
    %475 = vdwg.mxu0
    %476 = vmatpush.bf16.msra.mxu0 %v239
    %477 = vmatpush.bf16.msra.mxu0 %v235
    %478 = vmatpush.bf16.msra.mxu0 %v231
    %479 = vmatpush.bf16.msra.mxu0 %v227
    %480 = vmatpush.bf16.msra.mxu0 %v223
    %481 = vmatpush.bf16.msra.mxu0 %v219
    %482 = vmatpush.bf16.msra.mxu0 %v215
    %483 = vmatpush.bf16.msra.mxu0 %v211
    %484 = vmatmul.bf16.gmra.mxu0 %v94
    %v485 = vpop.f32.mrf.mxu0
    %v486 = vadd.f32 0.0, %v485
    %v487 = vpop.f32.mrf.mxu0
    %v488 = vadd.f32 0.0, %v487
    %489 = vmatmul.bf16.gmra.mxu0 %v96
    %v490 = vpop.f32.mrf.mxu0
    %v491 = vadd.f32 0.0, %v490
    %v492 = vpop.f32.mrf.mxu0
    %v493 = vadd.f32 0.0, %v492
    %494 = vmatmul.bf16.gmra.mxu0 %v98
    %v495 = vpop.f32.mrf.mxu0
    %v496 = vadd.f32 0.0, %v495
    %v497 = vpop.f32.mrf.mxu0
    %v498 = vadd.f32 0.0, %v497
    %499 = vmatmul.bf16.gmra.mxu0 %v100
    %v500 = vpop.f32.mrf.mxu0
    %v501 = vadd.f32 0.0, %v500
    %v502 = vpop.f32.mrf.mxu0
    %v503 = vadd.f32 0.0, %v502
    %504 = vdwg.mxu0
    %505 = vmatpush.bf16.msra.mxu0 0
    %506 = vmatpush.bf16.msra.mxu0 0
    %507 = vmatpush.bf16.msra.mxu0 0
    %508 = vmatpush.bf16.msra.mxu0 0
    %509 = vmatpush.bf16.msra.mxu0 0
    %510 = vmatpush.bf16.msra.mxu0 0
    %511 = vmatpush.bf16.msra.mxu0 0
    %512 = vmatpush.bf16.msra.mxu0 %v300
    %513 = vmatmul.bf16.gmra.mxu0 %v278
    %v514 = vpop.f32.mrf.mxu0
    %v515 = vadd.f32 %v486, %v514
    %v516 = vpop.f32.mrf.mxu0
    %v517 = vadd.f32 %v488, %v516
    %518 = vmatmul.bf16.gmra.mxu0 %v281
    %v519 = vpop.f32.mrf.mxu0
    %v520 = vadd.f32 %v491, %v519
    %v521 = vpop.f32.mrf.mxu0
    %v522 = vadd.f32 %v493, %v521
    %523 = vmatmul.bf16.gmra.mxu0 %v284
    %v524 = vpop.f32.mrf.mxu0
    %v525 = vadd.f32 %v496, %v524
    %v526 = vpop.f32.mrf.mxu0
    %v527 = vadd.f32 %v498, %v526
    %528 = vmatmul.bf16.gmra.mxu0 %v287
    %v529 = vpop.f32.mrf.mxu0
    %v530 = vadd.f32 %v501, %v529
    %v531 = vpop.f32.mrf.mxu0
    %v532 = vadd.f32 %v503, %v531
    %533 = vdwg.mxu0
    %534 = vst [vmem:[#allocation2] sm:$0xff] %v341
    %535 = vst [vmem:[#allocation2 + $0x8] sm:$0xff] %v399
    %536 = vst [vmem:[#allocation2 + $0x10] sm:$0xff] %v457
    %537 = vst [vmem:[#allocation2 + $0x18] sm:$0xff] %v515
    %538 = vst [vmem:[#allocation2 + $0x20] sm:$0xff] %v343
    %539 = vst [vmem:[#allocation2 + $0x28] sm:$0xff] %v401
    %540 = vst [vmem:[#allocation2 + $0x30] sm:$0xff] %v459
    %541 = vst [vmem:[#allocation2 + $0x38] sm:$0xff] %v517
    %542 = vst [vmem:[#allocation2 + $0x40] sm:$0xff] %v346
    %543 = vst [vmem:[#allocation2 + $0x48] sm:$0xff] %v404
    %544 = vst [vmem:[#allocation2 + $0x50] sm:$0xff] %v462
    %545 = vst [vmem:[#allocation2 + $0x58] sm:$0xff] %v520
    %546 = vst [vmem:[#allocation2 + $0x60] sm:$0xff] %v348
    %547 = vst [vmem:[#allocation2 + $0x68] sm:$0xff] %v406
    %548 = vst [vmem:[#allocation2 + $0x70] sm:$0xff] %v464
    %549 = vst [vmem:[#allocation2 + $0x78] sm:$0xff] %v522
    %550 = vst [vmem:[#allocation2 + $0x80] sm:$0xff] %v351
    %551 = vst [vmem:[#allocation2 + $0x88] sm:$0xff] %v409
    %552 = vst [vmem:[#allocation2 + $0x90] sm:$0xff] %v467
    %553 = vst [vmem:[#allocation2 + $0x98] sm:$0xff] %v525
    %554 = vst [vmem:[#allocation2 + $0xa0] sm:$0xff] %v353
    %555 = vst [vmem:[#allocation2 + $0xa8] sm:$0xff] %v411
    %556 = vst [vmem:[#allocation2 + $0xb0] sm:$0xff] %v469
    %557 = vst [vmem:[#allocation2 + $0xb8] sm:$0xff] %v527
    %558 = vst [vmem:[#allocation2 + $0xc0] sm:$0xff] %v356
    %559 = vst [vmem:[#allocation2 + $0xc8] sm:$0xff] %v414
    %560 = vst [vmem:[#allocation2 + $0xd0] sm:$0xff] %v472
    %561 = vst [vmem:[#allocation2 + $0xd8] sm:$0xff] %v530
    %562 = vst [vmem:[#allocation2 + $0xe0] sm:$0xff] %v358
    %563 = vst [vmem:[#allocation2 + $0xe8] sm:$0xff] %v416
    %564 = vst [vmem:[#allocation2 + $0xf0] sm:$0xff] %v474
    %565 = vst [vmem:[#allocation2 + $0xf8] sm:$0xff] %v532
    %v566 = vld [vmem:[%s1] sm:$0xff]
    %v567 = vlaneseq
    %v568 = vshrl.u32 %v567, 7
    %vm569 = vcmp.lt.s32.totalorder %v568, 4
    %v570 = vsel %vm569, 1, 0
    %vm571 = vcmp.eq.s32.totalorder %v570, 1
    %v572 = vsel %vm571, 1.0, 0.0
    %v573 = vsel %vm571, 0.0, 1.0
    %s574 = smul.u32 0, 4
    %s575 = smul.addr %s574, 8
    %s576 = scalar_lea.vmem [#allocation2], %s575
    %v577 = vld [vmem:[%s576] sm:$0xff]
    %v578 = vld [vmem:[%s576 + $0x8] sm:$0xff]
    %v579 = vld [vmem:[%s576 + $0x10] sm:$0xff]
    %v580 = vld [vmem:[%s576 + $0x18] sm:$0xff]
    %v581 = vmul.f32 %v572, 0.0
    %v582 = vmul.f32 %v573, 0.0
    %v583 = vpack.c.bf16 %v581, %v581
    %v584 = vpack.c.bf16 %v582, %v582
    %v585 = vld [vmem:[%s3] sm:$0xff]
    %v586 = vld [vmem:[%s3 + $0x8] sm:$0xff]
    %v587 = vld [vmem:[%s3 + $0x10] sm:$0xff]
    %v588 = vld [vmem:[%s3 + $0x18] sm:$0xff]
    %v589 = vld [vmem:[%s3 + $0x20] sm:$0xff]
    %v590 = vld [vmem:[%s3 + $0x28] sm:$0xff]
    %v591 = vld [vmem:[%s3 + $0x30] sm:$0xff]
    %v592 = vld [vmem:[%s3 + $0x38] sm:$0xff]
    %v593 = vld [vmem:[%s3 + $0x40] sm:$0xff]
    %v594 = vld [vmem:[%s3 + $0x48] sm:$0xff]
    %v595 = vld [vmem:[%s3 + $0x50] sm:$0xff]
    %v596 = vld [vmem:[%s3 + $0x58] sm:$0xff]
    %v597 = vld [vmem:[%s3 + $0x60] sm:$0xff]
    %v598 = vld [vmem:[%s3 + $0x68] sm:$0xff]
    %v599 = vld [vmem:[%s3 + $0x70] sm:$0xff]
    %v600 = vld [vmem:[%s3 + $0x78] sm:$0xff]
    %v601 = vld [vmem:[%s3 + $0x80] sm:$0xff]
    %v602 = vld [vmem:[%s3 + $0x88] sm:$0xff]
    %v603 = vld [vmem:[%s3 + $0x90] sm:$0xff]
    %v604 = vld [vmem:[%s3 + $0x98] sm:$0xff]
    %v605 = vld [vmem:[%s3 + $0xa0] sm:$0xff]
    %v606 = vld [vmem:[%s3 + $0xa8] sm:$0xff]
    %v607 = vld [vmem:[%s3 + $0xb0] sm:$0xff]
    %v608 = vld [vmem:[%s3 + $0xb8] sm:$0xff]
    %v609 = vld [vmem:[%s3 + $0xc0] sm:$0xff]
    %v610 = vld [vmem:[%s3 + $0xc8] sm:$0xff]
    %v611 = vld [vmem:[%s3 + $0xd0] sm:$0xff]
    %v612 = vld [vmem:[%s3 + $0xd8] sm:$0xff]
    %v613 = vld [vmem:[%s3 + $0xe0] sm:$0xff]
    %v614 = vld [vmem:[%s3 + $0xe8] sm:$0xff]
    %v615 = vld [vmem:[%s3 + $0xf0] sm:$0xff]
    %v616 = vld [vmem:[%s3 + $0xf8] sm:$0xff]
    %v617 = vld [vmem:[%s3 + $0x100] sm:$0xff]
    %v618 = vld [vmem:[%s3 + $0x108] sm:$0xff]
    %v619 = vld [vmem:[%s3 + $0x110] sm:$0xff]
    %v620 = vld [vmem:[%s3 + $0x118] sm:$0xff]
    %v621 = vld [vmem:[%s3 + $0x120] sm:$0xff]
    %v622 = vld [vmem:[%s3 + $0x128] sm:$0xff]
    %v623 = vld [vmem:[%s3 + $0x130] sm:$0xff]
    %v624 = vld [vmem:[%s3 + $0x138] sm:$0xff]
    %v625 = vld [vmem:[%s3 + $0x140] sm:$0xff]
    %v626 = vld [vmem:[%s3 + $0x148] sm:$0xff]
    %v627 = vld [vmem:[%s3 + $0x150] sm:$0xff]
    %v628 = vld [vmem:[%s3 + $0x158] sm:$0xff]
    %v629 = vld [vmem:[%s3 + $0x160] sm:$0xff]
    %v630 = vld [vmem:[%s3 + $0x168] sm:$0xff]
    %v631 = vld [vmem:[%s3 + $0x170] sm:$0xff]
    %v632 = vld [vmem:[%s3 + $0x178] sm:$0xff]
    %v633 = vld [vmem:[%s3 + $0x180] sm:$0xff]
    %v634 = vld [vmem:[%s3 + $0x188] sm:$0xff]
    %v635 = vld [vmem:[%s3 + $0x190] sm:$0xff]
    %v636 = vld [vmem:[%s3 + $0x198] sm:$0xff]
    %v637 = vld [vmem:[%s3 + $0x1a0] sm:$0xff]
    %v638 = vld [vmem:[%s3 + $0x1a8] sm:$0xff]
    %v639 = vld [vmem:[%s3 + $0x1b0] sm:$0xff]
    %v640 = vld [vmem:[%s3 + $0x1b8] sm:$0xff]
    %v641 = vld [vmem:[%s3 + $0x1c0] sm:$0xff]
    %v642 = vld [vmem:[%s3 + $0x1c8] sm:$0xff]
    %v643 = vld [vmem:[%s3 + $0x1d0] sm:$0xff]
    %v644 = vld [vmem:[%s3 + $0x1d8] sm:$0xff]
    %v645 = vld [vmem:[%s3 + $0x1e0] sm:$0xff]
    %v646 = vld [vmem:[%s3 + $0x1e8] sm:$0xff]
    %v647 = vld [vmem:[%s3 + $0x1f0] sm:$0xff]
    %v648 = vld [vmem:[%s3 + $0x1f8] sm:$0xff]
    %v713 = vunpack.c.l.b16 %v585
    %v714 = vunpack.c.h.b16 %v585
    %v715 = vunpack.c.l.b16 %v586
    %v716 = vunpack.c.h.b16 %v586
    %v717 = vunpack.c.l.b16 %v587
    %v718 = vunpack.c.h.b16 %v587
    %v719 = vunpack.c.l.b16 %v588
    %v720 = vunpack.c.h.b16 %v588
    %v721 = vunpack.c.l.b16 %v589
    %v722 = vunpack.c.h.b16 %v589
    %v723 = vunpack.c.l.b16 %v590
    %v724 = vunpack.c.h.b16 %v590
    %v725 = vunpack.c.l.b16 %v591
    %v726 = vunpack.c.h.b16 %v591
    %v727 = vunpack.c.l.b16 %v592
    %v728 = vunpack.c.h.b16 %v592
    %v729 = vunpack.c.l.b16 %v593
    %v730 = vunpack.c.h.b16 %v593
    %v731 = vunpack.c.l.b16 %v594
    %v732 = vunpack.c.h.b16 %v594
    %v733 = vunpack.c.l.b16 %v595
    %v734 = vunpack.c.h.b16 %v595
    %v735 = vunpack.c.l.b16 %v596
    %v736 = vunpack.c.h.b16 %v596
    %v737 = vunpack.c.l.b16 %v597
    %v738 = vunpack.c.h.b16 %v597
    %v739 = vunpack.c.l.b16 %v598
    %v740 = vunpack.c.h.b16 %v598
    %v741 = vunpack.c.l.b16 %v599
    %v742 = vunpack.c.h.b16 %v599
    %v743 = vunpack.c.l.b16 %v600
    %v744 = vunpack.c.h.b16 %v600
    %v745 = vunpack.c.l.b16 %v601
    %v746 = vunpack.c.h.b16 %v601
    %v747 = vunpack.c.l.b16 %v602
    %v748 = vunpack.c.h.b16 %v602
    %v749 = vunpack.c.l.b16 %v603
    %v750 = vunpack.c.h.b16 %v603
    %v751 = vunpack.c.l.b16 %v604
    %v752 = vunpack.c.h.b16 %v604
    %v753 = vunpack.c.l.b16 %v605
    %v754 = vunpack.c.h.b16 %v605
    %v755 = vunpack.c.l.b16 %v606
    %v756 = vunpack.c.h.b16 %v606
    %v757 = vunpack.c.l.b16 %v607
    %v758 = vunpack.c.h.b16 %v607
    %v759 = vunpack.c.l.b16 %v608
    %v760 = vunpack.c.h.b16 %v608
    %v761 = vunpack.c.l.b16 %v609
    %v762 = vunpack.c.h.b16 %v609
    %v763 = vunpack.c.l.b16 %v610
    %v764 = vunpack.c.h.b16 %v610
    %v765 = vunpack.c.l.b16 %v611
    %v766 = vunpack.c.h.b16 %v611
    %v767 = vunpack.c.l.b16 %v612
    %v768 = vunpack.c.h.b16 %v612
    %v769 = vunpack.c.l.b16 %v613
    %v770 = vunpack.c.h.b16 %v613
    %v771 = vunpack.c.l.b16 %v614
    %v772 = vunpack.c.h.b16 %v614
    %v773 = vunpack.c.l.b16 %v615
    %v774 = vunpack.c.h.b16 %v615
    %v775 = vunpack.c.l.b16 %v616
    %v776 = vunpack.c.h.b16 %v616
    %v777 = vunpack.c.l.b16 %v617
    %v778 = vunpack.c.h.b16 %v617
    %v779 = vunpack.c.l.b16 %v618
    %v780 = vunpack.c.h.b16 %v618
    %v781 = vunpack.c.l.b16 %v619
    %v782 = vunpack.c.h.b16 %v619
    %v783 = vunpack.c.l.b16 %v620
    %v784 = vunpack.c.h.b16 %v620
    %v785 = vunpack.c.l.b16 %v621
    %v786 = vunpack.c.h.b16 %v621
    %v787 = vunpack.c.l.b16 %v622
    %v788 = vunpack.c.h.b16 %v622
    %v789 = vunpack.c.l.b16 %v623
    %v790 = vunpack.c.h.b16 %v623
    %v791 = vunpack.c.l.b16 %v624
    %v792 = vunpack.c.h.b16 %v624
    %v793 = vunpack.c.l.b16 %v625
    %v794 = vunpack.c.h.b16 %v625
    %v795 = vunpack.c.l.b16 %v626
    %v796 = vunpack.c.h.b16 %v626
    %v797 = vunpack.c.l.b16 %v627
    %v798 = vunpack.c.h.b16 %v627
    %v799 = vunpack.c.l.b16 %v628
    %v800 = vunpack.c.h.b16 %v628
    %v801 = vunpack.c.l.b16 %v629
    %v802 = vunpack.c.h.b16 %v629
    %v803 = vunpack.c.l.b16 %v630
    %v804 = vunpack.c.h.b16 %v630
    %v805 = vunpack.c.l.b16 %v631
    %v806 = vunpack.c.h.b16 %v631
    %v807 = vunpack.c.l.b16 %v632
    %v808 = vunpack.c.h.b16 %v632
    %v809 = vunpack.c.l.b16 %v633
    %v810 = vunpack.c.h.b16 %v633
    %v811 = vunpack.c.l.b16 %v634
    %v812 = vunpack.c.h.b16 %v634
    %v813 = vunpack.c.l.b16 %v635
    %v814 = vunpack.c.h.b16 %v635
    %v815 = vunpack.c.l.b16 %v636
    %v816 = vunpack.c.h.b16 %v636
    %v817 = vunpack.c.l.b16 %v637
    %v818 = vunpack.c.h.b16 %v637
    %v819 = vunpack.c.l.b16 %v638
    %v820 = vunpack.c.h.b16 %v638
    %v821 = vunpack.c.l.b16 %v639
    %v822 = vunpack.c.h.b16 %v639
    %v823 = vunpack.c.l.b16 %v640
    %v824 = vunpack.c.h.b16 %v640
    %v825 = vunpack.c.l.b16 %v641
    %v826 = vunpack.c.h.b16 %v641
    %v827 = vunpack.c.l.b16 %v642
    %v828 = vunpack.c.h.b16 %v642
    %v829 = vunpack.c.l.b16 %v643
    %v830 = vunpack.c.h.b16 %v643
    %v831 = vunpack.c.l.b16 %v644
    %v832 = vunpack.c.h.b16 %v644
    %v833 = vunpack.c.l.b16 %v645
    %v834 = vunpack.c.h.b16 %v645
    %v835 = vunpack.c.l.b16 %v646
    %v836 = vunpack.c.h.b16 %v646
    %v837 = vunpack.c.l.b16 %v647
    %v838 = vunpack.c.h.b16 %v647
    %v839 = vunpack.c.l.b16 %v648
    %v840 = vunpack.c.h.b16 %v648
    %v841 = vpack.c.b16 %v717, %v713
    %v842 = vpack.c.b16 %v718, %v714
    %v843 = vpack.c.b16 %v719, %v715
    %v844 = vpack.c.b16 %v720, %v716
    %v845 = vpack.c.b16 %v725, %v721
    %v846 = vpack.c.b16 %v726, %v722
    %v847 = vpack.c.b16 %v727, %v723
    %v848 = vpack.c.b16 %v728, %v724
    %v849 = vpack.c.b16 %v733, %v729
    %v850 = vpack.c.b16 %v734, %v730
    %v851 = vpack.c.b16 %v735, %v731
    %v852 = vpack.c.b16 %v736, %v732
    %v853 = vpack.c.b16 %v741, %v737
    %v854 = vpack.c.b16 %v742, %v738
    %v855 = vpack.c.b16 %v743, %v739
    %v856 = vpack.c.b16 %v744, %v740
    %v857 = vpack.c.b16 %v749, %v745
    %v858 = vpack.c.b16 %v750, %v746
    %v859 = vpack.c.b16 %v751, %v747
    %v860 = vpack.c.b16 %v752, %v748
    %v861 = vpack.c.b16 %v757, %v753
    %v862 = vpack.c.b16 %v758, %v754
    %v863 = vpack.c.b16 %v759, %v755
    %v864 = vpack.c.b16 %v760, %v756
    %v865 = vpack.c.b16 %v765, %v761
    %v866 = vpack.c.b16 %v766, %v762
    %v867 = vpack.c.b16 %v767, %v763
    %v868 = vpack.c.b16 %v768, %v764
    %v869 = vpack.c.b16 %v773, %v769
    %v870 = vpack.c.b16 %v774, %v770
    %v871 = vpack.c.b16 %v775, %v771
    %v872 = vpack.c.b16 %v776, %v772
    %v873 = vpack.c.b16 %v781, %v777
    %v874 = vpack.c.b16 %v782, %v778
    %v875 = vpack.c.b16 %v783, %v779
    %v876 = vpack.c.b16 %v784, %v780
    %v877 = vpack.c.b16 %v789, %v785
    %v878 = vpack.c.b16 %v790, %v786
    %v879 = vpack.c.b16 %v791, %v787
    %v880 = vpack.c.b16 %v792, %v788
    %v881 = vpack.c.b16 %v797, %v793
    %v882 = vpack.c.b16 %v798, %v794
    %v883 = vpack.c.b16 %v799, %v795
    %v884 = vpack.c.b16 %v800, %v796
    %v885 = vpack.c.b16 %v805, %v801
    %v886 = vpack.c.b16 %v806, %v802
    %v887 = vpack.c.b16 %v807, %v803
    %v888 = vpack.c.b16 %v808, %v804
    %v889 = vpack.c.b16 %v813, %v809
    %v890 = vpack.c.b16 %v814, %v810
    %v891 = vpack.c.b16 %v815, %v811
    %v892 = vpack.c.b16 %v816, %v812
    %v893 = vpack.c.b16 %v821, %v817
    %v894 = vpack.c.b16 %v822, %v818
    %v895 = vpack.c.b16 %v823, %v819
    %v896 = vpack.c.b16 %v824, %v820
    %v897 = vpack.c.b16 %v829, %v825
    %v898 = vpack.c.b16 %v830, %v826
    %v899 = vpack.c.b16 %v831, %v827
    %v900 = vpack.c.b16 %v832, %v828
    %v901 = vpack.c.b16 %v837, %v833
    %v902 = vpack.c.b16 %v838, %v834
    %v903 = vpack.c.b16 %v839, %v835
    %v904 = vpack.c.b16 %v840, %v836
    %969 = vmatpush.bf16.msra.mxu0 %v869
    %970 = vmatpush.bf16.msra.mxu0 %v865
    %971 = vmatpush.bf16.msra.mxu0 %v861
    %972 = vmatpush.bf16.msra.mxu0 %v857
    %973 = vmatpush.bf16.msra.mxu0 %v853
    %974 = vmatpush.bf16.msra.mxu0 %v849
    %975 = vmatpush.bf16.msra.mxu0 %v845
    %976 = vmatpush.bf16.msra.mxu0 %v841
    %977 = vmatmul.bf16.gmra.mxu0 %v583
    %v978 = vpop.f32.mrf.mxu0
    %v979 = vadd.f32 0.0, %v978
    %v980 = vpop.f32.mrf.mxu0
    %981 = vdwg.mxu0
    %982 = vmatpush.bf16.msra.mxu0 %v901
    %983 = vmatpush.bf16.msra.mxu0 %v897
    %984 = vmatpush.bf16.msra.mxu0 %v893
    %985 = vmatpush.bf16.msra.mxu0 %v889
    %986 = vmatpush.bf16.msra.mxu0 %v885
    %987 = vmatpush.bf16.msra.mxu0 %v881
    %988 = vmatpush.bf16.msra.mxu0 %v877
    %989 = vmatpush.bf16.msra.mxu0 %v873
    %990 = vmatmul.bf16.gmra.mxu0 %v584
    %v991 = vpop.f32.mrf.mxu0
    %v992 = vadd.f32 %v979, %v991
    %v993 = vpop.f32.mrf.mxu0
    %994 = vdwg.mxu0
    %995 = vmatpush.bf16.msra.mxu0 %v870
    %996 = vmatpush.bf16.msra.mxu0 %v866
    %997 = vmatpush.bf16.msra.mxu0 %v862
    %998 = vmatpush.bf16.msra.mxu0 %v858
    %999 = vmatpush.bf16.msra.mxu0 %v854
    %1000 = vmatpush.bf16.msra.mxu0 %v850
    %1001 = vmatpush.bf16.msra.mxu0 %v846
    %1002 = vmatpush.bf16.msra.mxu0 %v842
    %1003 = vmatmul.bf16.gmra.mxu0 %v583
    %v1004 = vpop.f32.mrf.mxu0
    %v1005 = vadd.f32 0.0, %v1004
    %v1006 = vpop.f32.mrf.mxu0
    %1007 = vdwg.mxu0
    %1008 = vmatpush.bf16.msra.mxu0 %v902
    %1009 = vmatpush.bf16.msra.mxu0 %v898
    %1010 = vmatpush.bf16.msra.mxu0 %v894
    %1011 = vmatpush.bf16.msra.mxu0 %v890
    %1012 = vmatpush.bf16.msra.mxu0 %v886
    %1013 = vmatpush.bf16.msra.mxu0 %v882
    %1014 = vmatpush.bf16.msra.mxu0 %v878
    %1015 = vmatpush.bf16.msra.mxu0 %v874
    %1016 = vmatmul.bf16.gmra.mxu0 %v584
    %v1017 = vpop.f32.mrf.mxu0
    %v1018 = vadd.f32 %v1005, %v1017
    %v1019 = vpop.f32.mrf.mxu0
    %1020 = vdwg.mxu0
    %1021 = vmatpush.bf16.msra.mxu0 %v871
    %1022 = vmatpush.bf16.msra.mxu0 %v867
    %1023 = vmatpush.bf16.msra.mxu0 %v863
    %1024 = vmatpush.bf16.msra.mxu0 %v859
    %1025 = vmatpush.bf16.msra.mxu0 %v855
    %1026 = vmatpush.bf16.msra.mxu0 %v851
    %1027 = vmatpush.bf16.msra.mxu0 %v847
    %1028 = vmatpush.bf16.msra.mxu0 %v843
    %1029 = vmatmul.bf16.gmra.mxu0 %v583
    %v1030 = vpop.f32.mrf.mxu0
    %v1031 = vadd.f32 0.0, %v1030
    %v1032 = vpop.f32.mrf.mxu0
    %1033 = vdwg.mxu0
    %1034 = vmatpush.bf16.msra.mxu0 %v903
    %1035 = vmatpush.bf16.msra.mxu0 %v899
    %1036 = vmatpush.bf16.msra.mxu0 %v895
    %1037 = vmatpush.bf16.msra.mxu0 %v891
    %1038 = vmatpush.bf16.msra.mxu0 %v887
    %1039 = vmatpush.bf16.msra.mxu0 %v883
    %1040 = vmatpush.bf16.msra.mxu0 %v879
    %1041 = vmatpush.bf16.msra.mxu0 %v875
    %1042 = vmatmul.bf16.gmra.mxu0 %v584
    %v1043 = vpop.f32.mrf.mxu0
    %v1044 = vadd.f32 %v1031, %v1043
    %v1045 = vpop.f32.mrf.mxu0
    %1046 = vdwg.mxu0
    %1047 = vmatpush.bf16.msra.mxu0 %v872
    %1048 = vmatpush.bf16.msra.mxu0 %v868
    %1049 = vmatpush.bf16.msra.mxu0 %v864
    %1050 = vmatpush.bf16.msra.mxu0 %v860
    %1051 = vmatpush.bf16.msra.mxu0 %v856
    %1052 = vmatpush.bf16.msra.mxu0 %v852
    %1053 = vmatpush.bf16.msra.mxu0 %v848
    %1054 = vmatpush.bf16.msra.mxu0 %v844
    %1055 = vmatmul.bf16.gmra.mxu0 %v583
    %v1056 = vpop.f32.mrf.mxu0
    %v1057 = vadd.f32 0.0, %v1056
    %v1058 = vpop.f32.mrf.mxu0
    %1059 = vdwg.mxu0
    %1060 = vmatpush.bf16.msra.mxu0 %v904
    %1061 = vmatpush.bf16.msra.mxu0 %v900
    %1062 = vmatpush.bf16.msra.mxu0 %v896
    %1063 = vmatpush.bf16.msra.mxu0 %v892
    %1064 = vmatpush.bf16.msra.mxu0 %v888
    %1065 = vmatpush.bf16.msra.mxu0 %v884
    %1066 = vmatpush.bf16.msra.mxu0 %v880
    %1067 = vmatpush.bf16.msra.mxu0 %v876
    %1068 = vmatmul.bf16.gmra.mxu0 %v584
    %v1069 = vpop.f32.mrf.mxu0
    %v1070 = vadd.f32 %v1057, %v1069
    %v1071 = vpop.f32.mrf.mxu0
    %1072 = vdwg.mxu0
    %v1073 = vadd.f32 %v577, %v992
    %v1074 = vadd.f32 %v578, %v1018
    %v1075 = vadd.f32 %v579, %v1044
    %v1076 = vadd.f32 %v580, %v1070
    %v1077 = vxor.u32 %v1073, 2147483648
    %v1078 = vxor.u32 %v1074, 2147483648
    %v1079 = vmul.f32 %v1077, 1.442695
    %v1080 = vpow.pop %v1079
    %v1081 = vmul.f32 %v1078, 1.442695
    %v1082 = vpow.pop %v1081
    %v1083 = vadd.f32 %v1080, 1.0
    %v1084 = vadd.f32 %v1082, 1.0
    %v1085 = vrcp.pop %v1083
    %v1086 = vmul.f32 %v1083, %v1085
    %v1087 = vsub.f32 1.0, %v1086
    %v1088 = vmul.f32 %v1085, %v1087
    %v1089 = vadd.f32 %v1085, %v1088
    %vm1090 = vweird.f32 %v1083
    %vm1091 = vweird.f32 %v1085
    %vm1092 = vmor %vm1090, %vm1091
    %v1093 = vsel %vm1092, %v1085, %v1089
    %v1094 = vand.u32 2147483647, %v1083
    %vm1095 = vcmp.eq.f32.partialorder %v1094, 8.507059e+37
    %v1096 = vand.u32 %v1083, 2147483648
    %v1097 = vor.u32 1.1754944e-38, %v1096
    %v1098 = vsel %vm1095, %v1097, %v1093
    %v1099 = vmul.f32 1.0, %v1098
    %v1100 = vrcp.pop %v1084
    %v1101 = vmul.f32 %v1084, %v1100
    %v1102 = vsub.f32 1.0, %v1101
    %v1103 = vmul.f32 %v1100, %v1102
    %v1104 = vadd.f32 %v1100, %v1103
    %vm1105 = vweird.f32 %v1084
    %vm1106 = vweird.f32 %v1100
    %vm1107 = vmor %vm1105, %vm1106
    %v1108 = vsel %vm1107, %v1100, %v1104
    %v1109 = vand.u32 2147483647, %v1084
    %vm1110 = vcmp.eq.f32.partialorder %v1109, 8.507059e+37
    %v1111 = vand.u32 %v1084, 2147483648
    %v1112 = vor.u32 1.1754944e-38, %v1111
    %v1113 = vsel %vm1110, %v1112, %v1108
    %v1114 = vmul.f32 1.0, %v1113
    %v1115 = vtanh.pop %v1075
    %v1116 = vxor.u32 %v1076, 2147483648
    %v1117 = vmul.f32 %v1116, 1.442695
    %v1118 = vpow.pop %v1117
    %v1119 = vadd.f32 %v1118, 1.0
    %v1120 = vrcp.pop %v1119
    %v1121 = vmul.f32 %v1119, %v1120
    %v1122 = vsub.f32 1.0, %v1121
    %v1123 = vmul.f32 %v1120, %v1122
    %v1124 = vadd.f32 %v1120, %v1123
    %vm1125 = vweird.f32 %v1119
    %vm1126 = vweird.f32 %v1120
    %vm1127 = vmor %vm1125, %vm1126
    %v1128 = vsel %vm1127, %v1120, %v1124
    %v1129 = vand.u32 2147483647, %v1119
    %vm1130 = vcmp.eq.f32.partialorder %v1129, 8.507059e+37
    %v1131 = vand.u32 %v1119, 2147483648
    %v1132 = vor.u32 1.1754944e-38, %v1131
    %v1133 = vsel %vm1130, %v1132, %v1128
    %v1134 = vmul.f32 1.0, %v1133
    %v1135 = vmul.f32 %v1114, 0.0
    %v1136 = vmul.f32 %v1099, %v1115
    %v1137 = vadd.f32 %v1135, %v1136
    %v1138 = vtanh.pop %v1137
    %v1139 = vmul.f32 %v1134, %v1138
    %vm1140 = vcmp.le.s32.totalorder %v566, 0
    %vm1141 = vcmp.gt.s32.totalorder %v566, 0
    %v1142 = vsel %vm1141, 1, 0
    %1143 = vrot.lane.b32.xlu0 %v1142, 127
    %v1144 = vpop.permute.xlu0 %1143
    %vm1145 = vcmp.ne.s32.totalorder %v1144, 0
    %vm1146 = vmand %vm1140, %vm1145
    %v1147 = vsel %vm1146, 1, 0
    %1148 = vset.pattern.permute.xlu0 0
    %1149 = vperm.xlu0 %1148, %v1147
    %v1150 = vpop.permute.xlu0 %1149
    %vm1151 = vcmp.eq.s32.totalorder %v1150, 1
    %v1152 = vsel %vm1151, %v1139, 0.0
    %v1153 = vsel %vm1151, %v1137, 0.0
    %v1154 = vsel %vm1151, %v1139, -1e+30
    %v1155 = vmax.f32 %v1154, -1e+30
    %s1156 = smul.u32 1, 4
    %s1157 = smul.addr %s1156, 8
    %s1158 = scalar_lea.vmem [#allocation2], %s1157
    %v1159 = vld [vmem:[%s1158] sm:$0xff]
    %v1160 = vld [vmem:[%s1158 + $0x8] sm:$0xff]
    %v1161 = vld [vmem:[%s1158 + $0x10] sm:$0xff]
    %v1162 = vld [vmem:[%s1158 + $0x18] sm:$0xff]
    %v1163 = vmul.f32 %v1152, %v572
    %v1164 = vmul.f32 %v1152, %v573
    %v1165 = vpack.c.bf16 %v1163, %v1163
    %v1166 = vpack.c.bf16 %v1164, %v1164
    %1167 = vmatpush.bf16.msra.mxu0 %v869
    %1168 = vmatpush.bf16.msra.mxu0 %v865
    %1169 = vmatpush.bf16.msra.mxu0 %v861
    %1170 = vmatpush.bf16.msra.mxu0 %v857
    %1171 = vmatpush.bf16.msra.mxu0 %v853
    %1172 = vmatpush.bf16.msra.mxu0 %v849
    %1173 = vmatpush.bf16.msra.mxu0 %v845
    %1174 = vmatpush.bf16.msra.mxu0 %v841
    %1175 = vmatmul.bf16.gmra.mxu0 %v1165
    %v1176 = vpop.f32.mrf.mxu0
    %v1177 = vadd.f32 0.0, %v1176
    %v1178 = vpop.f32.mrf.mxu0
    %1179 = vdwg.mxu0
    %1180 = vmatpush.bf16.msra.mxu0 %v901
    %1181 = vmatpush.bf16.msra.mxu0 %v897
    %1182 = vmatpush.bf16.msra.mxu0 %v893
    %1183 = vmatpush.bf16.msra.mxu0 %v889
    %1184 = vmatpush.bf16.msra.mxu0 %v885
    %1185 = vmatpush.bf16.msra.mxu0 %v881
    %1186 = vmatpush.bf16.msra.mxu0 %v877
    %1187 = vmatpush.bf16.msra.mxu0 %v873
    %1188 = vmatmul.bf16.gmra.mxu0 %v1166
    %v1189 = vpop.f32.mrf.mxu0
    %v1190 = vadd.f32 %v1177, %v1189
    %v1191 = vpop.f32.mrf.mxu0
    %1192 = vdwg.mxu0
    %1193 = vmatpush.bf16.msra.mxu0 %v870
    %1194 = vmatpush.bf16.msra.mxu0 %v866
    %1195 = vmatpush.bf16.msra.mxu0 %v862
    %1196 = vmatpush.bf16.msra.mxu0 %v858
    %1197 = vmatpush.bf16.msra.mxu0 %v854
    %1198 = vmatpush.bf16.msra.mxu0 %v850
    %1199 = vmatpush.bf16.msra.mxu0 %v846
    %1200 = vmatpush.bf16.msra.mxu0 %v842
    %1201 = vmatmul.bf16.gmra.mxu0 %v1165
    %v1202 = vpop.f32.mrf.mxu0
    %v1203 = vadd.f32 0.0, %v1202
    %v1204 = vpop.f32.mrf.mxu0
    %1205 = vdwg.mxu0
    %1206 = vmatpush.bf16.msra.mxu0 %v902
    %1207 = vmatpush.bf16.msra.mxu0 %v898
    %1208 = vmatpush.bf16.msra.mxu0 %v894
    %1209 = vmatpush.bf16.msra.mxu0 %v890
    %1210 = vmatpush.bf16.msra.mxu0 %v886
    %1211 = vmatpush.bf16.msra.mxu0 %v882
    %1212 = vmatpush.bf16.msra.mxu0 %v878
    %1213 = vmatpush.bf16.msra.mxu0 %v874
    %1214 = vmatmul.bf16.gmra.mxu0 %v1166
    %v1215 = vpop.f32.mrf.mxu0
    %v1216 = vadd.f32 %v1203, %v1215
    %v1217 = vpop.f32.mrf.mxu0
    %1218 = vdwg.mxu0
    %1219 = vmatpush.bf16.msra.mxu0 %v871
    %1220 = vmatpush.bf16.msra.mxu0 %v867
    %1221 = vmatpush.bf16.msra.mxu0 %v863
    %1222 = vmatpush.bf16.msra.mxu0 %v859
    %1223 = vmatpush.bf16.msra.mxu0 %v855
    %1224 = vmatpush.bf16.msra.mxu0 %v851
    %1225 = vmatpush.bf16.msra.mxu0 %v847
    %1226 = vmatpush.bf16.msra.mxu0 %v843
    %1227 = vmatmul.bf16.gmra.mxu0 %v1165
    %v1228 = vpop.f32.mrf.mxu0
    %v1229 = vadd.f32 0.0, %v1228
    %v1230 = vpop.f32.mrf.mxu0
    %1231 = vdwg.mxu0
    %1232 = vmatpush.bf16.msra.mxu0 %v903
    %1233 = vmatpush.bf16.msra.mxu0 %v899
    %1234 = vmatpush.bf16.msra.mxu0 %v895
    %1235 = vmatpush.bf16.msra.mxu0 %v891
    %1236 = vmatpush.bf16.msra.mxu0 %v887
    %1237 = vmatpush.bf16.msra.mxu0 %v883
    %1238 = vmatpush.bf16.msra.mxu0 %v879
    %1239 = vmatpush.bf16.msra.mxu0 %v875
    %1240 = vmatmul.bf16.gmra.mxu0 %v1166
    %v1241 = vpop.f32.mrf.mxu0
    %v1242 = vadd.f32 %v1229, %v1241
    %v1243 = vpop.f32.mrf.mxu0
    %1244 = vdwg.mxu0
    %1245 = vmatpush.bf16.msra.mxu0 %v872
    %1246 = vmatpush.bf16.msra.mxu0 %v868
    %1247 = vmatpush.bf16.msra.mxu0 %v864
    %1248 = vmatpush.bf16.msra.mxu0 %v860
    %1249 = vmatpush.bf16.msra.mxu0 %v856
    %1250 = vmatpush.bf16.msra.mxu0 %v852
    %1251 = vmatpush.bf16.msra.mxu0 %v848
    %1252 = vmatpush.bf16.msra.mxu0 %v844
    %1253 = vmatmul.bf16.gmra.mxu0 %v1165
    %v1254 = vpop.f32.mrf.mxu0
    %v1255 = vadd.f32 0.0, %v1254
    %v1256 = vpop.f32.mrf.mxu0
    %1257 = vdwg.mxu0
    %1258 = vmatpush.bf16.msra.mxu0 %v904
    %1259 = vmatpush.bf16.msra.mxu0 %v900
    %1260 = vmatpush.bf16.msra.mxu0 %v896
    %1261 = vmatpush.bf16.msra.mxu0 %v892
    %1262 = vmatpush.bf16.msra.mxu0 %v888
    %1263 = vmatpush.bf16.msra.mxu0 %v884
    %1264 = vmatpush.bf16.msra.mxu0 %v880
    %1265 = vmatpush.bf16.msra.mxu0 %v876
    %1266 = vmatmul.bf16.gmra.mxu0 %v1166
    %v1267 = vpop.f32.mrf.mxu0
    %v1268 = vadd.f32 %v1255, %v1267
    %v1269 = vpop.f32.mrf.mxu0
    %1270 = vdwg.mxu0
    %v1271 = vadd.f32 %v1159, %v1190
    %v1272 = vadd.f32 %v1160, %v1216
    %v1273 = vadd.f32 %v1161, %v1242
    %v1274 = vadd.f32 %v1162, %v1268
    %v1275 = vxor.u32 %v1271, 2147483648
    %v1276 = vxor.u32 %v1272, 2147483648
    %v1277 = vmul.f32 %v1275, 1.442695
    %v1278 = vpow.pop %v1277
    %v1279 = vmul.f32 %v1276, 1.442695
    %v1280 = vpow.pop %v1279
    %v1281 = vadd.f32 %v1278, 1.0
    %v1282 = vadd.f32 %v1280, 1.0
    %v1283 = vrcp.pop %v1281
    %v1284 = vmul.f32 %v1281, %v1283
    %v1285 = vsub.f32 1.0, %v1284
    %v1286 = vmul.f32 %v1283, %v1285
    %v1287 = vadd.f32 %v1283, %v1286
    %vm1288 = vweird.f32 %v1281
    %vm1289 = vweird.f32 %v1283
    %vm1290 = vmor %vm1288, %vm1289
    %v1291 = vsel %vm1290, %v1283, %v1287
    %v1292 = vand.u32 2147483647, %v1281
    %vm1293 = vcmp.eq.f32.partialorder %v1292, 8.507059e+37
    %v1294 = vand.u32 %v1281, 2147483648
    %v1295 = vor.u32 1.1754944e-38, %v1294
    %v1296 = vsel %vm1293, %v1295, %v1291
    %v1297 = vmul.f32 1.0, %v1296
    %v1298 = vrcp.pop %v1282
    %v1299 = vmul.f32 %v1282, %v1298
    %v1300 = vsub.f32 1.0, %v1299
    %v1301 = vmul.f32 %v1298, %v1300
    %v1302 = vadd.f32 %v1298, %v1301
    %vm1303 = vweird.f32 %v1282
    %vm1304 = vweird.f32 %v1298
    %vm1305 = vmor %vm1303, %vm1304
    %v1306 = vsel %vm1305, %v1298, %v1302
    %v1307 = vand.u32 2147483647, %v1282
    %vm1308 = vcmp.eq.f32.partialorder %v1307, 8.507059e+37
    %v1309 = vand.u32 %v1282, 2147483648
    %v1310 = vor.u32 1.1754944e-38, %v1309
    %v1311 = vsel %vm1308, %v1310, %v1306
    %v1312 = vmul.f32 1.0, %v1311
    %v1313 = vtanh.pop %v1273
    %v1314 = vxor.u32 %v1274, 2147483648
    %v1315 = vmul.f32 %v1314, 1.442695
    %v1316 = vpow.pop %v1315
    %v1317 = vadd.f32 %v1316, 1.0
    %v1318 = vrcp.pop %v1317
    %v1319 = vmul.f32 %v1317, %v1318
    %v1320 = vsub.f32 1.0, %v1319
    %v1321 = vmul.f32 %v1318, %v1320
    %v1322 = vadd.f32 %v1318, %v1321
    %vm1323 = vweird.f32 %v1317
    %vm1324 = vweird.f32 %v1318
    %vm1325 = vmor %vm1323, %vm1324
    %v1326 = vsel %vm1325, %v1318, %v1322
    %v1327 = vand.u32 2147483647, %v1317
    %vm1328 = vcmp.eq.f32.partialorder %v1327, 8.507059e+37
    %v1329 = vand.u32 %v1317, 2147483648
    %v1330 = vor.u32 1.1754944e-38, %v1329
    %v1331 = vsel %vm1328, %v1330, %v1326
    %v1332 = vmul.f32 1.0, %v1331
    %v1333 = vmul.f32 %v1312, %v1153
    %v1334 = vmul.f32 %v1297, %v1313
    %v1335 = vadd.f32 %v1333, %v1334
    %v1336 = vtanh.pop %v1335
    %v1337 = vmul.f32 %v1332, %v1336
    %vm1338 = vcmp.le.s32.totalorder %v566, 1
    %vm1339 = vcmp.gt.s32.totalorder %v566, 1
    %v1340 = vsel %vm1339, 1, 0
    %1341 = vrot.lane.b32.xlu0 %v1340, 127
    %v1342 = vpop.permute.xlu0 %1341
    %vm1343 = vcmp.ne.s32.totalorder %v1342, 0
    %vm1344 = vmand %vm1338, %vm1343
    %v1345 = vsel %vm1344, 1, 0
    %1346 = vset.pattern.permute.xlu0 0
    %1347 = vperm.xlu0 %1346, %v1345
    %v1348 = vpop.permute.xlu0 %1347
    %vm1349 = vcmp.eq.s32.totalorder %v1348, 1
    %v1350 = vsel %vm1349, %v1337, %v1152
    %v1351 = vsel %vm1349, %v1335, %v1153
    %v1352 = vsel %vm1349, %v1337, -1e+30
    %v1353 = vmax.f32 %v1155, %v1352
    %s1354 = smul.u32 2, 4
    %s1355 = smul.addr %s1354, 8
    %s1356 = scalar_lea.vmem [#allocation2], %s1355
    %v1357 = vld [vmem:[%s1356] sm:$0xff]
    %v1358 = vld [vmem:[%s1356 + $0x8] sm:$0xff]
    %v1359 = vld [vmem:[%s1356 + $0x10] sm:$0xff]
    %v1360 = vld [vmem:[%s1356 + $0x18] sm:$0xff]
    %v1361 = vmul.f32 %v1350, %v572
    %v1362 = vmul.f32 %v1350, %v573
    %v1363 = vpack.c.bf16 %v1361, %v1361
    %v1364 = vpack.c.bf16 %v1362, %v1362
    %1365 = vmatpush.bf16.msra.mxu0 %v869
    %1366 = vmatpush.bf16.msra.mxu0 %v865
    %1367 = vmatpush.bf16.msra.mxu0 %v861
    %1368 = vmatpush.bf16.msra.mxu0 %v857
    %1369 = vmatpush.bf16.msra.mxu0 %v853
    %1370 = vmatpush.bf16.msra.mxu0 %v849
    %1371 = vmatpush.bf16.msra.mxu0 %v845
    %1372 = vmatpush.bf16.msra.mxu0 %v841
    %1373 = vmatmul.bf16.gmra.mxu0 %v1363
    %v1374 = vpop.f32.mrf.mxu0
    %v1375 = vadd.f32 0.0, %v1374
    %v1376 = vpop.f32.mrf.mxu0
    %1377 = vdwg.mxu0
    %1378 = vmatpush.bf16.msra.mxu0 %v901
    %1379 = vmatpush.bf16.msra.mxu0 %v897
    %1380 = vmatpush.bf16.msra.mxu0 %v893
    %1381 = vmatpush.bf16.msra.mxu0 %v889
    %1382 = vmatpush.bf16.msra.mxu0 %v885
    %1383 = vmatpush.bf16.msra.mxu0 %v881
    %1384 = vmatpush.bf16.msra.mxu0 %v877
    %1385 = vmatpush.bf16.msra.mxu0 %v873
    %1386 = vmatmul.bf16.gmra.mxu0 %v1364
    %v1387 = vpop.f32.mrf.mxu0
    %v1388 = vadd.f32 %v1375, %v1387
    %v1389 = vpop.f32.mrf.mxu0
    %1390 = vdwg.mxu0
    %1391 = vmatpush.bf16.msra.mxu0 %v870
    %1392 = vmatpush.bf16.msra.mxu0 %v866
    %1393 = vmatpush.bf16.msra.mxu0 %v862
    %1394 = vmatpush.bf16.msra.mxu0 %v858
    %1395 = vmatpush.bf16.msra.mxu0 %v854
    %1396 = vmatpush.bf16.msra.mxu0 %v850
    %1397 = vmatpush.bf16.msra.mxu0 %v846
    %1398 = vmatpush.bf16.msra.mxu0 %v842
    %1399 = vmatmul.bf16.gmra.mxu0 %v1363
    %v1400 = vpop.f32.mrf.mxu0
    %v1401 = vadd.f32 0.0, %v1400
    %v1402 = vpop.f32.mrf.mxu0
    %1403 = vdwg.mxu0
    %1404 = vmatpush.bf16.msra.mxu0 %v902
    %1405 = vmatpush.bf16.msra.mxu0 %v898
    %1406 = vmatpush.bf16.msra.mxu0 %v894
    %1407 = vmatpush.bf16.msra.mxu0 %v890
    %1408 = vmatpush.bf16.msra.mxu0 %v886
    %1409 = vmatpush.bf16.msra.mxu0 %v882
    %1410 = vmatpush.bf16.msra.mxu0 %v878
    %1411 = vmatpush.bf16.msra.mxu0 %v874
    %1412 = vmatmul.bf16.gmra.mxu0 %v1364
    %v1413 = vpop.f32.mrf.mxu0
    %v1414 = vadd.f32 %v1401, %v1413
    %v1415 = vpop.f32.mrf.mxu0
    %1416 = vdwg.mxu0
    %1417 = vmatpush.bf16.msra.mxu0 %v871
    %1418 = vmatpush.bf16.msra.mxu0 %v867
    %1419 = vmatpush.bf16.msra.mxu0 %v863
    %1420 = vmatpush.bf16.msra.mxu0 %v859
    %1421 = vmatpush.bf16.msra.mxu0 %v855
    %1422 = vmatpush.bf16.msra.mxu0 %v851
    %1423 = vmatpush.bf16.msra.mxu0 %v847
    %1424 = vmatpush.bf16.msra.mxu0 %v843
    %1425 = vmatmul.bf16.gmra.mxu0 %v1363
    %v1426 = vpop.f32.mrf.mxu0
    %v1427 = vadd.f32 0.0, %v1426
    %v1428 = vpop.f32.mrf.mxu0
    %1429 = vdwg.mxu0
    %1430 = vmatpush.bf16.msra.mxu0 %v903
    %1431 = vmatpush.bf16.msra.mxu0 %v899
    %1432 = vmatpush.bf16.msra.mxu0 %v895
    %1433 = vmatpush.bf16.msra.mxu0 %v891
    %1434 = vmatpush.bf16.msra.mxu0 %v887
    %1435 = vmatpush.bf16.msra.mxu0 %v883
    %1436 = vmatpush.bf16.msra.mxu0 %v879
    %1437 = vmatpush.bf16.msra.mxu0 %v875
    %1438 = vmatmul.bf16.gmra.mxu0 %v1364
    %v1439 = vpop.f32.mrf.mxu0
    %v1440 = vadd.f32 %v1427, %v1439
    %v1441 = vpop.f32.mrf.mxu0
    %1442 = vdwg.mxu0
    %1443 = vmatpush.bf16.msra.mxu0 %v872
    %1444 = vmatpush.bf16.msra.mxu0 %v868
    %1445 = vmatpush.bf16.msra.mxu0 %v864
    %1446 = vmatpush.bf16.msra.mxu0 %v860
    %1447 = vmatpush.bf16.msra.mxu0 %v856
    %1448 = vmatpush.bf16.msra.mxu0 %v852
    %1449 = vmatpush.bf16.msra.mxu0 %v848
    %1450 = vmatpush.bf16.msra.mxu0 %v844
    %1451 = vmatmul.bf16.gmra.mxu0 %v1363
    %v1452 = vpop.f32.mrf.mxu0
    %v1453 = vadd.f32 0.0, %v1452
    %v1454 = vpop.f32.mrf.mxu0
    %1455 = vdwg.mxu0
    %1456 = vmatpush.bf16.msra.mxu0 %v904
    %1457 = vmatpush.bf16.msra.mxu0 %v900
    %1458 = vmatpush.bf16.msra.mxu0 %v896
    %1459 = vmatpush.bf16.msra.mxu0 %v892
    %1460 = vmatpush.bf16.msra.mxu0 %v888
    %1461 = vmatpush.bf16.msra.mxu0 %v884
    %1462 = vmatpush.bf16.msra.mxu0 %v880
    %1463 = vmatpush.bf16.msra.mxu0 %v876
    %1464 = vmatmul.bf16.gmra.mxu0 %v1364
    %v1465 = vpop.f32.mrf.mxu0
    %v1466 = vadd.f32 %v1453, %v1465
    %v1467 = vpop.f32.mrf.mxu0
    %1468 = vdwg.mxu0
    %v1469 = vadd.f32 %v1357, %v1388
    %v1470 = vadd.f32 %v1358, %v1414
    %v1471 = vadd.f32 %v1359, %v1440
    %v1472 = vadd.f32 %v1360, %v1466
    %v1473 = vxor.u32 %v1469, 2147483648
    %v1474 = vxor.u32 %v1470, 2147483648
    %v1475 = vmul.f32 %v1473, 1.442695
    %v1476 = vpow.pop %v1475
    %v1477 = vmul.f32 %v1474, 1.442695
    %v1478 = vpow.pop %v1477
    %v1479 = vadd.f32 %v1476, 1.0
    %v1480 = vadd.f32 %v1478, 1.0
    %v1481 = vrcp.pop %v1479
    %v1482 = vmul.f32 %v1479, %v1481
    %v1483 = vsub.f32 1.0, %v1482
    %v1484 = vmul.f32 %v1481, %v1483
    %v1485 = vadd.f32 %v1481, %v1484
    %vm1486 = vweird.f32 %v1479
    %vm1487 = vweird.f32 %v1481
    %vm1488 = vmor %vm1486, %vm1487
    %v1489 = vsel %vm1488, %v1481, %v1485
    %v1490 = vand.u32 2147483647, %v1479
    %vm1491 = vcmp.eq.f32.partialorder %v1490, 8.507059e+37
    %v1492 = vand.u32 %v1479, 2147483648
    %v1493 = vor.u32 1.1754944e-38, %v1492
    %v1494 = vsel %vm1491, %v1493, %v1489
    %v1495 = vmul.f32 1.0, %v1494
    %v1496 = vrcp.pop %v1480
    %v1497 = vmul.f32 %v1480, %v1496
    %v1498 = vsub.f32 1.0, %v1497
    %v1499 = vmul.f32 %v1496, %v1498
    %v1500 = vadd.f32 %v1496, %v1499
    %vm1501 = vweird.f32 %v1480
    %vm1502 = vweird.f32 %v1496
    %vm1503 = vmor %vm1501, %vm1502
    %v1504 = vsel %vm1503, %v1496, %v1500
    %v1505 = vand.u32 2147483647, %v1480
    %vm1506 = vcmp.eq.f32.partialorder %v1505, 8.507059e+37
    %v1507 = vand.u32 %v1480, 2147483648
    %v1508 = vor.u32 1.1754944e-38, %v1507
    %v1509 = vsel %vm1506, %v1508, %v1504
    %v1510 = vmul.f32 1.0, %v1509
    %v1511 = vtanh.pop %v1471
    %v1512 = vxor.u32 %v1472, 2147483648
    %v1513 = vmul.f32 %v1512, 1.442695
    %v1514 = vpow.pop %v1513
    %v1515 = vadd.f32 %v1514, 1.0
    %v1516 = vrcp.pop %v1515
    %v1517 = vmul.f32 %v1515, %v1516
    %v1518 = vsub.f32 1.0, %v1517
    %v1519 = vmul.f32 %v1516, %v1518
    %v1520 = vadd.f32 %v1516, %v1519
    %vm1521 = vweird.f32 %v1515
    %vm1522 = vweird.f32 %v1516
    %vm1523 = vmor %vm1521, %vm1522
    %v1524 = vsel %vm1523, %v1516, %v1520
    %v1525 = vand.u32 2147483647, %v1515
    %vm1526 = vcmp.eq.f32.partialorder %v1525, 8.507059e+37
    %v1527 = vand.u32 %v1515, 2147483648
    %v1528 = vor.u32 1.1754944e-38, %v1527
    %v1529 = vsel %vm1526, %v1528, %v1524
    %v1530 = vmul.f32 1.0, %v1529
    %v1531 = vmul.f32 %v1510, %v1351
    %v1532 = vmul.f32 %v1495, %v1511
    %v1533 = vadd.f32 %v1531, %v1532
    %v1534 = vtanh.pop %v1533
    %v1535 = vmul.f32 %v1530, %v1534
    %vm1536 = vcmp.le.s32.totalorder %v566, 2
    %vm1537 = vcmp.gt.s32.totalorder %v566, 2
    %v1538 = vsel %vm1537, 1, 0
    %1539 = vrot.lane.b32.xlu0 %v1538, 127
    %v1540 = vpop.permute.xlu0 %1539
    %vm1541 = vcmp.ne.s32.totalorder %v1540, 0
    %vm1542 = vmand %vm1536, %vm1541
    %v1543 = vsel %vm1542, 1, 0
    %1544 = vset.pattern.permute.xlu0 0
    %1545 = vperm.xlu0 %1544, %v1543
    %v1546 = vpop.permute.xlu0 %1545
    %vm1547 = vcmp.eq.s32.totalorder %v1546, 1
    %v1548 = vsel %vm1547, %v1535, %v1350
    %v1549 = vsel %vm1547, %v1533, %v1351
    %v1550 = vsel %vm1547, %v1535, -1e+30
    %v1551 = vmax.f32 %v1353, %v1550
    %s1552 = smul.u32 3, 4
    %s1553 = smul.addr %s1552, 8
    %s1554 = scalar_lea.vmem [#allocation2], %s1553
    %v1555 = vld [vmem:[%s1554] sm:$0xff]
    %v1556 = vld [vmem:[%s1554 + $0x8] sm:$0xff]
    %v1557 = vld [vmem:[%s1554 + $0x10] sm:$0xff]
    %v1558 = vld [vmem:[%s1554 + $0x18] sm:$0xff]
    %v1559 = vmul.f32 %v1548, %v572
    %v1560 = vmul.f32 %v1548, %v573
    %v1561 = vpack.c.bf16 %v1559, %v1559
    %v1562 = vpack.c.bf16 %v1560, %v1560
    %1563 = vmatpush.bf16.msra.mxu0 %v869
    %1564 = vmatpush.bf16.msra.mxu0 %v865
    %1565 = vmatpush.bf16.msra.mxu0 %v861
    %1566 = vmatpush.bf16.msra.mxu0 %v857
    %1567 = vmatpush.bf16.msra.mxu0 %v853
    %1568 = vmatpush.bf16.msra.mxu0 %v849
    %1569 = vmatpush.bf16.msra.mxu0 %v845
    %1570 = vmatpush.bf16.msra.mxu0 %v841
    %1571 = vmatmul.bf16.gmra.mxu0 %v1561
    %v1572 = vpop.f32.mrf.mxu0
    %v1573 = vadd.f32 0.0, %v1572
    %v1574 = vpop.f32.mrf.mxu0
    %1575 = vdwg.mxu0
    %1576 = vmatpush.bf16.msra.mxu0 %v901
    %1577 = vmatpush.bf16.msra.mxu0 %v897
    %1578 = vmatpush.bf16.msra.mxu0 %v893
    %1579 = vmatpush.bf16.msra.mxu0 %v889
    %1580 = vmatpush.bf16.msra.mxu0 %v885
    %1581 = vmatpush.bf16.msra.mxu0 %v881
    %1582 = vmatpush.bf16.msra.mxu0 %v877
    %1583 = vmatpush.bf16.msra.mxu0 %v873
    %1584 = vmatmul.bf16.gmra.mxu0 %v1562
    %v1585 = vpop.f32.mrf.mxu0
    %v1586 = vadd.f32 %v1573, %v1585
    %v1587 = vpop.f32.mrf.mxu0
    %1588 = vdwg.mxu0
    %1589 = vmatpush.bf16.msra.mxu0 %v870
    %1590 = vmatpush.bf16.msra.mxu0 %v866
    %1591 = vmatpush.bf16.msra.mxu0 %v862
    %1592 = vmatpush.bf16.msra.mxu0 %v858
    %1593 = vmatpush.bf16.msra.mxu0 %v854
    %1594 = vmatpush.bf16.msra.mxu0 %v850
    %1595 = vmatpush.bf16.msra.mxu0 %v846
    %1596 = vmatpush.bf16.msra.mxu0 %v842
    %1597 = vmatmul.bf16.gmra.mxu0 %v1561
    %v1598 = vpop.f32.mrf.mxu0
    %v1599 = vadd.f32 0.0, %v1598
    %v1600 = vpop.f32.mrf.mxu0
    %1601 = vdwg.mxu0
    %1602 = vmatpush.bf16.msra.mxu0 %v902
    %1603 = vmatpush.bf16.msra.mxu0 %v898
    %1604 = vmatpush.bf16.msra.mxu0 %v894
    %1605 = vmatpush.bf16.msra.mxu0 %v890
    %1606 = vmatpush.bf16.msra.mxu0 %v886
    %1607 = vmatpush.bf16.msra.mxu0 %v882
    %1608 = vmatpush.bf16.msra.mxu0 %v878
    %1609 = vmatpush.bf16.msra.mxu0 %v874
    %1610 = vmatmul.bf16.gmra.mxu0 %v1562
    %v1611 = vpop.f32.mrf.mxu0
    %v1612 = vadd.f32 %v1599, %v1611
    %v1613 = vpop.f32.mrf.mxu0
    %1614 = vdwg.mxu0
    %1615 = vmatpush.bf16.msra.mxu0 %v871
    %1616 = vmatpush.bf16.msra.mxu0 %v867
    %1617 = vmatpush.bf16.msra.mxu0 %v863
    %1618 = vmatpush.bf16.msra.mxu0 %v859
    %1619 = vmatpush.bf16.msra.mxu0 %v855
    %1620 = vmatpush.bf16.msra.mxu0 %v851
    %1621 = vmatpush.bf16.msra.mxu0 %v847
    %1622 = vmatpush.bf16.msra.mxu0 %v843
    %1623 = vmatmul.bf16.gmra.mxu0 %v1561
    %v1624 = vpop.f32.mrf.mxu0
    %v1625 = vadd.f32 0.0, %v1624
    %v1626 = vpop.f32.mrf.mxu0
    %1627 = vdwg.mxu0
    %1628 = vmatpush.bf16.msra.mxu0 %v903
    %1629 = vmatpush.bf16.msra.mxu0 %v899
    %1630 = vmatpush.bf16.msra.mxu0 %v895
    %1631 = vmatpush.bf16.msra.mxu0 %v891
    %1632 = vmatpush.bf16.msra.mxu0 %v887
    %1633 = vmatpush.bf16.msra.mxu0 %v883
    %1634 = vmatpush.bf16.msra.mxu0 %v879
    %1635 = vmatpush.bf16.msra.mxu0 %v875
    %1636 = vmatmul.bf16.gmra.mxu0 %v1562
    %v1637 = vpop.f32.mrf.mxu0
    %v1638 = vadd.f32 %v1625, %v1637
    %v1639 = vpop.f32.mrf.mxu0
    %1640 = vdwg.mxu0
    %1641 = vmatpush.bf16.msra.mxu0 %v872
    %1642 = vmatpush.bf16.msra.mxu0 %v868
    %1643 = vmatpush.bf16.msra.mxu0 %v864
    %1644 = vmatpush.bf16.msra.mxu0 %v860
    %1645 = vmatpush.bf16.msra.mxu0 %v856
    %1646 = vmatpush.bf16.msra.mxu0 %v852
    %1647 = vmatpush.bf16.msra.mxu0 %v848
    %1648 = vmatpush.bf16.msra.mxu0 %v844
    %1649 = vmatmul.bf16.gmra.mxu0 %v1561
    %v1650 = vpop.f32.mrf.mxu0
    %v1651 = vadd.f32 0.0, %v1650
    %v1652 = vpop.f32.mrf.mxu0
    %1653 = vdwg.mxu0
    %1654 = vmatpush.bf16.msra.mxu0 %v904
    %1655 = vmatpush.bf16.msra.mxu0 %v900
    %1656 = vmatpush.bf16.msra.mxu0 %v896
    %1657 = vmatpush.bf16.msra.mxu0 %v892
    %1658 = vmatpush.bf16.msra.mxu0 %v888
    %1659 = vmatpush.bf16.msra.mxu0 %v884
    %1660 = vmatpush.bf16.msra.mxu0 %v880
    %1661 = vmatpush.bf16.msra.mxu0 %v876
    %1662 = vmatmul.bf16.gmra.mxu0 %v1562
    %v1663 = vpop.f32.mrf.mxu0
    %v1664 = vadd.f32 %v1651, %v1663
    %v1665 = vpop.f32.mrf.mxu0
    %1666 = vdwg.mxu0
    %v1667 = vadd.f32 %v1555, %v1586
    %v1668 = vadd.f32 %v1556, %v1612
    %v1669 = vadd.f32 %v1557, %v1638
    %v1670 = vadd.f32 %v1558, %v1664
    %v1671 = vxor.u32 %v1667, 2147483648
    %v1672 = vxor.u32 %v1668, 2147483648
    %v1673 = vmul.f32 %v1671, 1.442695
    %v1674 = vpow.pop %v1673
    %v1675 = vmul.f32 %v1672, 1.442695
    %v1676 = vpow.pop %v1675
    %v1677 = vadd.f32 %v1674, 1.0
    %v1678 = vadd.f32 %v1676, 1.0
    %v1679 = vrcp.pop %v1677
    %v1680 = vmul.f32 %v1677, %v1679
    %v1681 = vsub.f32 1.0, %v1680
    %v1682 = vmul.f32 %v1679, %v1681
    %v1683 = vadd.f32 %v1679, %v1682
    %vm1684 = vweird.f32 %v1677
    %vm1685 = vweird.f32 %v1679
    %vm1686 = vmor %vm1684, %vm1685
    %v1687 = vsel %vm1686, %v1679, %v1683
    %v1688 = vand.u32 2147483647, %v1677
    %vm1689 = vcmp.eq.f32.partialorder %v1688, 8.507059e+37
    %v1690 = vand.u32 %v1677, 2147483648
    %v1691 = vor.u32 1.1754944e-38, %v1690
    %v1692 = vsel %vm1689, %v1691, %v1687
    %v1693 = vmul.f32 1.0, %v1692
    %v1694 = vrcp.pop %v1678
    %v1695 = vmul.f32 %v1678, %v1694
    %v1696 = vsub.f32 1.0, %v1695
    %v1697 = vmul.f32 %v1694, %v1696
    %v1698 = vadd.f32 %v1694, %v1697
    %vm1699 = vweird.f32 %v1678
    %vm1700 = vweird.f32 %v1694
    %vm1701 = vmor %vm1699, %vm1700
    %v1702 = vsel %vm1701, %v1694, %v1698
    %v1703 = vand.u32 2147483647, %v1678
    %vm1704 = vcmp.eq.f32.partialorder %v1703, 8.507059e+37
    %v1705 = vand.u32 %v1678, 2147483648
    %v1706 = vor.u32 1.1754944e-38, %v1705
    %v1707 = vsel %vm1704, %v1706, %v1702
    %v1708 = vmul.f32 1.0, %v1707
    %v1709 = vtanh.pop %v1669
    %v1710 = vxor.u32 %v1670, 2147483648
    %v1711 = vmul.f32 %v1710, 1.442695
    %v1712 = vpow.pop %v1711
    %v1713 = vadd.f32 %v1712, 1.0
    %v1714 = vrcp.pop %v1713
    %v1715 = vmul.f32 %v1713, %v1714
    %v1716 = vsub.f32 1.0, %v1715
    %v1717 = vmul.f32 %v1714, %v1716
    %v1718 = vadd.f32 %v1714, %v1717
    %vm1719 = vweird.f32 %v1713
    %vm1720 = vweird.f32 %v1714
    %vm1721 = vmor %vm1719, %vm1720
    %v1722 = vsel %vm1721, %v1714, %v1718
    %v1723 = vand.u32 2147483647, %v1713
    %vm1724 = vcmp.eq.f32.partialorder %v1723, 8.507059e+37
    %v1725 = vand.u32 %v1713, 2147483648
    %v1726 = vor.u32 1.1754944e-38, %v1725
    %v1727 = vsel %vm1724, %v1726, %v1722
    %v1728 = vmul.f32 1.0, %v1727
    %v1729 = vmul.f32 %v1708, %v1549
    %v1730 = vmul.f32 %v1693, %v1709
    %v1731 = vadd.f32 %v1729, %v1730
    %v1732 = vtanh.pop %v1731
    %v1733 = vmul.f32 %v1728, %v1732
    %vm1734 = vcmp.le.s32.totalorder %v566, 3
    %vm1735 = vcmp.gt.s32.totalorder %v566, 3
    %v1736 = vsel %vm1735, 1, 0
    %1737 = vrot.lane.b32.xlu0 %v1736, 127
    %v1738 = vpop.permute.xlu0 %1737
    %vm1739 = vcmp.ne.s32.totalorder %v1738, 0
    %vm1740 = vmand %vm1734, %vm1739
    %v1741 = vsel %vm1740, 1, 0
    %1742 = vset.pattern.permute.xlu0 0
    %1743 = vperm.xlu0 %1742, %v1741
    %v1744 = vpop.permute.xlu0 %1743
    %vm1745 = vcmp.eq.s32.totalorder %v1744, 1
    %v1746 = vsel %vm1745, %v1733, %v1548
    %v1747 = vsel %vm1745, %v1731, %v1549
    %v1748 = vsel %vm1745, %v1733, -1e+30
    %v1749 = vmax.f32 %v1551, %v1748
    %s1750 = smul.u32 4, 4
    %s1751 = smul.addr %s1750, 8
    %s1752 = scalar_lea.vmem [#allocation2], %s1751
    %v1753 = vld [vmem:[%s1752] sm:$0xff]
    %v1754 = vld [vmem:[%s1752 + $0x8] sm:$0xff]
    %v1755 = vld [vmem:[%s1752 + $0x10] sm:$0xff]
    %v1756 = vld [vmem:[%s1752 + $0x18] sm:$0xff]
    %v1757 = vmul.f32 %v1746, %v572
    %v1758 = vmul.f32 %v1746, %v573
    %v1759 = vpack.c.bf16 %v1757, %v1757
    %v1760 = vpack.c.bf16 %v1758, %v1758
    %1761 = vmatpush.bf16.msra.mxu0 %v869
    %1762 = vmatpush.bf16.msra.mxu0 %v865
    %1763 = vmatpush.bf16.msra.mxu0 %v861
    %1764 = vmatpush.bf16.msra.mxu0 %v857
    %1765 = vmatpush.bf16.msra.mxu0 %v853
    %1766 = vmatpush.bf16.msra.mxu0 %v849
    %1767 = vmatpush.bf16.msra.mxu0 %v845
    %1768 = vmatpush.bf16.msra.mxu0 %v841
    %1769 = vmatmul.bf16.gmra.mxu0 %v1759
    %v1770 = vpop.f32.mrf.mxu0
    %v1771 = vadd.f32 0.0, %v1770
    %v1772 = vpop.f32.mrf.mxu0
    %1773 = vdwg.mxu0
    %1774 = vmatpush.bf16.msra.mxu0 %v901
    %1775 = vmatpush.bf16.msra.mxu0 %v897
    %1776 = vmatpush.bf16.msra.mxu0 %v893
    %1777 = vmatpush.bf16.msra.mxu0 %v889
    %1778 = vmatpush.bf16.msra.mxu0 %v885
    %1779 = vmatpush.bf16.msra.mxu0 %v881
    %1780 = vmatpush.bf16.msra.mxu0 %v877
    %1781 = vmatpush.bf16.msra.mxu0 %v873
    %1782 = vmatmul.bf16.gmra.mxu0 %v1760
    %v1783 = vpop.f32.mrf.mxu0
    %v1784 = vadd.f32 %v1771, %v1783
    %v1785 = vpop.f32.mrf.mxu0
    %1786 = vdwg.mxu0
    %1787 = vmatpush.bf16.msra.mxu0 %v870
    %1788 = vmatpush.bf16.msra.mxu0 %v866
    %1789 = vmatpush.bf16.msra.mxu0 %v862
    %1790 = vmatpush.bf16.msra.mxu0 %v858
    %1791 = vmatpush.bf16.msra.mxu0 %v854
    %1792 = vmatpush.bf16.msra.mxu0 %v850
    %1793 = vmatpush.bf16.msra.mxu0 %v846
    %1794 = vmatpush.bf16.msra.mxu0 %v842
    %1795 = vmatmul.bf16.gmra.mxu0 %v1759
    %v1796 = vpop.f32.mrf.mxu0
    %v1797 = vadd.f32 0.0, %v1796
    %v1798 = vpop.f32.mrf.mxu0
    %1799 = vdwg.mxu0
    %1800 = vmatpush.bf16.msra.mxu0 %v902
    %1801 = vmatpush.bf16.msra.mxu0 %v898
    %1802 = vmatpush.bf16.msra.mxu0 %v894
    %1803 = vmatpush.bf16.msra.mxu0 %v890
    %1804 = vmatpush.bf16.msra.mxu0 %v886
    %1805 = vmatpush.bf16.msra.mxu0 %v882
    %1806 = vmatpush.bf16.msra.mxu0 %v878
    %1807 = vmatpush.bf16.msra.mxu0 %v874
    %1808 = vmatmul.bf16.gmra.mxu0 %v1760
    %v1809 = vpop.f32.mrf.mxu0
    %v1810 = vadd.f32 %v1797, %v1809
    %v1811 = vpop.f32.mrf.mxu0
    %1812 = vdwg.mxu0
    %1813 = vmatpush.bf16.msra.mxu0 %v871
    %1814 = vmatpush.bf16.msra.mxu0 %v867
    %1815 = vmatpush.bf16.msra.mxu0 %v863
    %1816 = vmatpush.bf16.msra.mxu0 %v859
    %1817 = vmatpush.bf16.msra.mxu0 %v855
    %1818 = vmatpush.bf16.msra.mxu0 %v851
    %1819 = vmatpush.bf16.msra.mxu0 %v847
    %1820 = vmatpush.bf16.msra.mxu0 %v843
    %1821 = vmatmul.bf16.gmra.mxu0 %v1759
    %v1822 = vpop.f32.mrf.mxu0
    %v1823 = vadd.f32 0.0, %v1822
    %v1824 = vpop.f32.mrf.mxu0
    %1825 = vdwg.mxu0
    %1826 = vmatpush.bf16.msra.mxu0 %v903
    %1827 = vmatpush.bf16.msra.mxu0 %v899
    %1828 = vmatpush.bf16.msra.mxu0 %v895
    %1829 = vmatpush.bf16.msra.mxu0 %v891
    %1830 = vmatpush.bf16.msra.mxu0 %v887
    %1831 = vmatpush.bf16.msra.mxu0 %v883
    %1832 = vmatpush.bf16.msra.mxu0 %v879
    %1833 = vmatpush.bf16.msra.mxu0 %v875
    %1834 = vmatmul.bf16.gmra.mxu0 %v1760
    %v1835 = vpop.f32.mrf.mxu0
    %v1836 = vadd.f32 %v1823, %v1835
    %v1837 = vpop.f32.mrf.mxu0
    %1838 = vdwg.mxu0
    %1839 = vmatpush.bf16.msra.mxu0 %v872
    %1840 = vmatpush.bf16.msra.mxu0 %v868
    %1841 = vmatpush.bf16.msra.mxu0 %v864
    %1842 = vmatpush.bf16.msra.mxu0 %v860
    %1843 = vmatpush.bf16.msra.mxu0 %v856
    %1844 = vmatpush.bf16.msra.mxu0 %v852
    %1845 = vmatpush.bf16.msra.mxu0 %v848
    %1846 = vmatpush.bf16.msra.mxu0 %v844
    %1847 = vmatmul.bf16.gmra.mxu0 %v1759
    %v1848 = vpop.f32.mrf.mxu0
    %v1849 = vadd.f32 0.0, %v1848
    %v1850 = vpop.f32.mrf.mxu0
    %1851 = vdwg.mxu0
    %1852 = vmatpush.bf16.msra.mxu0 %v904
    %1853 = vmatpush.bf16.msra.mxu0 %v900
    %1854 = vmatpush.bf16.msra.mxu0 %v896
    %1855 = vmatpush.bf16.msra.mxu0 %v892
    %1856 = vmatpush.bf16.msra.mxu0 %v888
    %1857 = vmatpush.bf16.msra.mxu0 %v884
    %1858 = vmatpush.bf16.msra.mxu0 %v880
    %1859 = vmatpush.bf16.msra.mxu0 %v876
    %1860 = vmatmul.bf16.gmra.mxu0 %v1760
    %v1861 = vpop.f32.mrf.mxu0
    %v1862 = vadd.f32 %v1849, %v1861
    %v1863 = vpop.f32.mrf.mxu0
    %1864 = vdwg.mxu0
    %v1865 = vadd.f32 %v1753, %v1784
    %v1866 = vadd.f32 %v1754, %v1810
    %v1867 = vadd.f32 %v1755, %v1836
    %v1868 = vadd.f32 %v1756, %v1862
    %v1869 = vxor.u32 %v1865, 2147483648
    %v1870 = vxor.u32 %v1866, 2147483648
    %v1871 = vmul.f32 %v1869, 1.442695
    %v1872 = vpow.pop %v1871
    %v1873 = vmul.f32 %v1870, 1.442695
    %v1874 = vpow.pop %v1873
    %v1875 = vadd.f32 %v1872, 1.0
    %v1876 = vadd.f32 %v1874, 1.0
    %v1877 = vrcp.pop %v1875
    %v1878 = vmul.f32 %v1875, %v1877
    %v1879 = vsub.f32 1.0, %v1878
    %v1880 = vmul.f32 %v1877, %v1879
    %v1881 = vadd.f32 %v1877, %v1880
    %vm1882 = vweird.f32 %v1875
    %vm1883 = vweird.f32 %v1877
    %vm1884 = vmor %vm1882, %vm1883
    %v1885 = vsel %vm1884, %v1877, %v1881
    %v1886 = vand.u32 2147483647, %v1875
    %vm1887 = vcmp.eq.f32.partialorder %v1886, 8.507059e+37
    %v1888 = vand.u32 %v1875, 2147483648
    %v1889 = vor.u32 1.1754944e-38, %v1888
    %v1890 = vsel %vm1887, %v1889, %v1885
    %v1891 = vmul.f32 1.0, %v1890
    %v1892 = vrcp.pop %v1876
    %v1893 = vmul.f32 %v1876, %v1892
    %v1894 = vsub.f32 1.0, %v1893
    %v1895 = vmul.f32 %v1892, %v1894
    %v1896 = vadd.f32 %v1892, %v1895
    %vm1897 = vweird.f32 %v1876
    %vm1898 = vweird.f32 %v1892
    %vm1899 = vmor %vm1897, %vm1898
    %v1900 = vsel %vm1899, %v1892, %v1896
    %v1901 = vand.u32 2147483647, %v1876
    %vm1902 = vcmp.eq.f32.partialorder %v1901, 8.507059e+37
    %v1903 = vand.u32 %v1876, 2147483648
    %v1904 = vor.u32 1.1754944e-38, %v1903
    %v1905 = vsel %vm1902, %v1904, %v1900
    %v1906 = vmul.f32 1.0, %v1905
    %v1907 = vtanh.pop %v1867
    %v1908 = vxor.u32 %v1868, 2147483648
    %v1909 = vmul.f32 %v1908, 1.442695
    %v1910 = vpow.pop %v1909
    %v1911 = vadd.f32 %v1910, 1.0
    %v1912 = vrcp.pop %v1911
    %v1913 = vmul.f32 %v1911, %v1912
    %v1914 = vsub.f32 1.0, %v1913
    %v1915 = vmul.f32 %v1912, %v1914
    %v1916 = vadd.f32 %v1912, %v1915
    %vm1917 = vweird.f32 %v1911
    %vm1918 = vweird.f32 %v1912
    %vm1919 = vmor %vm1917, %vm1918
    %v1920 = vsel %vm1919, %v1912, %v1916
    %v1921 = vand.u32 2147483647, %v1911
    %vm1922 = vcmp.eq.f32.partialorder %v1921, 8.507059e+37
    %v1923 = vand.u32 %v1911, 2147483648
    %v1924 = vor.u32 1.1754944e-38, %v1923
    %v1925 = vsel %vm1922, %v1924, %v1920
    %v1926 = vmul.f32 1.0, %v1925
    %v1927 = vmul.f32 %v1906, %v1747
    %v1928 = vmul.f32 %v1891, %v1907
    %v1929 = vadd.f32 %v1927, %v1928
    %v1930 = vtanh.pop %v1929
    %v1931 = vmul.f32 %v1926, %v1930
    %vm1932 = vcmp.le.s32.totalorder %v566, 4
    %vm1933 = vcmp.gt.s32.totalorder %v566, 4
    %v1934 = vsel %vm1933, 1, 0
    %1935 = vrot.lane.b32.xlu0 %v1934, 127
    %v1936 = vpop.permute.xlu0 %1935
    %vm1937 = vcmp.ne.s32.totalorder %v1936, 0
    %vm1938 = vmand %vm1932, %vm1937
    %v1939 = vsel %vm1938, 1, 0
    %1940 = vset.pattern.permute.xlu0 0
    %1941 = vperm.xlu0 %1940, %v1939
    %v1942 = vpop.permute.xlu0 %1941
    %vm1943 = vcmp.eq.s32.totalorder %v1942, 1
    %v1944 = vsel %vm1943, %v1931, %v1746
    %v1945 = vsel %vm1943, %v1929, %v1747
    %v1946 = vsel %vm1943, %v1931, -1e+30
    %v1947 = vmax.f32 %v1749, %v1946
    %s1948 = smul.u32 5, 4
    %s1949 = smul.addr %s1948, 8
    %s1950 = scalar_lea.vmem [#allocation2], %s1949
    %v1951 = vld [vmem:[%s1950] sm:$0xff]
    %v1952 = vld [vmem:[%s1950 + $0x8] sm:$0xff]
    %v1953 = vld [vmem:[%s1950 + $0x10] sm:$0xff]
    %v1954 = vld [vmem:[%s1950 + $0x18] sm:$0xff]
    %v1955 = vmul.f32 %v1944, %v572
    %v1956 = vmul.f32 %v1944, %v573
    %v1957 = vpack.c.bf16 %v1955, %v1955
    %v1958 = vpack.c.bf16 %v1956, %v1956
    %1959 = vmatpush.bf16.msra.mxu0 %v869
    %1960 = vmatpush.bf16.msra.mxu0 %v865
    %1961 = vmatpush.bf16.msra.mxu0 %v861
    %1962 = vmatpush.bf16.msra.mxu0 %v857
    %1963 = vmatpush.bf16.msra.mxu0 %v853
    %1964 = vmatpush.bf16.msra.mxu0 %v849
    %1965 = vmatpush.bf16.msra.mxu0 %v845
    %1966 = vmatpush.bf16.msra.mxu0 %v841
    %1967 = vmatmul.bf16.gmra.mxu0 %v1957
    %v1968 = vpop.f32.mrf.mxu0
    %v1969 = vadd.f32 0.0, %v1968
    %v1970 = vpop.f32.mrf.mxu0
    %1971 = vdwg.mxu0
    %1972 = vmatpush.bf16.msra.mxu0 %v901
    %1973 = vmatpush.bf16.msra.mxu0 %v897
    %1974 = vmatpush.bf16.msra.mxu0 %v893
    %1975 = vmatpush.bf16.msra.mxu0 %v889
    %1976 = vmatpush.bf16.msra.mxu0 %v885
    %1977 = vmatpush.bf16.msra.mxu0 %v881
    %1978 = vmatpush.bf16.msra.mxu0 %v877
    %1979 = vmatpush.bf16.msra.mxu0 %v873
    %1980 = vmatmul.bf16.gmra.mxu0 %v1958
    %v1981 = vpop.f32.mrf.mxu0
    %v1982 = vadd.f32 %v1969, %v1981
    %v1983 = vpop.f32.mrf.mxu0
    %1984 = vdwg.mxu0
    %1985 = vmatpush.bf16.msra.mxu0 %v870
    %1986 = vmatpush.bf16.msra.mxu0 %v866
    %1987 = vmatpush.bf16.msra.mxu0 %v862
    %1988 = vmatpush.bf16.msra.mxu0 %v858
    %1989 = vmatpush.bf16.msra.mxu0 %v854
    %1990 = vmatpush.bf16.msra.mxu0 %v850
    %1991 = vmatpush.bf16.msra.mxu0 %v846
    %1992 = vmatpush.bf16.msra.mxu0 %v842
    %1993 = vmatmul.bf16.gmra.mxu0 %v1957
    %v1994 = vpop.f32.mrf.mxu0
    %v1995 = vadd.f32 0.0, %v1994
    %v1996 = vpop.f32.mrf.mxu0
    %1997 = vdwg.mxu0
    %1998 = vmatpush.bf16.msra.mxu0 %v902
    %1999 = vmatpush.bf16.msra.mxu0 %v898
    %2000 = vmatpush.bf16.msra.mxu0 %v894
    %2001 = vmatpush.bf16.msra.mxu0 %v890
    %2002 = vmatpush.bf16.msra.mxu0 %v886
    %2003 = vmatpush.bf16.msra.mxu0 %v882
    %2004 = vmatpush.bf16.msra.mxu0 %v878
    %2005 = vmatpush.bf16.msra.mxu0 %v874
    %2006 = vmatmul.bf16.gmra.mxu0 %v1958
    %v2007 = vpop.f32.mrf.mxu0
    %v2008 = vadd.f32 %v1995, %v2007
    %v2009 = vpop.f32.mrf.mxu0
    %2010 = vdwg.mxu0
    %2011 = vmatpush.bf16.msra.mxu0 %v871
    %2012 = vmatpush.bf16.msra.mxu0 %v867
    %2013 = vmatpush.bf16.msra.mxu0 %v863
    %2014 = vmatpush.bf16.msra.mxu0 %v859
    %2015 = vmatpush.bf16.msra.mxu0 %v855
    %2016 = vmatpush.bf16.msra.mxu0 %v851
    %2017 = vmatpush.bf16.msra.mxu0 %v847
    %2018 = vmatpush.bf16.msra.mxu0 %v843
    %2019 = vmatmul.bf16.gmra.mxu0 %v1957
    %v2020 = vpop.f32.mrf.mxu0
    %v2021 = vadd.f32 0.0, %v2020
    %v2022 = vpop.f32.mrf.mxu0
    %2023 = vdwg.mxu0
    %2024 = vmatpush.bf16.msra.mxu0 %v903
    %2025 = vmatpush.bf16.msra.mxu0 %v899
    %2026 = vmatpush.bf16.msra.mxu0 %v895
    %2027 = vmatpush.bf16.msra.mxu0 %v891
    %2028 = vmatpush.bf16.msra.mxu0 %v887
    %2029 = vmatpush.bf16.msra.mxu0 %v883
    %2030 = vmatpush.bf16.msra.mxu0 %v879
    %2031 = vmatpush.bf16.msra.mxu0 %v875
    %2032 = vmatmul.bf16.gmra.mxu0 %v1958
    %v2033 = vpop.f32.mrf.mxu0
    %v2034 = vadd.f32 %v2021, %v2033
    %v2035 = vpop.f32.mrf.mxu0
    %2036 = vdwg.mxu0
    %2037 = vmatpush.bf16.msra.mxu0 %v872
    %2038 = vmatpush.bf16.msra.mxu0 %v868
    %2039 = vmatpush.bf16.msra.mxu0 %v864
    %2040 = vmatpush.bf16.msra.mxu0 %v860
    %2041 = vmatpush.bf16.msra.mxu0 %v856
    %2042 = vmatpush.bf16.msra.mxu0 %v852
    %2043 = vmatpush.bf16.msra.mxu0 %v848
    %2044 = vmatpush.bf16.msra.mxu0 %v844
    %2045 = vmatmul.bf16.gmra.mxu0 %v1957
    %v2046 = vpop.f32.mrf.mxu0
    %v2047 = vadd.f32 0.0, %v2046
    %v2048 = vpop.f32.mrf.mxu0
    %2049 = vdwg.mxu0
    %2050 = vmatpush.bf16.msra.mxu0 %v904
    %2051 = vmatpush.bf16.msra.mxu0 %v900
    %2052 = vmatpush.bf16.msra.mxu0 %v896
    %2053 = vmatpush.bf16.msra.mxu0 %v892
    %2054 = vmatpush.bf16.msra.mxu0 %v888
    %2055 = vmatpush.bf16.msra.mxu0 %v884
    %2056 = vmatpush.bf16.msra.mxu0 %v880
    %2057 = vmatpush.bf16.msra.mxu0 %v876
    %2058 = vmatmul.bf16.gmra.mxu0 %v1958
    %v2059 = vpop.f32.mrf.mxu0
    %v2060 = vadd.f32 %v2047, %v2059
    %v2061 = vpop.f32.mrf.mxu0
    %2062 = vdwg.mxu0
    %v2063 = vadd.f32 %v1951, %v1982
    %v2064 = vadd.f32 %v1952, %v2008
    %v2065 = vadd.f32 %v1953, %v2034
    %v2066 = vadd.f32 %v1954, %v2060
    %v2067 = vxor.u32 %v2063, 2147483648
    %v2068 = vxor.u32 %v2064, 2147483648
    %v2069 = vmul.f32 %v2067, 1.442695
    %v2070 = vpow.pop %v2069
    %v2071 = vmul.f32 %v2068, 1.442695
    %v2072 = vpow.pop %v2071
    %v2073 = vadd.f32 %v2070, 1.0
    %v2074 = vadd.f32 %v2072, 1.0
    %v2075 = vrcp.pop %v2073
    %v2076 = vmul.f32 %v2073, %v2075
    %v2077 = vsub.f32 1.0, %v2076
    %v2078 = vmul.f32 %v2075, %v2077
    %v2079 = vadd.f32 %v2075, %v2078
    %vm2080 = vweird.f32 %v2073
    %vm2081 = vweird.f32 %v2075
    %vm2082 = vmor %vm2080, %vm2081
    %v2083 = vsel %vm2082, %v2075, %v2079
    %v2084 = vand.u32 2147483647, %v2073
    %vm2085 = vcmp.eq.f32.partialorder %v2084, 8.507059e+37
    %v2086 = vand.u32 %v2073, 2147483648
    %v2087 = vor.u32 1.1754944e-38, %v2086
    %v2088 = vsel %vm2085, %v2087, %v2083
    %v2089 = vmul.f32 1.0, %v2088
    %v2090 = vrcp.pop %v2074
    %v2091 = vmul.f32 %v2074, %v2090
    %v2092 = vsub.f32 1.0, %v2091
    %v2093 = vmul.f32 %v2090, %v2092
    %v2094 = vadd.f32 %v2090, %v2093
    %vm2095 = vweird.f32 %v2074
    %vm2096 = vweird.f32 %v2090
    %vm2097 = vmor %vm2095, %vm2096
    %v2098 = vsel %vm2097, %v2090, %v2094
    %v2099 = vand.u32 2147483647, %v2074
    %vm2100 = vcmp.eq.f32.partialorder %v2099, 8.507059e+37
    %v2101 = vand.u32 %v2074, 2147483648
    %v2102 = vor.u32 1.1754944e-38, %v2101
    %v2103 = vsel %vm2100, %v2102, %v2098
    %v2104 = vmul.f32 1.0, %v2103
    %v2105 = vtanh.pop %v2065
    %v2106 = vxor.u32 %v2066, 2147483648
    %v2107 = vmul.f32 %v2106, 1.442695
    %v2108 = vpow.pop %v2107
    %v2109 = vadd.f32 %v2108, 1.0
    %v2110 = vrcp.pop %v2109
    %v2111 = vmul.f32 %v2109, %v2110
    %v2112 = vsub.f32 1.0, %v2111
    %v2113 = vmul.f32 %v2110, %v2112
    %v2114 = vadd.f32 %v2110, %v2113
    %vm2115 = vweird.f32 %v2109
    %vm2116 = vweird.f32 %v2110
    %vm2117 = vmor %vm2115, %vm2116
    %v2118 = vsel %vm2117, %v2110, %v2114
    %v2119 = vand.u32 2147483647, %v2109
    %vm2120 = vcmp.eq.f32.partialorder %v2119, 8.507059e+37
    %v2121 = vand.u32 %v2109, 2147483648
    %v2122 = vor.u32 1.1754944e-38, %v2121
    %v2123 = vsel %vm2120, %v2122, %v2118
    %v2124 = vmul.f32 1.0, %v2123
    %v2125 = vmul.f32 %v2104, %v1945
    %v2126 = vmul.f32 %v2089, %v2105
    %v2127 = vadd.f32 %v2125, %v2126
    %v2128 = vtanh.pop %v2127
    %v2129 = vmul.f32 %v2124, %v2128
    %vm2130 = vcmp.le.s32.totalorder %v566, 5
    %vm2131 = vcmp.gt.s32.totalorder %v566, 5
    %v2132 = vsel %vm2131, 1, 0
    %2133 = vrot.lane.b32.xlu0 %v2132, 127
    %v2134 = vpop.permute.xlu0 %2133
    %vm2135 = vcmp.ne.s32.totalorder %v2134, 0
    %vm2136 = vmand %vm2130, %vm2135
    %v2137 = vsel %vm2136, 1, 0
    %2138 = vset.pattern.permute.xlu0 0
    %2139 = vperm.xlu0 %2138, %v2137
    %v2140 = vpop.permute.xlu0 %2139
    %vm2141 = vcmp.eq.s32.totalorder %v2140, 1
    %v2142 = vsel %vm2141, %v2129, %v1944
    %v2143 = vsel %vm2141, %v2127, %v1945
    %v2144 = vsel %vm2141, %v2129, -1e+30
    %v2145 = vmax.f32 %v1947, %v2144
    %s2146 = smul.u32 6, 4
    %s2147 = smul.addr %s2146, 8
    %s2148 = scalar_lea.vmem [#allocation2], %s2147
    %v2149 = vld [vmem:[%s2148] sm:$0xff]
    %v2150 = vld [vmem:[%s2148 + $0x8] sm:$0xff]
    %v2151 = vld [vmem:[%s2148 + $0x10] sm:$0xff]
    %v2152 = vld [vmem:[%s2148 + $0x18] sm:$0xff]
    %v2153 = vmul.f32 %v2142, %v572
    %v2154 = vmul.f32 %v2142, %v573
    %v2155 = vpack.c.bf16 %v2153, %v2153
    %v2156 = vpack.c.bf16 %v2154, %v2154
    %2157 = vmatpush.bf16.msra.mxu0 %v869
    %2158 = vmatpush.bf16.msra.mxu0 %v865
    %2159 = vmatpush.bf16.msra.mxu0 %v861
    %2160 = vmatpush.bf16.msra.mxu0 %v857
    %2161 = vmatpush.bf16.msra.mxu0 %v853
    %2162 = vmatpush.bf16.msra.mxu0 %v849
    %2163 = vmatpush.bf16.msra.mxu0 %v845
    %2164 = vmatpush.bf16.msra.mxu0 %v841
    %2165 = vmatmul.bf16.gmra.mxu0 %v2155
    %v2166 = vpop.f32.mrf.mxu0
    %v2167 = vadd.f32 0.0, %v2166
    %v2168 = vpop.f32.mrf.mxu0
    %2169 = vdwg.mxu0
    %2170 = vmatpush.bf16.msra.mxu0 %v901
    %2171 = vmatpush.bf16.msra.mxu0 %v897
    %2172 = vmatpush.bf16.msra.mxu0 %v893
    %2173 = vmatpush.bf16.msra.mxu0 %v889
    %2174 = vmatpush.bf16.msra.mxu0 %v885
    %2175 = vmatpush.bf16.msra.mxu0 %v881
    %2176 = vmatpush.bf16.msra.mxu0 %v877
    %2177 = vmatpush.bf16.msra.mxu0 %v873
    %2178 = vmatmul.bf16.gmra.mxu0 %v2156
    %v2179 = vpop.f32.mrf.mxu0
    %v2180 = vadd.f32 %v2167, %v2179
    %v2181 = vpop.f32.mrf.mxu0
    %2182 = vdwg.mxu0
    %2183 = vmatpush.bf16.msra.mxu0 %v870
    %2184 = vmatpush.bf16.msra.mxu0 %v866
    %2185 = vmatpush.bf16.msra.mxu0 %v862
    %2186 = vmatpush.bf16.msra.mxu0 %v858
    %2187 = vmatpush.bf16.msra.mxu0 %v854
    %2188 = vmatpush.bf16.msra.mxu0 %v850
    %2189 = vmatpush.bf16.msra.mxu0 %v846
    %2190 = vmatpush.bf16.msra.mxu0 %v842
    %2191 = vmatmul.bf16.gmra.mxu0 %v2155
    %v2192 = vpop.f32.mrf.mxu0
    %v2193 = vadd.f32 0.0, %v2192
    %v2194 = vpop.f32.mrf.mxu0
    %2195 = vdwg.mxu0
    %2196 = vmatpush.bf16.msra.mxu0 %v902
    %2197 = vmatpush.bf16.msra.mxu0 %v898
    %2198 = vmatpush.bf16.msra.mxu0 %v894
    %2199 = vmatpush.bf16.msra.mxu0 %v890
    %2200 = vmatpush.bf16.msra.mxu0 %v886
    %2201 = vmatpush.bf16.msra.mxu0 %v882
    %2202 = vmatpush.bf16.msra.mxu0 %v878
    %2203 = vmatpush.bf16.msra.mxu0 %v874
    %2204 = vmatmul.bf16.gmra.mxu0 %v2156
    %v2205 = vpop.f32.mrf.mxu0
    %v2206 = vadd.f32 %v2193, %v2205
    %v2207 = vpop.f32.mrf.mxu0
    %2208 = vdwg.mxu0
    %2209 = vmatpush.bf16.msra.mxu0 %v871
    %2210 = vmatpush.bf16.msra.mxu0 %v867
    %2211 = vmatpush.bf16.msra.mxu0 %v863
    %2212 = vmatpush.bf16.msra.mxu0 %v859
    %2213 = vmatpush.bf16.msra.mxu0 %v855
    %2214 = vmatpush.bf16.msra.mxu0 %v851
    %2215 = vmatpush.bf16.msra.mxu0 %v847
    %2216 = vmatpush.bf16.msra.mxu0 %v843
    %2217 = vmatmul.bf16.gmra.mxu0 %v2155
    %v2218 = vpop.f32.mrf.mxu0
    %v2219 = vadd.f32 0.0, %v2218
    %v2220 = vpop.f32.mrf.mxu0
    %2221 = vdwg.mxu0
    %2222 = vmatpush.bf16.msra.mxu0 %v903
    %2223 = vmatpush.bf16.msra.mxu0 %v899
    %2224 = vmatpush.bf16.msra.mxu0 %v895
    %2225 = vmatpush.bf16.msra.mxu0 %v891
    %2226 = vmatpush.bf16.msra.mxu0 %v887
    %2227 = vmatpush.bf16.msra.mxu0 %v883
    %2228 = vmatpush.bf16.msra.mxu0 %v879
    %2229 = vmatpush.bf16.msra.mxu0 %v875
    %2230 = vmatmul.bf16.gmra.mxu0 %v2156
    %v2231 = vpop.f32.mrf.mxu0
    %v2232 = vadd.f32 %v2219, %v2231
    %v2233 = vpop.f32.mrf.mxu0
    %2234 = vdwg.mxu0
    %2235 = vmatpush.bf16.msra.mxu0 %v872
    %2236 = vmatpush.bf16.msra.mxu0 %v868
    %2237 = vmatpush.bf16.msra.mxu0 %v864
    %2238 = vmatpush.bf16.msra.mxu0 %v860
    %2239 = vmatpush.bf16.msra.mxu0 %v856
    %2240 = vmatpush.bf16.msra.mxu0 %v852
    %2241 = vmatpush.bf16.msra.mxu0 %v848
    %2242 = vmatpush.bf16.msra.mxu0 %v844
    %2243 = vmatmul.bf16.gmra.mxu0 %v2155
    %v2244 = vpop.f32.mrf.mxu0
    %v2245 = vadd.f32 0.0, %v2244
    %v2246 = vpop.f32.mrf.mxu0
    %2247 = vdwg.mxu0
    %2248 = vmatpush.bf16.msra.mxu0 %v904
    %2249 = vmatpush.bf16.msra.mxu0 %v900
    %2250 = vmatpush.bf16.msra.mxu0 %v896
    %2251 = vmatpush.bf16.msra.mxu0 %v892
    %2252 = vmatpush.bf16.msra.mxu0 %v888
    %2253 = vmatpush.bf16.msra.mxu0 %v884
    %2254 = vmatpush.bf16.msra.mxu0 %v880
    %2255 = vmatpush.bf16.msra.mxu0 %v876
    %2256 = vmatmul.bf16.gmra.mxu0 %v2156
    %v2257 = vpop.f32.mrf.mxu0
    %v2258 = vadd.f32 %v2245, %v2257
    %v2259 = vpop.f32.mrf.mxu0
    %2260 = vdwg.mxu0
    %v2261 = vadd.f32 %v2149, %v2180
    %v2262 = vadd.f32 %v2150, %v2206
    %v2263 = vadd.f32 %v2151, %v2232
    %v2264 = vadd.f32 %v2152, %v2258
    %v2265 = vxor.u32 %v2261, 2147483648
    %v2266 = vxor.u32 %v2262, 2147483648
    %v2267 = vmul.f32 %v2265, 1.442695
    %v2268 = vpow.pop %v2267
    %v2269 = vmul.f32 %v2266, 1.442695
    %v2270 = vpow.pop %v2269
    %v2271 = vadd.f32 %v2268, 1.0
    %v2272 = vadd.f32 %v2270, 1.0
    %v2273 = vrcp.pop %v2271
    %v2274 = vmul.f32 %v2271, %v2273
    %v2275 = vsub.f32 1.0, %v2274
    %v2276 = vmul.f32 %v2273, %v2275
    %v2277 = vadd.f32 %v2273, %v2276
    %vm2278 = vweird.f32 %v2271
    %vm2279 = vweird.f32 %v2273
    %vm2280 = vmor %vm2278, %vm2279
    %v2281 = vsel %vm2280, %v2273, %v2277
    %v2282 = vand.u32 2147483647, %v2271
    %vm2283 = vcmp.eq.f32.partialorder %v2282, 8.507059e+37
    %v2284 = vand.u32 %v2271, 2147483648
    %v2285 = vor.u32 1.1754944e-38, %v2284
    %v2286 = vsel %vm2283, %v2285, %v2281
    %v2287 = vmul.f32 1.0, %v2286
    %v2288 = vrcp.pop %v2272
    %v2289 = vmul.f32 %v2272, %v2288
    %v2290 = vsub.f32 1.0, %v2289
    %v2291 = vmul.f32 %v2288, %v2290
    %v2292 = vadd.f32 %v2288, %v2291
    %vm2293 = vweird.f32 %v2272
    %vm2294 = vweird.f32 %v2288
    %vm2295 = vmor %vm2293, %vm2294
    %v2296 = vsel %vm2295, %v2288, %v2292
    %v2297 = vand.u32 2147483647, %v2272
    %vm2298 = vcmp.eq.f32.partialorder %v2297, 8.507059e+37
    %v2299 = vand.u32 %v2272, 2147483648
    %v2300 = vor.u32 1.1754944e-38, %v2299
    %v2301 = vsel %vm2298, %v2300, %v2296
    %v2302 = vmul.f32 1.0, %v2301
    %v2303 = vtanh.pop %v2263
    %v2304 = vxor.u32 %v2264, 2147483648
    %v2305 = vmul.f32 %v2304, 1.442695
    %v2306 = vpow.pop %v2305
    %v2307 = vadd.f32 %v2306, 1.0
    %v2308 = vrcp.pop %v2307
    %v2309 = vmul.f32 %v2307, %v2308
    %v2310 = vsub.f32 1.0, %v2309
    %v2311 = vmul.f32 %v2308, %v2310
    %v2312 = vadd.f32 %v2308, %v2311
    %vm2313 = vweird.f32 %v2307
    %vm2314 = vweird.f32 %v2308
    %vm2315 = vmor %vm2313, %vm2314
    %v2316 = vsel %vm2315, %v2308, %v2312
    %v2317 = vand.u32 2147483647, %v2307
    %vm2318 = vcmp.eq.f32.partialorder %v2317, 8.507059e+37
    %v2319 = vand.u32 %v2307, 2147483648
    %v2320 = vor.u32 1.1754944e-38, %v2319
    %v2321 = vsel %vm2318, %v2320, %v2316
    %v2322 = vmul.f32 1.0, %v2321
    %v2323 = vmul.f32 %v2302, %v2143
    %v2324 = vmul.f32 %v2287, %v2303
    %v2325 = vadd.f32 %v2323, %v2324
    %v2326 = vtanh.pop %v2325
    %v2327 = vmul.f32 %v2322, %v2326
    %vm2328 = vcmp.le.s32.totalorder %v566, 6
    %vm2329 = vcmp.gt.s32.totalorder %v566, 6
    %v2330 = vsel %vm2329, 1, 0
    %2331 = vrot.lane.b32.xlu0 %v2330, 127
    %v2332 = vpop.permute.xlu0 %2331
    %vm2333 = vcmp.ne.s32.totalorder %v2332, 0
    %vm2334 = vmand %vm2328, %vm2333
    %v2335 = vsel %vm2334, 1, 0
    %2336 = vset.pattern.permute.xlu0 0
    %2337 = vperm.xlu0 %2336, %v2335
    %v2338 = vpop.permute.xlu0 %2337
    %vm2339 = vcmp.eq.s32.totalorder %v2338, 1
    %v2340 = vsel %vm2339, %v2327, %v2142
    %v2341 = vsel %vm2339, %v2325, %v2143
    %v2342 = vsel %vm2339, %v2327, -1e+30
    %v2343 = vmax.f32 %v2145, %v2342
    %s2344 = smul.u32 7, 4
    %s2345 = smul.addr %s2344, 8
    %s2346 = scalar_lea.vmem [#allocation2], %s2345
    %v2347 = vld [vmem:[%s2346] sm:$0xff]
    %v2348 = vld [vmem:[%s2346 + $0x8] sm:$0xff]
    %v2349 = vld [vmem:[%s2346 + $0x10] sm:$0xff]
    %v2350 = vld [vmem:[%s2346 + $0x18] sm:$0xff]
    %v2351 = vmul.f32 %v2340, %v572
    %v2352 = vmul.f32 %v2340, %v573
    %v2353 = vpack.c.bf16 %v2351, %v2351
    %v2354 = vpack.c.bf16 %v2352, %v2352
    %2355 = vmatpush.bf16.msra.mxu0 %v869
    %2356 = vmatpush.bf16.msra.mxu0 %v865
    %2357 = vmatpush.bf16.msra.mxu0 %v861
    %2358 = vmatpush.bf16.msra.mxu0 %v857
    %2359 = vmatpush.bf16.msra.mxu0 %v853
    %2360 = vmatpush.bf16.msra.mxu0 %v849
    %2361 = vmatpush.bf16.msra.mxu0 %v845
    %2362 = vmatpush.bf16.msra.mxu0 %v841
    %2363 = vmatmul.bf16.gmra.mxu0 %v2353
    %v2364 = vpop.f32.mrf.mxu0
    %v2365 = vadd.f32 0.0, %v2364
    %v2366 = vpop.f32.mrf.mxu0
    %2367 = vdwg.mxu0
    %2368 = vmatpush.bf16.msra.mxu0 %v901
    %2369 = vmatpush.bf16.msra.mxu0 %v897
    %2370 = vmatpush.bf16.msra.mxu0 %v893
    %2371 = vmatpush.bf16.msra.mxu0 %v889
    %2372 = vmatpush.bf16.msra.mxu0 %v885
    %2373 = vmatpush.bf16.msra.mxu0 %v881
    %2374 = vmatpush.bf16.msra.mxu0 %v877
    %2375 = vmatpush.bf16.msra.mxu0 %v873
    %2376 = vmatmul.bf16.gmra.mxu0 %v2354
    %v2377 = vpop.f32.mrf.mxu0
    %v2378 = vadd.f32 %v2365, %v2377
    %v2379 = vpop.f32.mrf.mxu0
    %2380 = vdwg.mxu0
    %2381 = vmatpush.bf16.msra.mxu0 %v870
    %2382 = vmatpush.bf16.msra.mxu0 %v866
    %2383 = vmatpush.bf16.msra.mxu0 %v862
    %2384 = vmatpush.bf16.msra.mxu0 %v858
    %2385 = vmatpush.bf16.msra.mxu0 %v854
    %2386 = vmatpush.bf16.msra.mxu0 %v850
    %2387 = vmatpush.bf16.msra.mxu0 %v846
    %2388 = vmatpush.bf16.msra.mxu0 %v842
    %2389 = vmatmul.bf16.gmra.mxu0 %v2353
    %v2390 = vpop.f32.mrf.mxu0
    %v2391 = vadd.f32 0.0, %v2390
    %v2392 = vpop.f32.mrf.mxu0
    %2393 = vdwg.mxu0
    %2394 = vmatpush.bf16.msra.mxu0 %v902
    %2395 = vmatpush.bf16.msra.mxu0 %v898
    %2396 = vmatpush.bf16.msra.mxu0 %v894
    %2397 = vmatpush.bf16.msra.mxu0 %v890
    %2398 = vmatpush.bf16.msra.mxu0 %v886
    %2399 = vmatpush.bf16.msra.mxu0 %v882
    %2400 = vmatpush.bf16.msra.mxu0 %v878
    %2401 = vmatpush.bf16.msra.mxu0 %v874
    %2402 = vmatmul.bf16.gmra.mxu0 %v2354
    %v2403 = vpop.f32.mrf.mxu0
    %v2404 = vadd.f32 %v2391, %v2403
    %v2405 = vpop.f32.mrf.mxu0
    %2406 = vdwg.mxu0
    %2407 = vmatpush.bf16.msra.mxu0 %v871
    %2408 = vmatpush.bf16.msra.mxu0 %v867
    %2409 = vmatpush.bf16.msra.mxu0 %v863
    %2410 = vmatpush.bf16.msra.mxu0 %v859
    %2411 = vmatpush.bf16.msra.mxu0 %v855
    %2412 = vmatpush.bf16.msra.mxu0 %v851
    %2413 = vmatpush.bf16.msra.mxu0 %v847
    %2414 = vmatpush.bf16.msra.mxu0 %v843
    %2415 = vmatmul.bf16.gmra.mxu0 %v2353
    %v2416 = vpop.f32.mrf.mxu0
    %v2417 = vadd.f32 0.0, %v2416
    %v2418 = vpop.f32.mrf.mxu0
    %2419 = vdwg.mxu0
    %2420 = vmatpush.bf16.msra.mxu0 %v903
    %2421 = vmatpush.bf16.msra.mxu0 %v899
    %2422 = vmatpush.bf16.msra.mxu0 %v895
    %2423 = vmatpush.bf16.msra.mxu0 %v891
    %2424 = vmatpush.bf16.msra.mxu0 %v887
    %2425 = vmatpush.bf16.msra.mxu0 %v883
    %2426 = vmatpush.bf16.msra.mxu0 %v879
    %2427 = vmatpush.bf16.msra.mxu0 %v875
    %2428 = vmatmul.bf16.gmra.mxu0 %v2354
    %v2429 = vpop.f32.mrf.mxu0
    %v2430 = vadd.f32 %v2417, %v2429
    %v2431 = vpop.f32.mrf.mxu0
    %2432 = vdwg.mxu0
    %2433 = vmatpush.bf16.msra.mxu0 %v872
    %2434 = vmatpush.bf16.msra.mxu0 %v868
    %2435 = vmatpush.bf16.msra.mxu0 %v864
    %2436 = vmatpush.bf16.msra.mxu0 %v860
    %2437 = vmatpush.bf16.msra.mxu0 %v856
    %2438 = vmatpush.bf16.msra.mxu0 %v852
    %2439 = vmatpush.bf16.msra.mxu0 %v848
    %2440 = vmatpush.bf16.msra.mxu0 %v844
    %2441 = vmatmul.bf16.gmra.mxu0 %v2353
    %v2442 = vpop.f32.mrf.mxu0
    %v2443 = vadd.f32 0.0, %v2442
    %v2444 = vpop.f32.mrf.mxu0
    %2445 = vdwg.mxu0
    %2446 = vmatpush.bf16.msra.mxu0 %v904
    %2447 = vmatpush.bf16.msra.mxu0 %v900
    %2448 = vmatpush.bf16.msra.mxu0 %v896
    %2449 = vmatpush.bf16.msra.mxu0 %v892
    %2450 = vmatpush.bf16.msra.mxu0 %v888
    %2451 = vmatpush.bf16.msra.mxu0 %v884
    %2452 = vmatpush.bf16.msra.mxu0 %v880
    %2453 = vmatpush.bf16.msra.mxu0 %v876
    %2454 = vmatmul.bf16.gmra.mxu0 %v2354
    %v2455 = vpop.f32.mrf.mxu0
    %v2456 = vadd.f32 %v2443, %v2455
    %v2457 = vpop.f32.mrf.mxu0
    %2458 = vdwg.mxu0
    %v2459 = vadd.f32 %v2347, %v2378
    %v2460 = vadd.f32 %v2348, %v2404
    %v2461 = vadd.f32 %v2349, %v2430
    %v2462 = vadd.f32 %v2350, %v2456
    %v2463 = vxor.u32 %v2459, 2147483648
    %v2464 = vxor.u32 %v2460, 2147483648
    %v2465 = vmul.f32 %v2463, 1.442695
    %v2466 = vpow.pop %v2465
    %v2467 = vmul.f32 %v2464, 1.442695
    %v2468 = vpow.pop %v2467
    %v2469 = vadd.f32 %v2466, 1.0
    %v2470 = vadd.f32 %v2468, 1.0
    %v2471 = vrcp.pop %v2469
    %v2472 = vmul.f32 %v2469, %v2471
    %v2473 = vsub.f32 1.0, %v2472
    %v2474 = vmul.f32 %v2471, %v2473
    %v2475 = vadd.f32 %v2471, %v2474
    %vm2476 = vweird.f32 %v2469
    %vm2477 = vweird.f32 %v2471
    %vm2478 = vmor %vm2476, %vm2477
    %v2479 = vsel %vm2478, %v2471, %v2475
    %v2480 = vand.u32 2147483647, %v2469
    %vm2481 = vcmp.eq.f32.partialorder %v2480, 8.507059e+37
    %v2482 = vand.u32 %v2469, 2147483648
    %v2483 = vor.u32 1.1754944e-38, %v2482
    %v2484 = vsel %vm2481, %v2483, %v2479
    %v2485 = vmul.f32 1.0, %v2484
    %v2486 = vrcp.pop %v2470
    %v2487 = vmul.f32 %v2470, %v2486
    %v2488 = vsub.f32 1.0, %v2487
    %v2489 = vmul.f32 %v2486, %v2488
    %v2490 = vadd.f32 %v2486, %v2489
    %vm2491 = vweird.f32 %v2470
    %vm2492 = vweird.f32 %v2486
    %vm2493 = vmor %vm2491, %vm2492
    %v2494 = vsel %vm2493, %v2486, %v2490
    %v2495 = vand.u32 2147483647, %v2470
    %vm2496 = vcmp.eq.f32.partialorder %v2495, 8.507059e+37
    %v2497 = vand.u32 %v2470, 2147483648
    %v2498 = vor.u32 1.1754944e-38, %v2497
    %v2499 = vsel %vm2496, %v2498, %v2494
    %v2500 = vmul.f32 1.0, %v2499
    %v2501 = vtanh.pop %v2461
    %v2502 = vxor.u32 %v2462, 2147483648
    %v2503 = vmul.f32 %v2502, 1.442695
    %v2504 = vpow.pop %v2503
    %v2505 = vadd.f32 %v2504, 1.0
    %v2506 = vrcp.pop %v2505
    %v2507 = vmul.f32 %v2505, %v2506
    %v2508 = vsub.f32 1.0, %v2507
    %v2509 = vmul.f32 %v2506, %v2508
    %v2510 = vadd.f32 %v2506, %v2509
    %vm2511 = vweird.f32 %v2505
    %vm2512 = vweird.f32 %v2506
    %vm2513 = vmor %vm2511, %vm2512
    %v2514 = vsel %vm2513, %v2506, %v2510
    %v2515 = vand.u32 2147483647, %v2505
    %vm2516 = vcmp.eq.f32.partialorder %v2515, 8.507059e+37
    %v2517 = vand.u32 %v2505, 2147483648
    %v2518 = vor.u32 1.1754944e-38, %v2517
    %v2519 = vsel %vm2516, %v2518, %v2514
    %v2520 = vmul.f32 1.0, %v2519
    %v2521 = vmul.f32 %v2500, %v2341
    %v2522 = vmul.f32 %v2485, %v2501
    %v2523 = vadd.f32 %v2521, %v2522
    %v2524 = vtanh.pop %v2523
    %v2525 = vmul.f32 %v2520, %v2524
    %vm2526 = vcmp.le.s32.totalorder %v566, 7
    %vm2527 = vcmp.gt.s32.totalorder %v566, 7
    %v2528 = vsel %vm2527, 1, 0
    %2529 = vrot.lane.b32.xlu0 %v2528, 127
    %v2530 = vpop.permute.xlu0 %2529
    %vm2531 = vcmp.ne.s32.totalorder %v2530, 0
    %vm2532 = vmand %vm2526, %vm2531
    %v2533 = vsel %vm2532, 1, 0
    %2534 = vset.pattern.permute.xlu0 0
    %2535 = vperm.xlu0 %2534, %v2533
    %v2536 = vpop.permute.xlu0 %2535
    %vm2537 = vcmp.eq.s32.totalorder %v2536, 1
    %v2538 = vsel %vm2537, %v2525, -1e+30
    %v2539 = vmax.f32 %v2343, %v2538
    %v2541 = vrot.slane %v2539, 2
    %v2543 = vsub.f32 %v2539, %v2541
    %v2544 = vand.u32 2147483647, %v2543
    %v2545 = vmul.f32 %v2539, %v2541
    %v2546 = vrot.slane %v2539, 4
    %v2548 = vrot.slane %v2539, 6
    %v2551 = vrot.slane %v2544, 4
    %v2554 = vrot.slane %v2545, 4
    %v2556 = vpack.c.bf16 %v2539, %v2539
    %v2557 = vpack.c.bf16 %v2546, %v2546
    %v2558 = vpack.c.bf16 %v2541, %v2541
    %v2559 = vpack.c.bf16 %v2548, %v2548
    %v2560 = vpack.c.bf16 %v2544, %v2544
    %v2561 = vpack.c.bf16 %v2551, %v2551
    %v2562 = vpack.c.bf16 %v2545, %v2545
    %v2563 = vpack.c.bf16 %v2554, %v2554
    %v2564 = vld [vmem:[%s4] sm:$0x1]
    %v2565 = vld [vmem:[%s4 + $0x1] sm:$0x1]
    %v2566 = vld [vmem:[%s5] sm:$0xf]
    %v2567 = vld [vmem:[%s5 + $0x4] sm:$0xf]
    %v2568 = vld [vmem:[%s5 + $0x8] sm:$0xf]
    %v2569 = vld [vmem:[%s5 + $0xc] sm:$0xf]
    %v2570 = vld [vmem:[%s5 + $0x10] sm:$0xf]
    %v2571 = vld [vmem:[%s5 + $0x14] sm:$0xf]
    %v2572 = vld [vmem:[%s5 + $0x18] sm:$0xf]
    %v2573 = vld [vmem:[%s5 + $0x1c] sm:$0xf]
    %v2574 = vld [vmem:[%s5 + $0x20] sm:$0xf]
    %v2575 = vld [vmem:[%s5 + $0x24] sm:$0xf]
    %v2576 = vld [vmem:[%s5 + $0x28] sm:$0xf]
    %v2577 = vld [vmem:[%s5 + $0x2c] sm:$0xf]
    %v2578 = vld [vmem:[%s5 + $0x30] sm:$0xf]
    %v2579 = vld [vmem:[%s5 + $0x34] sm:$0xf]
    %v2580 = vld [vmem:[%s5 + $0x38] sm:$0xf]
    %v2581 = vld [vmem:[%s5 + $0x3c] sm:$0xf]
    %v2582 = vld [vmem:[%s5 + $0x40] sm:$0xf]
    %v2583 = vld [vmem:[%s5 + $0x44] sm:$0xf]
    %v2584 = vld [vmem:[%s5 + $0x48] sm:$0xf]
    %v2585 = vld [vmem:[%s5 + $0x4c] sm:$0xf]
    %v2586 = vld [vmem:[%s5 + $0x50] sm:$0xf]
    %v2587 = vld [vmem:[%s5 + $0x54] sm:$0xf]
    %v2588 = vld [vmem:[%s5 + $0x58] sm:$0xf]
    %v2589 = vld [vmem:[%s5 + $0x5c] sm:$0xf]
    %v2590 = vld [vmem:[%s5 + $0x60] sm:$0xf]
    %v2591 = vld [vmem:[%s5 + $0x64] sm:$0xf]
    %v2592 = vld [vmem:[%s5 + $0x68] sm:$0xf]
    %v2593 = vld [vmem:[%s5 + $0x6c] sm:$0xf]
    %v2594 = vld [vmem:[%s5 + $0x70] sm:$0xf]
    %v2595 = vld [vmem:[%s5 + $0x74] sm:$0xf]
    %v2596 = vld [vmem:[%s5 + $0x78] sm:$0xf]
    %v2597 = vld [vmem:[%s5 + $0x7c] sm:$0xf]
    %v2598 = vld [vmem:[%s5 + $0x80] sm:$0xf]
    %v2599 = vld [vmem:[%s5 + $0x84] sm:$0xf]
    %v2600 = vld [vmem:[%s5 + $0x88] sm:$0xf]
    %v2601 = vld [vmem:[%s5 + $0x8c] sm:$0xf]
    %v2602 = vld [vmem:[%s5 + $0x90] sm:$0xf]
    %v2603 = vld [vmem:[%s5 + $0x94] sm:$0xf]
    %v2604 = vld [vmem:[%s5 + $0x98] sm:$0xf]
    %v2605 = vld [vmem:[%s5 + $0x9c] sm:$0xf]
    %v2606 = vld [vmem:[%s5 + $0xa0] sm:$0xf]
    %v2607 = vld [vmem:[%s5 + $0xa4] sm:$0xf]
    %v2608 = vld [vmem:[%s5 + $0xa8] sm:$0xf]
    %v2609 = vld [vmem:[%s5 + $0xac] sm:$0xf]
    %v2610 = vld [vmem:[%s5 + $0xb0] sm:$0xf]
    %v2611 = vld [vmem:[%s5 + $0xb4] sm:$0xf]
    %v2612 = vld [vmem:[%s5 + $0xb8] sm:$0xf]
    %v2613 = vld [vmem:[%s5 + $0xbc] sm:$0xf]
    %v2614 = vld [vmem:[%s5 + $0xc0] sm:$0xf]
    %v2615 = vld [vmem:[%s5 + $0xc4] sm:$0xf]
    %v2616 = vld [vmem:[%s5 + $0xc8] sm:$0xf]
    %v2617 = vld [vmem:[%s5 + $0xcc] sm:$0xf]
    %v2618 = vld [vmem:[%s5 + $0xd0] sm:$0xf]
    %v2619 = vld [vmem:[%s5 + $0xd4] sm:$0xf]
    %v2620 = vld [vmem:[%s5 + $0xd8] sm:$0xf]
    %v2621 = vld [vmem:[%s5 + $0xdc] sm:$0xf]
    %v2622 = vld [vmem:[%s5 + $0xe0] sm:$0xf]
    %v2623 = vld [vmem:[%s5 + $0xe4] sm:$0xf]
    %v2624 = vld [vmem:[%s5 + $0xe8] sm:$0xf]
    %v2625 = vld [vmem:[%s5 + $0xec] sm:$0xf]
    %v2626 = vld [vmem:[%s5 + $0xf0] sm:$0xf]
    %v2627 = vld [vmem:[%s5 + $0xf4] sm:$0xf]
    %v2628 = vld [vmem:[%s5 + $0xf8] sm:$0xf]
    %v2629 = vld [vmem:[%s5 + $0xfc] sm:$0xf]
    %v2630 = vld [vmem:[%s5 + $0x100] sm:$0xf]
    %v2631 = vld [vmem:[%s5 + $0x104] sm:$0xf]
    %v2632 = vld [vmem:[%s5 + $0x108] sm:$0xf]
    %v2633 = vld [vmem:[%s5 + $0x10c] sm:$0xf]
    %v2634 = vld [vmem:[%s5 + $0x110] sm:$0xf]
    %v2635 = vld [vmem:[%s5 + $0x114] sm:$0xf]
    %v2636 = vld [vmem:[%s5 + $0x118] sm:$0xf]
    %v2637 = vld [vmem:[%s5 + $0x11c] sm:$0xf]
    %v2638 = vld [vmem:[%s5 + $0x120] sm:$0xf]
    %v2639 = vld [vmem:[%s5 + $0x124] sm:$0xf]
    %v2640 = vld [vmem:[%s5 + $0x128] sm:$0xf]
    %v2641 = vld [vmem:[%s5 + $0x12c] sm:$0xf]
    %v2642 = vld [vmem:[%s5 + $0x130] sm:$0xf]
    %v2643 = vld [vmem:[%s5 + $0x134] sm:$0xf]
    %v2644 = vld [vmem:[%s5 + $0x138] sm:$0xf]
    %v2645 = vld [vmem:[%s5 + $0x13c] sm:$0xf]
    %v2646 = vld [vmem:[%s5 + $0x140] sm:$0xf]
    %v2647 = vld [vmem:[%s5 + $0x144] sm:$0xf]
    %v2648 = vld [vmem:[%s5 + $0x148] sm:$0xf]
    %v2649 = vld [vmem:[%s5 + $0x14c] sm:$0xf]
    %v2650 = vld [vmem:[%s5 + $0x150] sm:$0xf]
    %v2651 = vld [vmem:[%s5 + $0x154] sm:$0xf]
    %v2652 = vld [vmem:[%s5 + $0x158] sm:$0xf]
    %v2653 = vld [vmem:[%s5 + $0x15c] sm:$0xf]
    %v2654 = vld [vmem:[%s5 + $0x160] sm:$0xf]
    %v2655 = vld [vmem:[%s5 + $0x164] sm:$0xf]
    %v2656 = vld [vmem:[%s5 + $0x168] sm:$0xf]
    %v2657 = vld [vmem:[%s5 + $0x16c] sm:$0xf]
    %v2658 = vld [vmem:[%s5 + $0x170] sm:$0xf]
    %v2659 = vld [vmem:[%s5 + $0x174] sm:$0xf]
    %v2660 = vld [vmem:[%s5 + $0x178] sm:$0xf]
    %v2661 = vld [vmem:[%s5 + $0x17c] sm:$0xf]
    %v2662 = vld [vmem:[%s5 + $0x180] sm:$0xf]
    %v2663 = vld [vmem:[%s5 + $0x184] sm:$0xf]
    %v2664 = vld [vmem:[%s5 + $0x188] sm:$0xf]
    %v2665 = vld [vmem:[%s5 + $0x18c] sm:$0xf]
    %v2666 = vld [vmem:[%s5 + $0x190] sm:$0xf]
    %v2667 = vld [vmem:[%s5 + $0x194] sm:$0xf]
    %v2668 = vld [vmem:[%s5 + $0x198] sm:$0xf]
    %v2669 = vld [vmem:[%s5 + $0x19c] sm:$0xf]
    %v2670 = vld [vmem:[%s5 + $0x1a0] sm:$0xf]
    %v2671 = vld [vmem:[%s5 + $0x1a4] sm:$0xf]
    %v2672 = vld [vmem:[%s5 + $0x1a8] sm:$0xf]
    %v2673 = vld [vmem:[%s5 + $0x1ac] sm:$0xf]
    %v2674 = vld [vmem:[%s5 + $0x1b0] sm:$0xf]
    %v2675 = vld [vmem:[%s5 + $0x1b4] sm:$0xf]
    %v2676 = vld [vmem:[%s5 + $0x1b8] sm:$0xf]
    %v2677 = vld [vmem:[%s5 + $0x1bc] sm:$0xf]
    %v2678 = vld [vmem:[%s5 + $0x1c0] sm:$0xf]
    %v2679 = vld [vmem:[%s5 + $0x1c4] sm:$0xf]
    %v2680 = vld [vmem:[%s5 + $0x1c8] sm:$0xf]
    %v2681 = vld [vmem:[%s5 + $0x1cc] sm:$0xf]
    %v2682 = vld [vmem:[%s5 + $0x1d0] sm:$0xf]
    %v2683 = vld [vmem:[%s5 + $0x1d4] sm:$0xf]
    %v2684 = vld [vmem:[%s5 + $0x1d8] sm:$0xf]
    %v2685 = vld [vmem:[%s5 + $0x1dc] sm:$0xf]
    %v2686 = vld [vmem:[%s5 + $0x1e0] sm:$0xf]
    %v2687 = vld [vmem:[%s5 + $0x1e4] sm:$0xf]
    %v2688 = vld [vmem:[%s5 + $0x1e8] sm:$0xf]
    %v2689 = vld [vmem:[%s5 + $0x1ec] sm:$0xf]
    %v2690 = vld [vmem:[%s5 + $0x1f0] sm:$0xf]
    %v2691 = vld [vmem:[%s5 + $0x1f4] sm:$0xf]
    %v2692 = vld [vmem:[%s5 + $0x1f8] sm:$0xf]
    %v2693 = vld [vmem:[%s5 + $0x1fc] sm:$0xf]
    %v2695 = vperm.slane %v2564, 0
    %v2825 = vunpack.c.l.b16 %v2566
    %v2826 = vunpack.c.l.b16 %v2567
    %v2827 = vunpack.c.l.b16 %v2568
    %v2828 = vunpack.c.l.b16 %v2569
    %v2829 = vunpack.c.l.b16 %v2570
    %v2830 = vunpack.c.l.b16 %v2571
    %v2831 = vunpack.c.l.b16 %v2572
    %v2832 = vunpack.c.l.b16 %v2573
    %v2833 = vunpack.c.l.b16 %v2574
    %v2834 = vunpack.c.l.b16 %v2575
    %v2835 = vunpack.c.l.b16 %v2576
    %v2836 = vunpack.c.l.b16 %v2577
    %v2837 = vunpack.c.l.b16 %v2578
    %v2838 = vunpack.c.l.b16 %v2579
    %v2839 = vunpack.c.l.b16 %v2580
    %v2840 = vunpack.c.l.b16 %v2581
    %v2841 = vunpack.c.l.b16 %v2582
    %v2842 = vunpack.c.l.b16 %v2583
    %v2843 = vunpack.c.l.b16 %v2584
    %v2844 = vunpack.c.l.b16 %v2585
    %v2845 = vunpack.c.l.b16 %v2586
    %v2846 = vunpack.c.l.b16 %v2587
    %v2847 = vunpack.c.l.b16 %v2588
    %v2848 = vunpack.c.l.b16 %v2589
    %v2849 = vunpack.c.l.b16 %v2590
    %v2850 = vunpack.c.l.b16 %v2591
    %v2851 = vunpack.c.l.b16 %v2592
    %v2852 = vunpack.c.l.b16 %v2593
    %v2853 = vunpack.c.l.b16 %v2594
    %v2854 = vunpack.c.l.b16 %v2595
    %v2855 = vunpack.c.l.b16 %v2596
    %v2856 = vunpack.c.l.b16 %v2597
    %v2857 = vunpack.c.l.b16 %v2598
    %v2858 = vunpack.c.l.b16 %v2599
    %v2859 = vunpack.c.l.b16 %v2600
    %v2860 = vunpack.c.l.b16 %v2601
    %v2861 = vunpack.c.l.b16 %v2602
    %v2862 = vunpack.c.l.b16 %v2603
    %v2863 = vunpack.c.l.b16 %v2604
    %v2864 = vunpack.c.l.b16 %v2605
    %v2865 = vunpack.c.l.b16 %v2606
    %v2866 = vunpack.c.l.b16 %v2607
    %v2867 = vunpack.c.l.b16 %v2608
    %v2868 = vunpack.c.l.b16 %v2609
    %v2869 = vunpack.c.l.b16 %v2610
    %v2870 = vunpack.c.l.b16 %v2611
    %v2871 = vunpack.c.l.b16 %v2612
    %v2872 = vunpack.c.l.b16 %v2613
    %v2873 = vunpack.c.l.b16 %v2614
    %v2874 = vunpack.c.l.b16 %v2615
    %v2875 = vunpack.c.l.b16 %v2616
    %v2876 = vunpack.c.l.b16 %v2617
    %v2877 = vunpack.c.l.b16 %v2618
    %v2878 = vunpack.c.l.b16 %v2619
    %v2879 = vunpack.c.l.b16 %v2620
    %v2880 = vunpack.c.l.b16 %v2621
    %v2881 = vunpack.c.l.b16 %v2622
    %v2882 = vunpack.c.l.b16 %v2623
    %v2883 = vunpack.c.l.b16 %v2624
    %v2884 = vunpack.c.l.b16 %v2625
    %v2885 = vunpack.c.l.b16 %v2626
    %v2886 = vunpack.c.l.b16 %v2627
    %v2887 = vunpack.c.l.b16 %v2628
    %v2888 = vunpack.c.l.b16 %v2629
    %v2889 = vunpack.c.l.b16 %v2630
    %v2890 = vunpack.c.l.b16 %v2631
    %v2891 = vunpack.c.l.b16 %v2632
    %v2892 = vunpack.c.l.b16 %v2633
    %v2893 = vunpack.c.l.b16 %v2634
    %v2894 = vunpack.c.l.b16 %v2635
    %v2895 = vunpack.c.l.b16 %v2636
    %v2896 = vunpack.c.l.b16 %v2637
    %v2897 = vunpack.c.l.b16 %v2638
    %v2898 = vunpack.c.l.b16 %v2639
    %v2899 = vunpack.c.l.b16 %v2640
    %v2900 = vunpack.c.l.b16 %v2641
    %v2901 = vunpack.c.l.b16 %v2642
    %v2902 = vunpack.c.l.b16 %v2643
    %v2903 = vunpack.c.l.b16 %v2644
    %v2904 = vunpack.c.l.b16 %v2645
    %v2905 = vunpack.c.l.b16 %v2646
    %v2906 = vunpack.c.l.b16 %v2647
    %v2907 = vunpack.c.l.b16 %v2648
    %v2908 = vunpack.c.l.b16 %v2649
    %v2909 = vunpack.c.l.b16 %v2650
    %v2910 = vunpack.c.l.b16 %v2651
    %v2911 = vunpack.c.l.b16 %v2652
    %v2912 = vunpack.c.l.b16 %v2653
    %v2913 = vunpack.c.l.b16 %v2654
    %v2914 = vunpack.c.l.b16 %v2655
    %v2915 = vunpack.c.l.b16 %v2656
    %v2916 = vunpack.c.l.b16 %v2657
    %v2917 = vunpack.c.l.b16 %v2658
    %v2918 = vunpack.c.l.b16 %v2659
    %v2919 = vunpack.c.l.b16 %v2660
    %v2920 = vunpack.c.l.b16 %v2661
    %v2921 = vunpack.c.l.b16 %v2662
    %v2922 = vunpack.c.l.b16 %v2663
    %v2923 = vunpack.c.l.b16 %v2664
    %v2924 = vunpack.c.l.b16 %v2665
    %v2925 = vunpack.c.l.b16 %v2666
    %v2926 = vunpack.c.l.b16 %v2667
    %v2927 = vunpack.c.l.b16 %v2668
    %v2928 = vunpack.c.l.b16 %v2669
    %v2929 = vunpack.c.l.b16 %v2670
    %v2930 = vunpack.c.l.b16 %v2671
    %v2931 = vunpack.c.l.b16 %v2672
    %v2932 = vunpack.c.l.b16 %v2673
    %v2933 = vunpack.c.l.b16 %v2674
    %v2934 = vunpack.c.l.b16 %v2675
    %v2935 = vunpack.c.l.b16 %v2676
    %v2936 = vunpack.c.l.b16 %v2677
    %v2937 = vunpack.c.l.b16 %v2678
    %v2938 = vunpack.c.l.b16 %v2679
    %v2939 = vunpack.c.l.b16 %v2680
    %v2940 = vunpack.c.l.b16 %v2681
    %v2941 = vunpack.c.l.b16 %v2682
    %v2942 = vunpack.c.l.b16 %v2683
    %v2943 = vunpack.c.l.b16 %v2684
    %v2944 = vunpack.c.l.b16 %v2685
    %v2945 = vunpack.c.l.b16 %v2686
    %v2946 = vunpack.c.l.b16 %v2687
    %v2947 = vunpack.c.l.b16 %v2688
    %v2948 = vunpack.c.l.b16 %v2689
    %v2949 = vunpack.c.l.b16 %v2690
    %v2950 = vunpack.c.l.b16 %v2691
    %v2951 = vunpack.c.l.b16 %v2692
    %v2952 = vunpack.c.l.b16 %v2693
    %v2953 = vpack.c.b16 %v2826, %v2825
    %v2954 = vpack.c.b16 %v2828, %v2827
    %v2955 = vpack.c.b16 %v2830, %v2829
    %v2956 = vpack.c.b16 %v2832, %v2831
    %v2957 = vpack.c.b16 %v2834, %v2833
    %v2958 = vpack.c.b16 %v2836, %v2835
    %v2959 = vpack.c.b16 %v2838, %v2837
    %v2960 = vpack.c.b16 %v2840, %v2839
    %v2961 = vpack.c.b16 %v2842, %v2841
    %v2962 = vpack.c.b16 %v2844, %v2843
    %v2963 = vpack.c.b16 %v2846, %v2845
    %v2964 = vpack.c.b16 %v2848, %v2847
    %v2965 = vpack.c.b16 %v2850, %v2849
    %v2966 = vpack.c.b16 %v2852, %v2851
    %v2967 = vpack.c.b16 %v2854, %v2853
    %v2968 = vpack.c.b16 %v2856, %v2855
    %v2969 = vpack.c.b16 %v2858, %v2857
    %v2970 = vpack.c.b16 %v2860, %v2859
    %v2971 = vpack.c.b16 %v2862, %v2861
    %v2972 = vpack.c.b16 %v2864, %v2863
    %v2973 = vpack.c.b16 %v2866, %v2865
    %v2974 = vpack.c.b16 %v2868, %v2867
    %v2975 = vpack.c.b16 %v2870, %v2869
    %v2976 = vpack.c.b16 %v2872, %v2871
    %v2977 = vpack.c.b16 %v2874, %v2873
    %v2978 = vpack.c.b16 %v2876, %v2875
    %v2979 = vpack.c.b16 %v2878, %v2877
    %v2980 = vpack.c.b16 %v2880, %v2879
    %v2981 = vpack.c.b16 %v2882, %v2881
    %v2982 = vpack.c.b16 %v2884, %v2883
    %v2983 = vpack.c.b16 %v2886, %v2885
    %v2984 = vpack.c.b16 %v2888, %v2887
    %v2985 = vpack.c.b16 %v2890, %v2889
    %v2986 = vpack.c.b16 %v2892, %v2891
    %v2987 = vpack.c.b16 %v2894, %v2893
    %v2988 = vpack.c.b16 %v2896, %v2895
    %v2989 = vpack.c.b16 %v2898, %v2897
    %v2990 = vpack.c.b16 %v2900, %v2899
    %v2991 = vpack.c.b16 %v2902, %v2901
    %v2992 = vpack.c.b16 %v2904, %v2903
    %v2993 = vpack.c.b16 %v2906, %v2905
    %v2994 = vpack.c.b16 %v2908, %v2907
    %v2995 = vpack.c.b16 %v2910, %v2909
    %v2996 = vpack.c.b16 %v2912, %v2911
    %v2997 = vpack.c.b16 %v2914, %v2913
    %v2998 = vpack.c.b16 %v2916, %v2915
    %v2999 = vpack.c.b16 %v2918, %v2917
    %v3000 = vpack.c.b16 %v2920, %v2919
    %v3001 = vpack.c.b16 %v2922, %v2921
    %v3002 = vpack.c.b16 %v2924, %v2923
    %v3003 = vpack.c.b16 %v2926, %v2925
    %v3004 = vpack.c.b16 %v2928, %v2927
    %v3005 = vpack.c.b16 %v2930, %v2929
    %v3006 = vpack.c.b16 %v2932, %v2931
    %v3007 = vpack.c.b16 %v2934, %v2933
    %v3008 = vpack.c.b16 %v2936, %v2935
    %v3009 = vpack.c.b16 %v2938, %v2937
    %v3010 = vpack.c.b16 %v2940, %v2939
    %v3011 = vpack.c.b16 %v2942, %v2941
    %v3012 = vpack.c.b16 %v2944, %v2943
    %v3013 = vpack.c.b16 %v2946, %v2945
    %v3014 = vpack.c.b16 %v2948, %v2947
    %v3015 = vpack.c.b16 %v2950, %v2949
    %v3016 = vpack.c.b16 %v2952, %v2951
    %3081 = vmatpush.bf16.msra.mxu0 %v2960
    %3082 = vmatpush.bf16.msra.mxu0 %v2959
    %3083 = vmatpush.bf16.msra.mxu0 %v2958
    %3084 = vmatpush.bf16.msra.mxu0 %v2957
    %3085 = vmatpush.bf16.msra.mxu0 %v2956
    %3086 = vmatpush.bf16.msra.mxu0 %v2955
    %3087 = vmatpush.bf16.msra.mxu0 %v2954
    %3088 = vmatpush.bf16.msra.mxu0 %v2953
    %3089 = vmatmul.bf16.gmra.mxu0 %v2556
    %v3090 = vpop.f32.mrf.mxu0
    %v3091 = vadd.f32 %v2695, %v3090
    %v3092 = vpop.f32.mrf.mxu0
    %3093 = vdwg.mxu0
    %3094 = vmatpush.bf16.msra.mxu0 %v2968
    %3095 = vmatpush.bf16.msra.mxu0 %v2967
    %3096 = vmatpush.bf16.msra.mxu0 %v2966
    %3097 = vmatpush.bf16.msra.mxu0 %v2965
    %3098 = vmatpush.bf16.msra.mxu0 %v2964
    %3099 = vmatpush.bf16.msra.mxu0 %v2963
    %3100 = vmatpush.bf16.msra.mxu0 %v2962
    %3101 = vmatpush.bf16.msra.mxu0 %v2961
    %3102 = vmatmul.bf16.gmra.mxu0 %v2557
    %v3103 = vpop.f32.mrf.mxu0
    %v3104 = vadd.f32 %v3091, %v3103
    %v3105 = vpop.f32.mrf.mxu0
    %3106 = vdwg.mxu0
    %3107 = vmatpush.bf16.msra.mxu0 %v2976
    %3108 = vmatpush.bf16.msra.mxu0 %v2975
    %3109 = vmatpush.bf16.msra.mxu0 %v2974
    %3110 = vmatpush.bf16.msra.mxu0 %v2973
    %3111 = vmatpush.bf16.msra.mxu0 %v2972
    %3112 = vmatpush.bf16.msra.mxu0 %v2971
    %3113 = vmatpush.bf16.msra.mxu0 %v2970
    %3114 = vmatpush.bf16.msra.mxu0 %v2969
    %3115 = vmatmul.bf16.gmra.mxu0 %v2558
    %v3116 = vpop.f32.mrf.mxu0
    %v3117 = vadd.f32 %v3104, %v3116
    %v3118 = vpop.f32.mrf.mxu0
    %3119 = vdwg.mxu0
    %3120 = vmatpush.bf16.msra.mxu0 %v2984
    %3121 = vmatpush.bf16.msra.mxu0 %v2983
    %3122 = vmatpush.bf16.msra.mxu0 %v2982
    %3123 = vmatpush.bf16.msra.mxu0 %v2981
    %3124 = vmatpush.bf16.msra.mxu0 %v2980
    %3125 = vmatpush.bf16.msra.mxu0 %v2979
    %3126 = vmatpush.bf16.msra.mxu0 %v2978
    %3127 = vmatpush.bf16.msra.mxu0 %v2977
    %3128 = vmatmul.bf16.gmra.mxu0 %v2559
    %v3129 = vpop.f32.mrf.mxu0
    %v3130 = vadd.f32 %v3117, %v3129
    %v3131 = vpop.f32.mrf.mxu0
    %3132 = vdwg.mxu0
    %3133 = vmatpush.bf16.msra.mxu0 %v2992
    %3134 = vmatpush.bf16.msra.mxu0 %v2991
    %3135 = vmatpush.bf16.msra.mxu0 %v2990
    %3136 = vmatpush.bf16.msra.mxu0 %v2989
    %3137 = vmatpush.bf16.msra.mxu0 %v2988
    %3138 = vmatpush.bf16.msra.mxu0 %v2987
    %3139 = vmatpush.bf16.msra.mxu0 %v2986
    %3140 = vmatpush.bf16.msra.mxu0 %v2985
    %3141 = vmatmul.bf16.gmra.mxu0 %v2560
    %v3142 = vpop.f32.mrf.mxu0
    %v3143 = vadd.f32 %v3130, %v3142
    %v3144 = vpop.f32.mrf.mxu0
    %3145 = vdwg.mxu0
    %3146 = vmatpush.bf16.msra.mxu0 %v3000
    %3147 = vmatpush.bf16.msra.mxu0 %v2999
    %3148 = vmatpush.bf16.msra.mxu0 %v2998
    %3149 = vmatpush.bf16.msra.mxu0 %v2997
    %3150 = vmatpush.bf16.msra.mxu0 %v2996
    %3151 = vmatpush.bf16.msra.mxu0 %v2995
    %3152 = vmatpush.bf16.msra.mxu0 %v2994
    %3153 = vmatpush.bf16.msra.mxu0 %v2993
    %3154 = vmatmul.bf16.gmra.mxu0 %v2561
    %v3155 = vpop.f32.mrf.mxu0
    %v3156 = vadd.f32 %v3143, %v3155
    %v3157 = vpop.f32.mrf.mxu0
    %3158 = vdwg.mxu0
    %3159 = vmatpush.bf16.msra.mxu0 %v3008
    %3160 = vmatpush.bf16.msra.mxu0 %v3007
    %3161 = vmatpush.bf16.msra.mxu0 %v3006
    %3162 = vmatpush.bf16.msra.mxu0 %v3005
    %3163 = vmatpush.bf16.msra.mxu0 %v3004
    %3164 = vmatpush.bf16.msra.mxu0 %v3003
    %3165 = vmatpush.bf16.msra.mxu0 %v3002
    %3166 = vmatpush.bf16.msra.mxu0 %v3001
    %3167 = vmatmul.bf16.gmra.mxu0 %v2562
    %v3168 = vpop.f32.mrf.mxu0
    %v3169 = vadd.f32 %v3156, %v3168
    %v3170 = vpop.f32.mrf.mxu0
    %3171 = vdwg.mxu0
    %3172 = vmatpush.bf16.msra.mxu0 %v3016
    %3173 = vmatpush.bf16.msra.mxu0 %v3015
    %3174 = vmatpush.bf16.msra.mxu0 %v3014
    %3175 = vmatpush.bf16.msra.mxu0 %v3013
    %3176 = vmatpush.bf16.msra.mxu0 %v3012
    %3177 = vmatpush.bf16.msra.mxu0 %v3011
    %3178 = vmatpush.bf16.msra.mxu0 %v3010
    %3179 = vmatpush.bf16.msra.mxu0 %v3009
    %3180 = vmatmul.bf16.gmra.mxu0 %v2563
    %v3181 = vpop.f32.mrf.mxu0
    %v3182 = vadd.f32 %v3169, %v3181
    %v3183 = vpop.f32.mrf.mxu0
    %3184 = vdwg.mxu0
    %v3185 = vtanh.pop %v3182
    %v3186 = vpack.c.bf16 %v3185, %v3185
    %v3187 = vld [vmem:[%s6] sm:$0xf]
    %v3188 = vld [vmem:[%s6 + $0x4] sm:$0xf]
    %v3189 = vld [vmem:[%s6 + $0x8] sm:$0xf]
    %v3190 = vld [vmem:[%s6 + $0xc] sm:$0xf]
    %v3191 = vld [vmem:[%s6 + $0x10] sm:$0xf]
    %v3192 = vld [vmem:[%s6 + $0x14] sm:$0xf]
    %v3193 = vld [vmem:[%s6 + $0x18] sm:$0xf]
    %v3194 = vld [vmem:[%s6 + $0x1c] sm:$0xf]
    %v3195 = vld [vmem:[%s6 + $0x20] sm:$0xf]
    %v3196 = vld [vmem:[%s6 + $0x24] sm:$0xf]
    %v3197 = vld [vmem:[%s6 + $0x28] sm:$0xf]
    %v3198 = vld [vmem:[%s6 + $0x2c] sm:$0xf]
    %v3199 = vld [vmem:[%s6 + $0x30] sm:$0xf]
    %v3200 = vld [vmem:[%s6 + $0x34] sm:$0xf]
    %v3201 = vld [vmem:[%s6 + $0x38] sm:$0xf]
    %v3202 = vld [vmem:[%s6 + $0x3c] sm:$0xf]
    %v3204 = vperm.slane %v2565, 0
    %v3222 = vunpack.c.l.b16 %v3187
    %v3223 = vunpack.c.l.b16 %v3188
    %v3224 = vunpack.c.l.b16 %v3189
    %v3225 = vunpack.c.l.b16 %v3190
    %v3226 = vunpack.c.l.b16 %v3191
    %v3227 = vunpack.c.l.b16 %v3192
    %v3228 = vunpack.c.l.b16 %v3193
    %v3229 = vunpack.c.l.b16 %v3194
    %v3230 = vunpack.c.l.b16 %v3195
    %v3231 = vunpack.c.l.b16 %v3196
    %v3232 = vunpack.c.l.b16 %v3197
    %v3233 = vunpack.c.l.b16 %v3198
    %v3234 = vunpack.c.l.b16 %v3199
    %v3235 = vunpack.c.l.b16 %v3200
    %v3236 = vunpack.c.l.b16 %v3201
    %v3237 = vunpack.c.l.b16 %v3202
    %v3238 = vpack.c.b16 %v3223, %v3222
    %v3239 = vpack.c.b16 %v3225, %v3224
    %v3240 = vpack.c.b16 %v3227, %v3226
    %v3241 = vpack.c.b16 %v3229, %v3228
    %v3242 = vpack.c.b16 %v3231, %v3230
    %v3243 = vpack.c.b16 %v3233, %v3232
    %v3244 = vpack.c.b16 %v3235, %v3234
    %v3245 = vpack.c.b16 %v3237, %v3236
    %3254 = vmatpush.bf16.msra.mxu0 %v3245
    %3255 = vmatpush.bf16.msra.mxu0 %v3244
    %3256 = vmatpush.bf16.msra.mxu0 %v3243
    %3257 = vmatpush.bf16.msra.mxu0 %v3242
    %3258 = vmatpush.bf16.msra.mxu0 %v3241
    %3259 = vmatpush.bf16.msra.mxu0 %v3240
    %3260 = vmatpush.bf16.msra.mxu0 %v3239
    %3261 = vmatpush.bf16.msra.mxu0 %v3238
    %3262 = vmatmul.bf16.gmra.mxu0 %v3186
    %v3263 = vpop.f32.mrf.mxu0
    %v3264 = vadd.f32 %v3204, %v3263
    %v3265 = vpop.f32.mrf.mxu0
    %3266 = vdwg.mxu0
    %3267 = vst [vmem:[#allocation3] sm:$0x3] %v3264
    // Predicated region
    $region30: #{siamese_forward.1} parent=1 // pred_check
      _
    $region31: #{siamese_forward.1} parent=1 // pred_check_branch
      %3269 = sbr.rel (0) target = $region33
    $region32: #{siamese_forward.1} parent=1 // pred_region
      %3271 = vsyncadd [#allocation4], 0
      %s3273 = sshll.u32 [#allocation3], 4
      %s3274 = int_to_ptr.vmem [resolvable:$true] %s3273
      %s3275 = sshll.u32 %s7, 4
      %s3276 = int_to_ptr.hbm [resolvable:$true] %s3275
      %3278 = dma.vmem_to_hbm [thread:$0]  %s3274, 32, %s3276, [#allocation4]
    $region33: #{siamese_forward.1} parent=1 // pred_fallthru
      _
    // Predicated region
    $region34: #{siamese_forward.1} parent=1 // pred_check
      _
    $region35: #{siamese_forward.1} parent=1 // pred_check_branch
      %3280 = sbr.rel (0) target = $region37
    $region36: #{siamese_forward.1} parent=1 // pred_region
      %3282 = dma.done [#allocation4], 32
    $region37: #{siamese_forward.1} parent=1 // pred_fallthru
      _
    %3283 = vsyncpa [#allocation4], 1

</llo_original>
